<compile_context>
chip_gen: v7x
topology: tpu7x:2x2x1
jax: 0.10.0
libtpu: 0.0.40
codegen_flags: <defaults>
</compile_context>

<pallas_src>
import functools

import jax
import jax.numpy as jnp
import numpy as np
from jax import lax
from jax.experimental import pallas as pl
from jax.experimental.pallas import tpu as pltpu


# --------------------------------------------------------------------------
# Kernel
# --------------------------------------------------------------------------
def _make_kernel(tile_h, width, cp):
    th, w = tile_h, width

    def kernel(xp_hbm, w1_ref, b1_ref, w2_ref, b2_ref, out_ref,
               xbuf, y1p_ref, sem):
        # xp_hbm : (N, H+4, W+2, cp) HBM ref; rows = [junk, reflect, x..., reflect, junk]
        # w*_ref : (3, 3, cp, cp) VMEM (compute dtype), b*_ref: (1, cp) f32 VMEM
        # out_ref: (1, th, W, cp) f32
        # xbuf   : (2, th+4, W+2, cp) VMEM scratch (double-buffered halo tile)
        # y1p_ref: (th+2, W+2, cp) VMEM scratch (reflection-padded intermediate)
        n = pl.program_id(0)
        i = pl.program_id(1)
        n_tiles = pl.num_programs(1)

        def start_fetch(tile_idx, slot):
            pltpu.make_async_copy(
                xp_hbm.at[n, pl.ds(tile_idx * th, th + 4)],
                xbuf.at[slot], sem.at[slot]).start()

        # Prime the per-image pipeline at the first row tile.
        @pl.when(i == 0)
        def _():
            start_fetch(0, 0)

        slot = i % 2
        # Wait for the current halo'd row tile.
        pltpu.make_async_copy(
            xp_hbm.at[n, pl.ds(i * th, th + 4)],
            xbuf.at[slot], sem.at[slot]).wait()

        # Prefetch the next row tile while computing on this one.
        @pl.when(i + 1 < n_tiles)
        def _():
            start_fetch(i + 1, 1 - slot)

        xb = xbuf[slot]                    # (th+4, W+2, cp), compute dtype

        # ---- conv1: 3x3 valid on the pre-padded tile, bias folded into acc ----
        rows1 = th + 2
        acc1 = jnp.broadcast_to(b1_ref[...], (rows1, w, cp)).astype(jnp.float32)
        for dh in range(3):
            for dw in range(3):
                patch = xb[dh:dh + rows1, dw:dw + w, :]
                acc1 = acc1 + jnp.einsum(
                    "hwc,cd->hwd", patch, w1_ref[dh, dw],
                    preferred_element_type=jnp.float32)
        y1 = jnp.maximum(acc1, 0.0).astype(xb.dtype)        # ReLU in f32, cast for MXU

        # ---- reflection pad of the intermediate y1 (what PyTorch reflects) ----
        # W axis: write into padded scratch + reflect the two border columns.
        y1p_ref[:, 1:w + 1, :] = y1
        y1p_ref[:, 0:1, :] = y1[:, 1:2, :]
        y1p_ref[:, w + 1:w + 2, :] = y1[:, w - 2:w - 1, :]
        # H axis: interior tiles already carry the 1-row halo from the bigger
        # conv1 window; only the first/last tile need the reflected border row.
        @pl.when(i == 0)
        def _():
            y1p_ref[0:1] = y1p_ref[2:3]
        @pl.when(i == n_tiles - 1)
        def _():
            y1p_ref[th + 1:th + 2] = y1p_ref[th - 1:th]

        # ---- conv2: 3x3 valid + bias + residual add ----
        yb = y1p_ref[...]
        acc2 = jnp.broadcast_to(b2_ref[...], (th, w, cp)).astype(jnp.float32)
        for dh in range(3):
            for dw in range(3):
                patch = yb[dh:dh + th, dw:dw + w, :]
                acc2 = acc2 + jnp.einsum(
                    "hwc,cd->hwd", patch, w2_ref[dh, dw],
                    preferred_element_type=jnp.float32)

        x_res = xb[2:th + 2, 1:w + 1, :].astype(jnp.float32)  # residual in f32
        out_ref[0] = (x_res + acc2).astype(out_ref.dtype)

    return kernel


def _pick_tile_h(h, target=32):
    t = min(h, target)
    while h % t:
        t -= 1
    return t


# --------------------------------------------------------------------------
# Wrapper: NCHW in / NCHW out (layout + channel padding glue in plain JAX)
# --------------------------------------------------------------------------
def resnet_block(x_nchw, w1_hwio, b1, w2_hwio, b2, *, tile_h=None,
                 compute_dtype=jnp.bfloat16):
    N, C, H, W = x_nchw.shape
    assert H >= 2 and W >= 2, "ReflectionPad2d(1) requires H, W >= 2"
    Cp = ((C + 127) // 128) * 128            # lane-dense channel count
    if tile_h is None:
        tile_h = _pick_tile_h(H)
    assert H % tile_h == 0, "tile_h must divide H"
    n_tiles = H // tile_h

    # NCHW -> NHWC.  (In a full NHWC model these two transposes disappear.)
    x = jnp.transpose(x_nchw, (0, 2, 3, 1)).astype(jnp.float32)
    if Cp != C:
        x = jnp.pad(x, ((0, 0), (0, 0), (0, 0), (0, Cp - C)))
    # Reflection pad 1 in H/W (conv1's pad), plus one dummy zero row on each
    # H side so every row tile's halo DMA is the same fixed-size window.
    xp = jnp.pad(x, ((0, 0), (1, 1), (1, 1), (0, 0)), mode="reflect")
    xp = jnp.pad(xp, ((0, 0), (1, 1), (0, 0), (0, 0)))
    xp = xp.astype(compute_dtype)

    def prep_w(wt):
        if Cp != C:
            wt = jnp.pad(wt, ((0, 0), (0, 0), (0, Cp - C), (0, Cp - C)))
        return wt.astype(compute_dtype)

    w1p, w2p = prep_w(w1_hwio), prep_w(w2_hwio)
    b1p = jnp.pad(b1, (0, Cp - C)).reshape(1, Cp).astype(jnp.float32)
    b2p = jnp.pad(b2, (0, Cp - C)).reshape(1, Cp).astype(jnp.float32)

    kernel = _make_kernel(tile_h, W, Cp)

    grid_spec = pltpu.PrefetchScalarGridSpec(
        num_scalar_prefetch=0,
        grid=(N, n_tiles),
        in_specs=[
            pl.BlockSpec(memory_space=pl.ANY),                        # x stays in HBM
            pl.BlockSpec((3, 3, Cp, Cp), lambda n, i: (0, 0, 0, 0)),  # w1 resident
            pl.BlockSpec((1, Cp), lambda n, i: (0, 0)),               # b1 resident
            pl.BlockSpec((3, 3, Cp, Cp), lambda n, i: (0, 0, 0, 0)),  # w2 resident
            pl.BlockSpec((1, Cp), lambda n, i: (0, 0)),               # b2 resident
        ],
        out_specs=pl.BlockSpec((1, tile_h, W, Cp), lambda n, i: (n, i, 0, 0)),
        scratch_shapes=[
            pltpu.VMEM((2, tile_h + 4, W + 2, Cp), compute_dtype),    # halo double-buffer
            pltpu.VMEM((tile_h + 2, W + 2, Cp), compute_dtype),       # padded y1
            pltpu.SemaphoreType.DMA((2,)),
        ],
    )

    out = pl.pallas_call(
        kernel,
        out_shape=jax.ShapeDtypeStruct((N, H, W, Cp), jnp.float32),
        grid_spec=grid_spec,
        compiler_params=pltpu.CompilerParams(
            # batch axis can shard across v7x's 2 TensorCores; the row axis is
            # sequential because of the per-image manual prefetch pipeline.
            dimension_semantics=("parallel", "arbitrary"),
            # Explicit budget that also fits v7x's 64 MiB physical VMEM.
            vmem_limit_bytes=48 * 1024 * 1024),
    )(xp, w1p, b1p, w2p, b2p)

    out = out[..., :C]
    return jnp.transpose(out, (0, 3, 1, 2))


# --------------------------------------------------------------------------
# Parameter setup (plain-JAX glue)
# --------------------------------------------------------------------------
def spectral_normalize(w_oihw, n_iter=30):
    """Divide weight by its largest singular value (spectral_norm semantics)."""
    cout = w_oihw.shape[0]
    wm = w_oihw.reshape(cout, -1)
    v = jnp.ones((wm.shape[1],), jnp.float32)
    for _ in range(n_iter):
        u = wm @ v
        u = u / (jnp.linalg.norm(u) + 1e-12)
        v = wm.T @ u
        v = v / (jnp.linalg.norm(v) + 1e-12)
    sigma = u @ wm @ v
    return w_oihw / sigma


def make_params(key, dim, kernel_size=3):
    k1, k2, k3, k4 = jax.random.split(key, 4)
    fan_in = dim * kernel_size * kernel_size
    bound = 1.0 / np.sqrt(fan_in)
    w1 = jax.random.uniform(k1, (dim, dim, kernel_size, kernel_size),
                            jnp.float32, -bound, bound)   # OIHW like PyTorch
    w2 = jax.random.uniform(k2, (dim, dim, kernel_size, kernel_size),
                            jnp.float32, -bound, bound)
    b1 = jax.random.uniform(k3, (dim,), jnp.float32, -bound, bound)
    b2 = jax.random.uniform(k4, (dim,), jnp.float32, -bound, bound)
    w1 = spectral_normalize(w1)
    w2 = spectral_normalize(w2)
    # OIHW -> HWIO for the NHWC kernel
    return (jnp.transpose(w1, (2, 3, 1, 0)), b1,
            jnp.transpose(w2, (2, 3, 1, 0)), b2)


# --------------------------------------------------------------------------
# Pure-JAX reference (NCHW, mirrors the PyTorch module)
# --------------------------------------------------------------------------
def reference_forward(x_nchw, w1_hwio, b1, w2_hwio, b2):
    def conv(a, w_hwio, b):
        a = jnp.pad(a, ((0, 0), (0, 0), (1, 1), (1, 1)), mode="reflect")
        y = lax.conv_general_dilated(
            a, w_hwio, window_strides=(1, 1), padding="VALID",
            dimension_numbers=("NCHW", "HWIO", "NCHW"))
        return y + b.reshape(1, -1, 1, 1)

    y = conv(x_nchw, w1_hwio, b1)
    y = jnp.maximum(y, 0.0)
    y = conv(y, w2_hwio, b2)
    return x_nchw + y


if __name__ == "__main__":
    key = jax.random.PRNGKey(0)
    kx, kp = jax.random.split(key)

    N, C, H, W = 2, 4, 16, 16
    x = jax.random.normal(kx, (N, C, H, W), jnp.float32)
    w1, b1, w2, b2 = make_params(kp, C)

    ref = reference_forward(x, w1, b1, w2, b2)

    # f32 compute path: tight check of the tiling / halo / reflection logic.
    out_f32 = jax.block_until_ready(
        resnet_block(x, w1, b1, w2, b2, tile_h=8, compute_dtype=jnp.float32))
    np.testing.assert_allclose(np.asarray(out_f32), np.asarray(ref),
                               rtol=1e-4, atol=1e-5)

    # Default bf16 MXU path: loose tolerance for bf16 operand rounding.
    out_bf16 = jax.block_until_ready(
        resnet_block(x, w1, b1, w2, b2, tile_h=8))
    np.testing.assert_allclose(np.asarray(out_bf16), np.asarray(ref),
                               rtol=5e-2, atol=5e-2)

    print("KERNEL_OK")
</pallas_src>

<mosaic_0001>
module attributes {stable_mosaic.version = 11 : i64} {
  func.func @kernel(%arg0: i32, %arg1: i32, %arg2: memref<2x20x18x128xf32, #tpu.memory_space<any>>, %arg3: memref<3x3x128x128xf32, #tpu.memory_space<vmem>>, %arg4: memref<1x128xf32, #tpu.memory_space<vmem>>, %arg5: memref<3x3x128x128xf32, #tpu.memory_space<vmem>>, %arg6: memref<1x128xf32, #tpu.memory_space<vmem>>, %arg7: memref<1x8x16x128xf32, #tpu.memory_space<vmem>>, %arg8: memref<2x12x18x128xf32, #tpu.memory_space<vmem>>, %arg9: memref<10x18x128xf32, #tpu.memory_space<vmem>>, %arg10: memref<2x!tpu.dma_semaphore, #tpu.memory_space<semaphore_mem>>) attributes {dimension_semantics = [#tpu.dimension_semantics<parallel>, #tpu.dimension_semantics<arbitrary>], iteration_bounds = array<i64: 2, 2>, scalar_prefetch = 0 : i64, scratch_operands = 3 : i64, tpu.core_type = #tpu.core_type<tc>, window_params = [{}, {pipeline_mode = #tpu.pipeline_mode<synchronous>, transform_indices = @transform_1, window_bounds = array<i64: 3, 3, 128, 128>}, {pipeline_mode = #tpu.pipeline_mode<synchronous>, transform_indices = @transform_2, window_bounds = array<i64: 1, 128>}, {pipeline_mode = #tpu.pipeline_mode<synchronous>, transform_indices = @transform_3, window_bounds = array<i64: 3, 3, 128, 128>}, {pipeline_mode = #tpu.pipeline_mode<synchronous>, transform_indices = @transform_4, window_bounds = array<i64: 1, 128>}, {transform_indices = @transform_5, window_bounds = array<i64: 1, 8, 16, 128>}]} {
    %c0_i32 = arith.constant 0 : i32
    %0 = arith.cmpi eq, %arg1, %c0_i32 : i32
    %1 = arith.extui %0 : i1 to i32
    %c0_i32_0 = arith.constant 0 : i32
    %2 = arith.cmpi ne, %1, %c0_i32_0 : i32
    scf.if %2 {
      %c0_i32_126 = arith.constant 0 : i32
      %c0_i32_127 = arith.constant 0 : i32
      %c0_i32_128 = arith.constant 0 : i32
      %c0_i32_129 = arith.constant 0 : i32
      %c0_i32_130 = arith.constant 0 : i32
      %142 = tpu.memref_slice %arg2[%arg0, %c0_i32_128, %c0_i32_129, %c0_i32_130] : memref<2x20x18x128xf32, #tpu.memory_space<any>> -> memref<1x12x18x128xf32, #tpu.memory_space<any>>
      %143 = tpu.memref_squeeze %142 : memref<1x12x18x128xf32, #tpu.memory_space<any>> -> memref<12x18x128xf32, #tpu.memory_space<any>>
      %c0_i32_131 = arith.constant 0 : i32
      %c0_i32_132 = arith.constant 0 : i32
      %c0_i32_133 = arith.constant 0 : i32
      %144 = tpu.memref_slice %arg8[%c0_i32_126, %c0_i32_131, %c0_i32_132, %c0_i32_133] : memref<2x12x18x128xf32, #tpu.memory_space<vmem>> -> memref<1x12x18x128xf32, #tpu.memory_space<vmem>>
      %145 = tpu.memref_squeeze %144 : memref<1x12x18x128xf32, #tpu.memory_space<vmem>> -> memref<12x18x128xf32, #tpu.memory_space<vmem>>
      %146 = tpu.memref_slice %arg10[%c0_i32_127] : memref<2x!tpu.dma_semaphore, #tpu.memory_space<semaphore_mem>> -> memref<1x!tpu.dma_semaphore, #tpu.memory_space<semaphore_mem>>
      %147 = tpu.memref_squeeze %146 : memref<1x!tpu.dma_semaphore, #tpu.memory_space<semaphore_mem>> -> memref<!tpu.dma_semaphore, #tpu.memory_space<semaphore_mem>>
      tpu.enqueue_dma source(%143 : memref<12x18x128xf32, #tpu.memory_space<any>>) target(%145 : memref<12x18x128xf32, #tpu.memory_space<vmem>>) target_semaphore(%147 : memref<!tpu.dma_semaphore, #tpu.memory_space<semaphore_mem>>)
    } else {
    }
    %c2_i32 = arith.constant 2 : i32
    %c0_i32_1 = arith.constant 0 : i32
    %3 = arith.cmpi eq, %c2_i32, %c0_i32_1 : i32
    %c1_i32 = arith.constant 1 : i32
    %4 = arith.select %3, %c1_i32, %c2_i32 : i32
    %5 = arith.remsi %arg1, %4 : i32
    %c0_i32_2 = arith.constant 0 : i32
    %6 = arith.cmpi ne, %5, %c0_i32_2 : i32
    %c0_i32_3 = arith.constant 0 : i32
    %7 = arith.cmpi slt, %5, %c0_i32_3 : i32
    %c0_i32_4 = arith.constant 0 : i32
    %8 = arith.cmpi slt, %4, %c0_i32_4 : i32
    %9 = arith.xori %7, %8 : i1
    %10 = arith.andi %9, %6 : i1
    %11 = arith.addi %5, %4 : i32
    %12 = arith.select %10, %11, %5 : i32
    %c8_i32 = arith.constant 8 : i32
    %13 = arith.muli %arg1, %c8_i32 : i32
    %c0_i32_5 = arith.constant 0 : i32
    %c0_i32_6 = arith.constant 0 : i32
    %14 = tpu.memref_slice %arg2[%arg0, %13, %c0_i32_5, %c0_i32_6] : memref<2x20x18x128xf32, #tpu.memory_space<any>> -> memref<1x12x18x128xf32, #tpu.memory_space<any>>
    %15 = tpu.memref_squeeze %14 : memref<1x12x18x128xf32, #tpu.memory_space<any>> -> memref<12x18x128xf32, #tpu.memory_space<any>>
    %c0_i32_7 = arith.constant 0 : i32
    %c0_i32_8 = arith.constant 0 : i32
    %c0_i32_9 = arith.constant 0 : i32
    %16 = tpu.memref_slice %arg8[%12, %c0_i32_7, %c0_i32_8, %c0_i32_9] : memref<2x12x18x128xf32, #tpu.memory_space<vmem>> -> memref<1x12x18x128xf32, #tpu.memory_space<vmem>>
    %17 = tpu.memref_squeeze %16 : memref<1x12x18x128xf32, #tpu.memory_space<vmem>> -> memref<12x18x128xf32, #tpu.memory_space<vmem>>
    %18 = tpu.memref_slice %arg10[%12] : memref<2x!tpu.dma_semaphore, #tpu.memory_space<semaphore_mem>> -> memref<1x!tpu.dma_semaphore, #tpu.memory_space<semaphore_mem>>
    %19 = tpu.memref_squeeze %18 : memref<1x!tpu.dma_semaphore, #tpu.memory_space<semaphore_mem>> -> memref<!tpu.dma_semaphore, #tpu.memory_space<semaphore_mem>>
    tpu.wait_dma2 semaphore(%19 : memref<!tpu.dma_semaphore, #tpu.memory_space<semaphore_mem>>) src(%15 : memref<12x18x128xf32, #tpu.memory_space<any>>) dst(%17 : memref<12x18x128xf32, #tpu.memory_space<vmem>>)
    %c1_i32_10 = arith.constant 1 : i32
    %20 = arith.addi %arg1, %c1_i32_10 : i32
    %c2_i32_11 = arith.constant 2 : i32
    %21 = arith.cmpi slt, %20, %c2_i32_11 : i32
    %22 = arith.extui %21 : i1 to i32
    %c0_i32_12 = arith.constant 0 : i32
    %23 = arith.cmpi ne, %22, %c0_i32_12 : i32
    scf.if %23 {
      %c1_i32_126 = arith.constant 1 : i32
      %142 = arith.addi %arg1, %c1_i32_126 : i32
      %c1_i32_127 = arith.constant 1 : i32
      %143 = arith.subi %c1_i32_127, %12 : i32
      %c8_i32_128 = arith.constant 8 : i32
      %144 = arith.muli %142, %c8_i32_128 : i32
      %c0_i32_129 = arith.constant 0 : i32
      %c0_i32_130 = arith.constant 0 : i32
      %145 = tpu.memref_slice %arg2[%arg0, %144, %c0_i32_129, %c0_i32_130] : memref<2x20x18x128xf32, #tpu.memory_space<any>> -> memref<1x12x18x128xf32, #tpu.memory_space<any>>
      %146 = tpu.memref_squeeze %145 : memref<1x12x18x128xf32, #tpu.memory_space<any>> -> memref<12x18x128xf32, #tpu.memory_space<any>>
      %c0_i32_131 = arith.constant 0 : i32
      %c0_i32_132 = arith.constant 0 : i32
      %c0_i32_133 = arith.constant 0 : i32
      %147 = tpu.memref_slice %arg8[%143, %c0_i32_131, %c0_i32_132, %c0_i32_133] : memref<2x12x18x128xf32, #tpu.memory_space<vmem>> -> memref<1x12x18x128xf32, #tpu.memory_space<vmem>>
      %148 = tpu.memref_squeeze %147 : memref<1x12x18x128xf32, #tpu.memory_space<vmem>> -> memref<12x18x128xf32, #tpu.memory_space<vmem>>
      %149 = tpu.memref_slice %arg10[%143] : memref<2x!tpu.dma_semaphore, #tpu.memory_space<semaphore_mem>> -> memref<1x!tpu.dma_semaphore, #tpu.memory_space<semaphore_mem>>
      %150 = tpu.memref_squeeze %149 : memref<1x!tpu.dma_semaphore, #tpu.memory_space<semaphore_mem>> -> memref<!tpu.dma_semaphore, #tpu.memory_space<semaphore_mem>>
      tpu.enqueue_dma source(%146 : memref<12x18x128xf32, #tpu.memory_space<any>>) target(%148 : memref<12x18x128xf32, #tpu.memory_space<vmem>>) target_semaphore(%150 : memref<!tpu.dma_semaphore, #tpu.memory_space<semaphore_mem>>)
    } else {
    }
    %24 = arith.index_cast %12 : i32 to index
    %c0 = arith.constant 0 : index
    %c0_13 = arith.constant 0 : index
    %c0_14 = arith.constant 0 : index
    %25 = vector.load %arg8[%24, %c0, %c0_13, %c0_14] : memref<2x12x18x128xf32, #tpu.memory_space<vmem>>, vector<1x12x18x128xf32>
    %26 = vector.shape_cast %25 : vector<1x12x18x128xf32> to vector<12x18x128xf32>
    %c0_15 = arith.constant 0 : index
    %c0_16 = arith.constant 0 : index
    %27 = vector.load %arg4[%c0_15, %c0_16] : memref<1x128xf32, #tpu.memory_space<vmem>>, vector<1x128xf32>
    %28 = vector.shape_cast %27 : vector<1x128xf32> to vector<1x1x128xf32>
    %29 = vector.broadcast %28 : vector<1x1x128xf32> to vector<10x16x128xf32>
    %30 = vector.extract_strided_slice %26 {offsets = [0, 0, 0], sizes = [10, 16, 128], strides = [1, 1, 1]} : vector<12x18x128xf32> to vector<10x16x128xf32>
    %c0_17 = arith.constant 0 : index
    %c0_18 = arith.constant 0 : index
    %c0_19 = arith.constant 0 : index
    %c0_20 = arith.constant 0 : index
    %31 = vector.load %arg3[%c0_17, %c0_18, %c0_19, %c0_20] : memref<3x3x128x128xf32, #tpu.memory_space<vmem>>, vector<1x1x128x128xf32>
    %32 = vector.shape_cast %31 : vector<1x1x128x128xf32> to vector<128x128xf32>
    "tpu.trace_start"() <{level = 10 : i32, message = "hwc,cd->hwd"}> : () -> ()
    %cst = arith.constant dense<0.000000e+00> : vector<10x16x128xf32>
    %33 = tpu.matmul %30, %32, %cst {dimension_numbers = #tpu.dot_dimension_numbers<[2], [0], [0, 1], [1], [0, 0, 0, 1, 1, 1], [], []>} : vector<10x16x128xf32>, vector<128x128xf32>, vector<10x16x128xf32> -> vector<10x16x128xf32>
    "tpu.trace_stop"() : () -> ()
    %34 = arith.addf %29, %33 : vector<10x16x128xf32>
    %35 = vector.extract_strided_slice %26 {offsets = [0, 1, 0], sizes = [10, 16, 128], strides = [1, 1, 1]} : vector<12x18x128xf32> to vector<10x16x128xf32>
    %c0_21 = arith.constant 0 : index
    %c1 = arith.constant 1 : index
    %c0_22 = arith.constant 0 : index
    %c0_23 = arith.constant 0 : index
    %36 = vector.load %arg3[%c0_21, %c1, %c0_22, %c0_23] : memref<3x3x128x128xf32, #tpu.memory_space<vmem>>, vector<1x1x128x128xf32>
    %37 = vector.shape_cast %36 : vector<1x1x128x128xf32> to vector<128x128xf32>
    "tpu.trace_start"() <{level = 10 : i32, message = "hwc,cd->hwd"}> : () -> ()
    %cst_24 = arith.constant dense<0.000000e+00> : vector<10x16x128xf32>
    %38 = tpu.matmul %35, %37, %cst_24 {dimension_numbers = #tpu.dot_dimension_numbers<[2], [0], [0, 1], [1], [0, 0, 0, 1, 1, 1], [], []>} : vector<10x16x128xf32>, vector<128x128xf32>, vector<10x16x128xf32> -> vector<10x16x128xf32>
    "tpu.trace_stop"() : () -> ()
    %39 = arith.addf %34, %38 : vector<10x16x128xf32>
    %40 = vector.extract_strided_slice %26 {offsets = [0, 2, 0], sizes = [10, 16, 128], strides = [1, 1, 1]} : vector<12x18x128xf32> to vector<10x16x128xf32>
    %c0_25 = arith.constant 0 : index
    %c2 = arith.constant 2 : index
    %c0_26 = arith.constant 0 : index
    %c0_27 = arith.constant 0 : index
    %41 = vector.load %arg3[%c0_25, %c2, %c0_26, %c0_27] : memref<3x3x128x128xf32, #tpu.memory_space<vmem>>, vector<1x1x128x128xf32>
    %42 = vector.shape_cast %41 : vector<1x1x128x128xf32> to vector<128x128xf32>
    "tpu.trace_start"() <{level = 10 : i32, message = "hwc,cd->hwd"}> : () -> ()
    %cst_28 = arith.constant dense<0.000000e+00> : vector<10x16x128xf32>
    %43 = tpu.matmul %40, %42, %cst_28 {dimension_numbers = #tpu.dot_dimension_numbers<[2], [0], [0, 1], [1], [0, 0, 0, 1, 1, 1], [], []>} : vector<10x16x128xf32>, vector<128x128xf32>, vector<10x16x128xf32> -> vector<10x16x128xf32>
    "tpu.trace_stop"() : () -> ()
    %44 = arith.addf %39, %43 : vector<10x16x128xf32>
    %45 = vector.extract_strided_slice %26 {offsets = [1, 0, 0], sizes = [10, 16, 128], strides = [1, 1, 1]} : vector<12x18x128xf32> to vector<10x16x128xf32>
    %c1_29 = arith.constant 1 : index
    %c0_30 = arith.constant 0 : index
    %c0_31 = arith.constant 0 : index
    %c0_32 = arith.constant 0 : index
    %46 = vector.load %arg3[%c1_29, %c0_30, %c0_31, %c0_32] : memref<3x3x128x128xf32, #tpu.memory_space<vmem>>, vector<1x1x128x128xf32>
    %47 = vector.shape_cast %46 : vector<1x1x128x128xf32> to vector<128x128xf32>
    "tpu.trace_start"() <{level = 10 : i32, message = "hwc,cd->hwd"}> : () -> ()
    %cst_33 = arith.constant dense<0.000000e+00> : vector<10x16x128xf32>
    %48 = tpu.matmul %45, %47, %cst_33 {dimension_numbers = #tpu.dot_dimension_numbers<[2], [0], [0, 1], [1], [0, 0, 0, 1, 1, 1], [], []>} : vector<10x16x128xf32>, vector<128x128xf32>, vector<10x16x128xf32> -> vector<10x16x128xf32>
    "tpu.trace_stop"() : () -> ()
    %49 = arith.addf %44, %48 : vector<10x16x128xf32>
    %50 = vector.extract_strided_slice %26 {offsets = [1, 1, 0], sizes = [10, 16, 128], strides = [1, 1, 1]} : vector<12x18x128xf32> to vector<10x16x128xf32>
    %c1_34 = arith.constant 1 : index
    %c1_35 = arith.constant 1 : index
    %c0_36 = arith.constant 0 : index
    %c0_37 = arith.constant 0 : index
    %51 = vector.load %arg3[%c1_34, %c1_35, %c0_36, %c0_37] : memref<3x3x128x128xf32, #tpu.memory_space<vmem>>, vector<1x1x128x128xf32>
    %52 = vector.shape_cast %51 : vector<1x1x128x128xf32> to vector<128x128xf32>
    "tpu.trace_start"() <{level = 10 : i32, message = "hwc,cd->hwd"}> : () -> ()
    %cst_38 = arith.constant dense<0.000000e+00> : vector<10x16x128xf32>
    %53 = tpu.matmul %50, %52, %cst_38 {dimension_numbers = #tpu.dot_dimension_numbers<[2], [0], [0, 1], [1], [0, 0, 0, 1, 1, 1], [], []>} : vector<10x16x128xf32>, vector<128x128xf32>, vector<10x16x128xf32> -> vector<10x16x128xf32>
    "tpu.trace_stop"() : () -> ()
    %54 = arith.addf %49, %53 : vector<10x16x128xf32>
    %55 = vector.extract_strided_slice %26 {offsets = [1, 2, 0], sizes = [10, 16, 128], strides = [1, 1, 1]} : vector<12x18x128xf32> to vector<10x16x128xf32>
    %c1_39 = arith.constant 1 : index
    %c2_40 = arith.constant 2 : index
    %c0_41 = arith.constant 0 : index
    %c0_42 = arith.constant 0 : index
    %56 = vector.load %arg3[%c1_39, %c2_40, %c0_41, %c0_42] : memref<3x3x128x128xf32, #tpu.memory_space<vmem>>, vector<1x1x128x128xf32>
    %57 = vector.shape_cast %56 : vector<1x1x128x128xf32> to vector<128x128xf32>
    "tpu.trace_start"() <{level = 10 : i32, message = "hwc,cd->hwd"}> : () -> ()
    %cst_43 = arith.constant dense<0.000000e+00> : vector<10x16x128xf32>
    %58 = tpu.matmul %55, %57, %cst_43 {dimension_numbers = #tpu.dot_dimension_numbers<[2], [0], [0, 1], [1], [0, 0, 0, 1, 1, 1], [], []>} : vector<10x16x128xf32>, vector<128x128xf32>, vector<10x16x128xf32> -> vector<10x16x128xf32>
    "tpu.trace_stop"() : () -> ()
    %59 = arith.addf %54, %58 : vector<10x16x128xf32>
    %60 = vector.extract_strided_slice %26 {offsets = [2, 0, 0], sizes = [10, 16, 128], strides = [1, 1, 1]} : vector<12x18x128xf32> to vector<10x16x128xf32>
    %c2_44 = arith.constant 2 : index
    %c0_45 = arith.constant 0 : index
    %c0_46 = arith.constant 0 : index
    %c0_47 = arith.constant 0 : index
    %61 = vector.load %arg3[%c2_44, %c0_45, %c0_46, %c0_47] : memref<3x3x128x128xf32, #tpu.memory_space<vmem>>, vector<1x1x128x128xf32>
    %62 = vector.shape_cast %61 : vector<1x1x128x128xf32> to vector<128x128xf32>
    "tpu.trace_start"() <{level = 10 : i32, message = "hwc,cd->hwd"}> : () -> ()
    %cst_48 = arith.constant dense<0.000000e+00> : vector<10x16x128xf32>
    %63 = tpu.matmul %60, %62, %cst_48 {dimension_numbers = #tpu.dot_dimension_numbers<[2], [0], [0, 1], [1], [0, 0, 0, 1, 1, 1], [], []>} : vector<10x16x128xf32>, vector<128x128xf32>, vector<10x16x128xf32> -> vector<10x16x128xf32>
    "tpu.trace_stop"() : () -> ()
    %64 = arith.addf %59, %63 : vector<10x16x128xf32>
    %65 = vector.extract_strided_slice %26 {offsets = [2, 1, 0], sizes = [10, 16, 128], strides = [1, 1, 1]} : vector<12x18x128xf32> to vector<10x16x128xf32>
    %c2_49 = arith.constant 2 : index
    %c1_50 = arith.constant 1 : index
    %c0_51 = arith.constant 0 : index
    %c0_52 = arith.constant 0 : index
    %66 = vector.load %arg3[%c2_49, %c1_50, %c0_51, %c0_52] : memref<3x3x128x128xf32, #tpu.memory_space<vmem>>, vector<1x1x128x128xf32>
    %67 = vector.shape_cast %66 : vector<1x1x128x128xf32> to vector<128x128xf32>
    "tpu.trace_start"() <{level = 10 : i32, message = "hwc,cd->hwd"}> : () -> ()
    %cst_53 = arith.constant dense<0.000000e+00> : vector<10x16x128xf32>
    %68 = tpu.matmul %65, %67, %cst_53 {dimension_numbers = #tpu.dot_dimension_numbers<[2], [0], [0, 1], [1], [0, 0, 0, 1, 1, 1], [], []>} : vector<10x16x128xf32>, vector<128x128xf32>, vector<10x16x128xf32> -> vector<10x16x128xf32>
    "tpu.trace_stop"() : () -> ()
    %69 = arith.addf %64, %68 : vector<10x16x128xf32>
    %70 = vector.extract_strided_slice %26 {offsets = [2, 2, 0], sizes = [10, 16, 128], strides = [1, 1, 1]} : vector<12x18x128xf32> to vector<10x16x128xf32>
    %c2_54 = arith.constant 2 : index
    %c2_55 = arith.constant 2 : index
    %c0_56 = arith.constant 0 : index
    %c0_57 = arith.constant 0 : index
    %71 = vector.load %arg3[%c2_54, %c2_55, %c0_56, %c0_57] : memref<3x3x128x128xf32, #tpu.memory_space<vmem>>, vector<1x1x128x128xf32>
    %72 = vector.shape_cast %71 : vector<1x1x128x128xf32> to vector<128x128xf32>
    "tpu.trace_start"() <{level = 10 : i32, message = "hwc,cd->hwd"}> : () -> ()
    %cst_58 = arith.constant dense<0.000000e+00> : vector<10x16x128xf32>
    %73 = tpu.matmul %70, %72, %cst_58 {dimension_numbers = #tpu.dot_dimension_numbers<[2], [0], [0, 1], [1], [0, 0, 0, 1, 1, 1], [], []>} : vector<10x16x128xf32>, vector<128x128xf32>, vector<10x16x128xf32> -> vector<10x16x128xf32>
    "tpu.trace_stop"() : () -> ()
    %74 = arith.addf %69, %73 : vector<10x16x128xf32>
    %cst_59 = arith.constant 0.000000e+00 : f32
    %75 = vector.broadcast %cst_59 : f32 to vector<10x16x128xf32>
    %76 = arith.maximumf %74, %75 : vector<10x16x128xf32>
    %c0_60 = arith.constant 0 : index
    %c1_61 = arith.constant 1 : index
    %c0_62 = arith.constant 0 : index
    %77 = vector.load %arg9[%c0_60, %c1_61, %c0_62] : memref<10x18x128xf32, #tpu.memory_space<vmem>>, vector<10x16x128xf32>
    tpu.vector_store %arg9[%c0_60, %c1_61, %c0_62], %76 {strides = array<i32>} : memref<10x18x128xf32, #tpu.memory_space<vmem>>, vector<10x16x128xf32>,
    %78 = vector.extract_strided_slice %76 {offsets = [0, 1, 0], sizes = [10, 1, 128], strides = [1, 1, 1]} : vector<10x16x128xf32> to vector<10x1x128xf32>
    %c0_63 = arith.constant 0 : index
    %c0_64 = arith.constant 0 : index
    %c0_65 = arith.constant 0 : index
    %79 = vector.load %arg9[%c0_63, %c0_64, %c0_65] : memref<10x18x128xf32, #tpu.memory_space<vmem>>, vector<10x1x128xf32>
    tpu.vector_store %arg9[%c0_63, %c0_64, %c0_65], %78 {strides = array<i32>} : memref<10x18x128xf32, #tpu.memory_space<vmem>>, vector<10x1x128xf32>,
    %80 = vector.extract_strided_slice %76 {offsets = [0, 14, 0], sizes = [10, 1, 128], strides = [1, 1, 1]} : vector<10x16x128xf32> to vector<10x1x128xf32>
    %c0_66 = arith.constant 0 : index
    %c17 = arith.constant 17 : index
    %c0_67 = arith.constant 0 : index
    %81 = vector.load %arg9[%c0_66, %c17, %c0_67] : memref<10x18x128xf32, #tpu.memory_space<vmem>>, vector<10x1x128xf32>
    tpu.vector_store %arg9[%c0_66, %c17, %c0_67], %80 {strides = array<i32>} : memref<10x18x128xf32, #tpu.memory_space<vmem>>, vector<10x1x128xf32>,
    %c0_i32_68 = arith.constant 0 : i32
    %82 = arith.cmpi eq, %arg1, %c0_i32_68 : i32
    %83 = arith.extui %82 : i1 to i32
    %c0_i32_69 = arith.constant 0 : i32
    %84 = arith.cmpi ne, %83, %c0_i32_69 : i32
    scf.if %84 {
      %c2_126 = arith.constant 2 : index
      %c0_127 = arith.constant 0 : index
      %c0_128 = arith.constant 0 : index
      %142 = vector.load %arg9[%c2_126, %c0_127, %c0_128] : memref<10x18x128xf32, #tpu.memory_space<vmem>>, vector<1x18x128xf32>
      %c0_129 = arith.constant 0 : index
      %c0_130 = arith.constant 0 : index
      %c0_131 = arith.constant 0 : index
      %143 = vector.load %arg9[%c0_129, %c0_130, %c0_131] : memref<10x18x128xf32, #tpu.memory_space<vmem>>, vector<1x18x128xf32>
      tpu.vector_store %arg9[%c0_129, %c0_130, %c0_131], %142 {strides = array<i32>} : memref<10x18x128xf32, #tpu.memory_space<vmem>>, vector<1x18x128xf32>,
    } else {
    }
    %c1_i32_70 = arith.constant 1 : i32
    %85 = arith.cmpi eq, %arg1, %c1_i32_70 : i32
    %86 = arith.extui %85 : i1 to i32
    %c0_i32_71 = arith.constant 0 : i32
    %87 = arith.cmpi ne, %86, %c0_i32_71 : i32
    scf.if %87 {
      %c7 = arith.constant 7 : index
      %c0_126 = arith.constant 0 : index
      %c0_127 = arith.constant 0 : index
      %142 = vector.load %arg9[%c7, %c0_126, %c0_127] : memref<10x18x128xf32, #tpu.memory_space<vmem>>, vector<1x18x128xf32>
      %c9 = arith.constant 9 : index
      %c0_128 = arith.constant 0 : index
      %c0_129 = arith.constant 0 : index
      %143 = vector.load %arg9[%c9, %c0_128, %c0_129] : memref<10x18x128xf32, #tpu.memory_space<vmem>>, vector<1x18x128xf32>
      tpu.vector_store %arg9[%c9, %c0_128, %c0_129], %142 {strides = array<i32>} : memref<10x18x128xf32, #tpu.memory_space<vmem>>, vector<1x18x128xf32>,
    } else {
    }
    %c0_72 = arith.constant 0 : index
    %c0_73 = arith.constant 0 : index
    %c0_74 = arith.constant 0 : index
    %88 = vector.load %arg9[%c0_72, %c0_73, %c0_74] : memref<10x18x128xf32, #tpu.memory_space<vmem>>, vector<10x18x128xf32>
    %c0_75 = arith.constant 0 : index
    %c0_76 = arith.constant 0 : index
    %89 = vector.load %arg6[%c0_75, %c0_76] : memref<1x128xf32, #tpu.memory_space<vmem>>, vector<1x128xf32>
    %90 = vector.shape_cast %89 : vector<1x128xf32> to vector<1x1x128xf32>
    %91 = vector.broadcast %90 : vector<1x1x128xf32> to vector<8x16x128xf32>
    %92 = vector.extract_strided_slice %88 {offsets = [0, 0, 0], sizes = [8, 16, 128], strides = [1, 1, 1]} : vector<10x18x128xf32> to vector<8x16x128xf32>
    %c0_77 = arith.constant 0 : index
    %c0_78 = arith.constant 0 : index
    %c0_79 = arith.constant 0 : index
    %c0_80 = arith.constant 0 : index
    %93 = vector.load %arg5[%c0_77, %c0_78, %c0_79, %c0_80] : memref<3x3x128x128xf32, #tpu.memory_space<vmem>>, vector<1x1x128x128xf32>
    %94 = vector.shape_cast %93 : vector<1x1x128x128xf32> to vector<128x128xf32>
    "tpu.trace_start"() <{level = 10 : i32, message = "hwc,cd->hwd"}> : () -> ()
    %cst_81 = arith.constant dense<0.000000e+00> : vector<8x16x128xf32>
    %95 = tpu.matmul %92, %94, %cst_81 {dimension_numbers = #tpu.dot_dimension_numbers<[2], [0], [0, 1], [1], [0, 0, 0, 1, 1, 1], [], []>} : vector<8x16x128xf32>, vector<128x128xf32>, vector<8x16x128xf32> -> vector<8x16x128xf32>
    "tpu.trace_stop"() : () -> ()
    %96 = arith.addf %91, %95 : vector<8x16x128xf32>
    %97 = vector.extract_strided_slice %88 {offsets = [0, 1, 0], sizes = [8, 16, 128], strides = [1, 1, 1]} : vector<10x18x128xf32> to vector<8x16x128xf32>
    %c0_82 = arith.constant 0 : index
    %c1_83 = arith.constant 1 : index
    %c0_84 = arith.constant 0 : index
    %c0_85 = arith.constant 0 : index
    %98 = vector.load %arg5[%c0_82, %c1_83, %c0_84, %c0_85] : memref<3x3x128x128xf32, #tpu.memory_space<vmem>>, vector<1x1x128x128xf32>
    %99 = vector.shape_cast %98 : vector<1x1x128x128xf32> to vector<128x128xf32>
    "tpu.trace_start"() <{level = 10 : i32, message = "hwc,cd->hwd"}> : () -> ()
    %cst_86 = arith.constant dense<0.000000e+00> : vector<8x16x128xf32>
    %100 = tpu.matmul %97, %99, %cst_86 {dimension_numbers = #tpu.dot_dimension_numbers<[2], [0], [0, 1], [1], [0, 0, 0, 1, 1, 1], [], []>} : vector<8x16x128xf32>, vector<128x128xf32>, vector<8x16x128xf32> -> vector<8x16x128xf32>
    "tpu.trace_stop"() : () -> ()
    %101 = arith.addf %96, %100 : vector<8x16x128xf32>
    %102 = vector.extract_strided_slice %88 {offsets = [0, 2, 0], sizes = [8, 16, 128], strides = [1, 1, 1]} : vector<10x18x128xf32> to vector<8x16x128xf32>
    %c0_87 = arith.constant 0 : index
    %c2_88 = arith.constant 2 : index
    %c0_89 = arith.constant 0 : index
    %c0_90 = arith.constant 0 : index
    %103 = vector.load %arg5[%c0_87, %c2_88, %c0_89, %c0_90] : memref<3x3x128x128xf32, #tpu.memory_space<vmem>>, vector<1x1x128x128xf32>
    %104 = vector.shape_cast %103 : vector<1x1x128x128xf32> to vector<128x128xf32>
    "tpu.trace_start"() <{level = 10 : i32, message = "hwc,cd->hwd"}> : () -> ()
    %cst_91 = arith.constant dense<0.000000e+00> : vector<8x16x128xf32>
    %105 = tpu.matmul %102, %104, %cst_91 {dimension_numbers = #tpu.dot_dimension_numbers<[2], [0], [0, 1], [1], [0, 0, 0, 1, 1, 1], [], []>} : vector<8x16x128xf32>, vector<128x128xf32>, vector<8x16x128xf32> -> vector<8x16x128xf32>
    "tpu.trace_stop"() : () -> ()
    %106 = arith.addf %101, %105 : vector<8x16x128xf32>
    %107 = vector.extract_strided_slice %88 {offsets = [1, 0, 0], sizes = [8, 16, 128], strides = [1, 1, 1]} : vector<10x18x128xf32> to vector<8x16x128xf32>
    %c1_92 = arith.constant 1 : index
    %c0_93 = arith.constant 0 : index
    %c0_94 = arith.constant 0 : index
    %c0_95 = arith.constant 0 : index
    %108 = vector.load %arg5[%c1_92, %c0_93, %c0_94, %c0_95] : memref<3x3x128x128xf32, #tpu.memory_space<vmem>>, vector<1x1x128x128xf32>
    %109 = vector.shape_cast %108 : vector<1x1x128x128xf32> to vector<128x128xf32>
    "tpu.trace_start"() <{level = 10 : i32, message = "hwc,cd->hwd"}> : () -> ()
    %cst_96 = arith.constant dense<0.000000e+00> : vector<8x16x128xf32>
    %110 = tpu.matmul %107, %109, %cst_96 {dimension_numbers = #tpu.dot_dimension_numbers<[2], [0], [0, 1], [1], [0, 0, 0, 1, 1, 1], [], []>} : vector<8x16x128xf32>, vector<128x128xf32>, vector<8x16x128xf32> -> vector<8x16x128xf32>
    "tpu.trace_stop"() : () -> ()
    %111 = arith.addf %106, %110 : vector<8x16x128xf32>
    %112 = vector.extract_strided_slice %88 {offsets = [1, 1, 0], sizes = [8, 16, 128], strides = [1, 1, 1]} : vector<10x18x128xf32> to vector<8x16x128xf32>
    %c1_97 = arith.constant 1 : index
    %c1_98 = arith.constant 1 : index
    %c0_99 = arith.constant 0 : index
    %c0_100 = arith.constant 0 : index
    %113 = vector.load %arg5[%c1_97, %c1_98, %c0_99, %c0_100] : memref<3x3x128x128xf32, #tpu.memory_space<vmem>>, vector<1x1x128x128xf32>
    %114 = vector.shape_cast %113 : vector<1x1x128x128xf32> to vector<128x128xf32>
    "tpu.trace_start"() <{level = 10 : i32, message = "hwc,cd->hwd"}> : () -> ()
    %cst_101 = arith.constant dense<0.000000e+00> : vector<8x16x128xf32>
    %115 = tpu.matmul %112, %114, %cst_101 {dimension_numbers = #tpu.dot_dimension_numbers<[2], [0], [0, 1], [1], [0, 0, 0, 1, 1, 1], [], []>} : vector<8x16x128xf32>, vector<128x128xf32>, vector<8x16x128xf32> -> vector<8x16x128xf32>
    "tpu.trace_stop"() : () -> ()
    %116 = arith.addf %111, %115 : vector<8x16x128xf32>
    %117 = vector.extract_strided_slice %88 {offsets = [1, 2, 0], sizes = [8, 16, 128], strides = [1, 1, 1]} : vector<10x18x128xf32> to vector<8x16x128xf32>
    %c1_102 = arith.constant 1 : index
    %c2_103 = arith.constant 2 : index
    %c0_104 = arith.constant 0 : index
    %c0_105 = arith.constant 0 : index
    %118 = vector.load %arg5[%c1_102, %c2_103, %c0_104, %c0_105] : memref<3x3x128x128xf32, #tpu.memory_space<vmem>>, vector<1x1x128x128xf32>
    %119 = vector.shape_cast %118 : vector<1x1x128x128xf32> to vector<128x128xf32>
    "tpu.trace_start"() <{level = 10 : i32, message = "hwc,cd->hwd"}> : () -> ()
    %cst_106 = arith.constant dense<0.000000e+00> : vector<8x16x128xf32>
    %120 = tpu.matmul %117, %119, %cst_106 {dimension_numbers = #tpu.dot_dimension_numbers<[2], [0], [0, 1], [1], [0, 0, 0, 1, 1, 1], [], []>} : vector<8x16x128xf32>, vector<128x128xf32>, vector<8x16x128xf32> -> vector<8x16x128xf32>
    "tpu.trace_stop"() : () -> ()
    %121 = arith.addf %116, %120 : vector<8x16x128xf32>
    %122 = vector.extract_strided_slice %88 {offsets = [2, 0, 0], sizes = [8, 16, 128], strides = [1, 1, 1]} : vector<10x18x128xf32> to vector<8x16x128xf32>
    %c2_107 = arith.constant 2 : index
    %c0_108 = arith.constant 0 : index
    %c0_109 = arith.constant 0 : index
    %c0_110 = arith.constant 0 : index
    %123 = vector.load %arg5[%c2_107, %c0_108, %c0_109, %c0_110] : memref<3x3x128x128xf32, #tpu.memory_space<vmem>>, vector<1x1x128x128xf32>
    %124 = vector.shape_cast %123 : vector<1x1x128x128xf32> to vector<128x128xf32>
    "tpu.trace_start"() <{level = 10 : i32, message = "hwc,cd->hwd"}> : () -> ()
    %cst_111 = arith.constant dense<0.000000e+00> : vector<8x16x128xf32>
    %125 = tpu.matmul %122, %124, %cst_111 {dimension_numbers = #tpu.dot_dimension_numbers<[2], [0], [0, 1], [1], [0, 0, 0, 1, 1, 1], [], []>} : vector<8x16x128xf32>, vector<128x128xf32>, vector<8x16x128xf32> -> vector<8x16x128xf32>
    "tpu.trace_stop"() : () -> ()
    %126 = arith.addf %121, %125 : vector<8x16x128xf32>
    %127 = vector.extract_strided_slice %88 {offsets = [2, 1, 0], sizes = [8, 16, 128], strides = [1, 1, 1]} : vector<10x18x128xf32> to vector<8x16x128xf32>
    %c2_112 = arith.constant 2 : index
    %c1_113 = arith.constant 1 : index
    %c0_114 = arith.constant 0 : index
    %c0_115 = arith.constant 0 : index
    %128 = vector.load %arg5[%c2_112, %c1_113, %c0_114, %c0_115] : memref<3x3x128x128xf32, #tpu.memory_space<vmem>>, vector<1x1x128x128xf32>
    %129 = vector.shape_cast %128 : vector<1x1x128x128xf32> to vector<128x128xf32>
    "tpu.trace_start"() <{level = 10 : i32, message = "hwc,cd->hwd"}> : () -> ()
    %cst_116 = arith.constant dense<0.000000e+00> : vector<8x16x128xf32>
    %130 = tpu.matmul %127, %129, %cst_116 {dimension_numbers = #tpu.dot_dimension_numbers<[2], [0], [0, 1], [1], [0, 0, 0, 1, 1, 1], [], []>} : vector<8x16x128xf32>, vector<128x128xf32>, vector<8x16x128xf32> -> vector<8x16x128xf32>
    "tpu.trace_stop"() : () -> ()
    %131 = arith.addf %126, %130 : vector<8x16x128xf32>
    %132 = vector.extract_strided_slice %88 {offsets = [2, 2, 0], sizes = [8, 16, 128], strides = [1, 1, 1]} : vector<10x18x128xf32> to vector<8x16x128xf32>
    %c2_117 = arith.constant 2 : index
    %c2_118 = arith.constant 2 : index
    %c0_119 = arith.constant 0 : index
    %c0_120 = arith.constant 0 : index
    %133 = vector.load %arg5[%c2_117, %c2_118, %c0_119, %c0_120] : memref<3x3x128x128xf32, #tpu.memory_space<vmem>>, vector<1x1x128x128xf32>
    %134 = vector.shape_cast %133 : vector<1x1x128x128xf32> to vector<128x128xf32>
    "tpu.trace_start"() <{level = 10 : i32, message = "hwc,cd->hwd"}> : () -> ()
    %cst_121 = arith.constant dense<0.000000e+00> : vector<8x16x128xf32>
    %135 = tpu.matmul %132, %134, %cst_121 {dimension_numbers = #tpu.dot_dimension_numbers<[2], [0], [0, 1], [1], [0, 0, 0, 1, 1, 1], [], []>} : vector<8x16x128xf32>, vector<128x128xf32>, vector<8x16x128xf32> -> vector<8x16x128xf32>
    "tpu.trace_stop"() : () -> ()
    %136 = arith.addf %131, %135 : vector<8x16x128xf32>
    %137 = vector.extract_strided_slice %26 {offsets = [2, 1, 0], sizes = [8, 16, 128], strides = [1, 1, 1]} : vector<12x18x128xf32> to vector<8x16x128xf32>
    %138 = arith.addf %137, %136 : vector<8x16x128xf32>
    %c0_122 = arith.constant 0 : index
    %c0_123 = arith.constant 0 : index
    %c0_124 = arith.constant 0 : index
    %c0_125 = arith.constant 0 : index
    %139 = vector.load %arg7[%c0_122, %c0_123, %c0_124, %c0_125] : memref<1x8x16x128xf32, #tpu.memory_space<vmem>>, vector<1x8x16x128xf32>
    %140 = vector.shape_cast %139 : vector<1x8x16x128xf32> to vector<8x16x128xf32>
    %141 = vector.shape_cast %138 : vector<8x16x128xf32> to vector<1x8x16x128xf32>
    tpu.vector_store %arg7[%c0_122, %c0_123, %c0_124, %c0_125], %141 {strides = array<i32>} : memref<1x8x16x128xf32, #tpu.memory_space<vmem>>, vector<1x8x16x128xf32>,
    return
  }
  func.func @transform_1(%arg0: i32, %arg1: i32) -> (i32, i32, i32, i32) {
    %c0_i32 = arith.constant 0 : i32
    %c0_i32_0 = arith.constant 0 : i32
    %c0_i32_1 = arith.constant 0 : i32
    %c0_i32_2 = arith.constant 0 : i32
    %c0_i32_3 = arith.constant 0 : i32
    return %c0_i32, %c0_i32_0, %c0_i32_1, %c0_i32_2 : i32, i32, i32, i32
  }
  func.func @transform_2(%arg0: i32, %arg1: i32) -> (i32, i32) {
    %c0_i32 = arith.constant 0 : i32
    %c0_i32_0 = arith.constant 0 : i32
    %c0_i32_1 = arith.constant 0 : i32
    return %c0_i32, %c0_i32_0 : i32, i32
  }
  func.func @transform_3(%arg0: i32, %arg1: i32) -> (i32, i32, i32, i32) {
    %c0_i32 = arith.constant 0 : i32
    %c0_i32_0 = arith.constant 0 : i32
    %c0_i32_1 = arith.constant 0 : i32
    %c0_i32_2 = arith.constant 0 : i32
    %c0_i32_3 = arith.constant 0 : i32
    return %c0_i32, %c0_i32_0, %c0_i32_1, %c0_i32_2 : i32, i32, i32, i32
  }
  func.func @transform_4(%arg0: i32, %arg1: i32) -> (i32, i32) {
    %c0_i32 = arith.constant 0 : i32
    %c0_i32_0 = arith.constant 0 : i32
    %c0_i32_1 = arith.constant 0 : i32
    return %c0_i32, %c0_i32_0 : i32, i32
  }
  func.func @transform_5(%arg0: i32, %arg1: i32) -> (i32, i32, i32, i32) {
    %c0_i32 = arith.constant 0 : i32
    %c0_i32_0 = arith.constant 0 : i32
    %c0_i32_1 = arith.constant 0 : i32
    return %arg0, %arg1, %c0_i32, %c0_i32_0 : i32, i32, i32, i32
  }
}

</mosaic_0001>

<llo_original>
// kernel: tpu_custom_call.1
$region0: #{tpu_custom_call.1}
  #allocation0 [shape = 'u32[]', space=smem, size = 0x4, offset = 0x4, fixed_abs, tag = 'smem constant byte address 0x4 - core index']
  #allocation1 [shape = 'u32[144,128]{1,0:T(1,128)}', space=vmem, size = 0x12000, scoped, tag = 'internal scratch']
  #allocation2 [shape = 'f32[2,12,18,128]{3,2,1,0:T(8,128)}', space=vmem, size = 0x48000, scoped, tag = 'scratch operand']
  #allocation3 [shape = 'f32[10,18,128]{2,1,0:T(8,128)}', space=vmem, size = 0x1e000, scoped, tag = 'scratch operand']
  #allocation4 [shape = 's32[2]{0}', space=sflag, size = 0x8, scoped, tag = 'scratch operand']
  #allocation9 [shape = 's32[]', space=sflag, size = 0x4, offset = 0, fixed_abs, tag = 'sflag constant byte address 0x0 - dummy sync flag']
  #allocation10 [shape = 's32[]', space=sflag, size = 0x4, offset = 0, fixed_abs, tag = 'sflag constant byte address 0x0 - dummy sync flag']
  %s0 = inlined_call_operand.vmem [shape: f32[2,20,18,128], index: 0, kind: input, shape index: {}]
  %s1 = inlined_call_operand.vmem [shape: f32[3,3,128,128], index: 1, kind: input, shape index: {}]
  %s2 = inlined_call_operand.vmem [shape: f32[1,128], index: 2, kind: input, shape index: {}]
  %s3 = inlined_call_operand.hbm [shape: f32[3,3,128,128], index: 3, kind: input, shape index: {}]
  %s4 = inlined_call_operand.vmem [shape: f32[1,128], index: 4, kind: input, shape index: {}]
  %s5 = inlined_call_operand.hbm [shape: f32[2,16,16,128], index: 5, kind: output, shape index: {}]
  %s6 = sld [smem:[#allocation0]]
  $region143: #{tpu_custom_call.1} parent=0
    _
  %s8 = ssub.s32 1, %s6
  %s9 = scalar_select 0, %s8, %s6
  $region1: #{tpu_custom_call.1} parent=0
    #allocation5 [shape = 'u8[589824]{0}', space=vmem, size = 0x90000, scoped, tag = 'input window, operand 3, single buffered']
    #allocation6 [shape = 's32[2]{0}', space=sflag, size = 0x8, scoped, tag = 'scoped memory for tpu_custom_call.1']
    #allocation7 [shape = 's32[2]{0}', space=sflag, size = 0x8, scoped, tag = 'scoped memory for tpu_custom_call.1']
    #allocation8 [shape = 'u8[131072]{0}', space=vmem, size = 0x20000, scoped, tag = 'output window, operand 0']
    %10 = vsyncpa [#allocation6], 0
    %11 = vsyncpa [#allocation7], 0
    %s12 = scalar_lea.sflag [#allocation7], 1
    %13 = vsyncpa %s12, 0
    loop: start=0, step=1, limit=6
    $region2: #{tpu_custom_call.1} parent=1 // loop_pre_header
      _
    $region3: #{tpu_custom_call.1} parent=1 // loop_header
      %s15 = sphi 0, %s19
      %p16 = scmp.ge.s32.totalorder %s15, 6
      %s22 = sphi 0, %s34
      %s23 = sphi 0, %s30
      %s24 = sphi 0, %s22
      %s25 = sphi 0, %s23
      %s26 = sphi 0, %s24
      %s27 = sphi 0, %s25
      %s35 = sphi 0, %s35
      %s37 = sphi 0, %s35
      %s38 = sphi 0, %s37
      %s52 = sphi 0, %s38
      %s56 = sphi 0, %s56
      %s58 = sphi 0, %s56
      %s59 = sphi 0, %s58
      %s73 = sphi 0, %s59
      %s77 = sphi 0, %s77
      %s79 = sphi 0, %s77
      %s80 = sphi 0, %s79
      %s94 = sphi 0, %s80
      %s98 = sphi 0, %s98
      %s100 = sphi 0, %s98
      %s101 = sphi 0, %s100
      %s115 = sphi 0, %s101
      %s123 = sphi 0, %s125
      %s126 = sphi 0, %s123
      %s127 = sphi 0, %s126
      %s143 = sphi 0, %s127
    $region4: #{tpu_custom_call.1} parent=1 // loop_header_branch
      %18 = sbr.rel (%p16) target = $region8
    $region5: #{tpu_custom_call.1} parent=1 // loop_body
      %s20 = ssub.s32 %s15, 1
      %s21 = ssub.s32 %s15, 2
      %s28 = sadd.s32 1, %s23
      %p29 = scmp.ge.s32.totalorder %s28, 2
      %s30 = scalar_select %p29, 0, %s28
      %s31 = sadd.s32 1, %s22
      %s32 = scalar_select %p29, %s31, %s22
      %p33 = scmp.ge.s32.totalorder %s32, 2
      %s34 = scalar_select %p33, 0, %s32
      %s36 = sadd.s32 %s35, 1
      %p39 = scmp.eq.s32.totalorder %s15, 3
      %p40 = scmp.ne.s32.totalorder %s35, %s37
      %p41 = scmp.eq.s32.totalorder %s15, 0
      %p42 = por %p40, %p41
      %p43 = scmp.ne.s32.totalorder %s35, %s37
      %p44 = scmp.eq.s32.totalorder %s20, 3
      %p45 = por %p43, %p44
      %p46 = scmp.ne.s32.totalorder %s37, %s38
      %p47 = scmp.eq.s32.totalorder %s20, 0
      %p48 = por %p46, %p47
      %p49 = scmp.ne.s32.totalorder %s37, %s38
      %p50 = scmp.eq.s32.totalorder %s21, 3
      %p51 = por %p49, %p50
      %p53 = scmp.ne.s32.totalorder %s38, %s52
      %p54 = scmp.eq.s32.totalorder %s21, 0
      %p55 = por %p53, %p54
      %s57 = sadd.s32 %s56, 1
      %p60 = scmp.eq.s32.totalorder %s15, 3
      %p61 = scmp.ne.s32.totalorder %s56, %s58
      %p62 = scmp.eq.s32.totalorder %s15, 0
      %p63 = por %p61, %p62
      %p64 = scmp.ne.s32.totalorder %s56, %s58
      %p65 = scmp.eq.s32.totalorder %s20, 3
      %p66 = por %p64, %p65
      %p67 = scmp.ne.s32.totalorder %s58, %s59
      %p68 = scmp.eq.s32.totalorder %s20, 0
      %p69 = por %p67, %p68
      %p70 = scmp.ne.s32.totalorder %s58, %s59
      %p71 = scmp.eq.s32.totalorder %s21, 3
      %p72 = por %p70, %p71
      %p74 = scmp.ne.s32.totalorder %s59, %s73
      %p75 = scmp.eq.s32.totalorder %s21, 0
      %p76 = por %p74, %p75
      %s78 = sadd.s32 %s77, 1
      %p81 = scmp.eq.s32.totalorder %s15, 3
      %p82 = scmp.ne.s32.totalorder %s77, %s79
      %p83 = scmp.eq.s32.totalorder %s15, 0
      %p84 = por %p82, %p83
      %p85 = scmp.ne.s32.totalorder %s77, %s79
      %p86 = scmp.eq.s32.totalorder %s20, 3
      %p87 = por %p85, %p86
      %p88 = scmp.ne.s32.totalorder %s79, %s80
      %p89 = scmp.eq.s32.totalorder %s20, 0
      %p90 = por %p88, %p89
      %p91 = scmp.ne.s32.totalorder %s79, %s80
      %p92 = scmp.eq.s32.totalorder %s21, 3
      %p93 = por %p91, %p92
      %p95 = scmp.ne.s32.totalorder %s80, %s94
      %p96 = scmp.eq.s32.totalorder %s21, 0
      %p97 = por %p95, %p96
      %s99 = sadd.s32 %s98, 1
      %p102 = scmp.eq.s32.totalorder %s15, 3
      %p103 = scmp.ne.s32.totalorder %s98, %s100
      %p104 = scmp.eq.s32.totalorder %s15, 0
      %p105 = por %p103, %p104
      %p106 = scmp.ne.s32.totalorder %s98, %s100
      %p107 = scmp.eq.s32.totalorder %s20, 3
      %p108 = por %p106, %p107
      %p109 = scmp.ne.s32.totalorder %s100, %s101
      %p110 = scmp.eq.s32.totalorder %s20, 0
      %p111 = por %p109, %p110
      %p112 = scmp.ne.s32.totalorder %s100, %s101
      %p113 = scmp.eq.s32.totalorder %s21, 3
      %p114 = por %p112, %p113
      %p116 = scmp.ne.s32.totalorder %s101, %s115
      %p117 = scmp.eq.s32.totalorder %s21, 0
      %p118 = por %p116, %p117
      %s119 = ssub.s32 %s22, %s34
      %s120 = ssub.s32 %s23, %s30
      %s121 = sor.u32 %s119, %s120
      %p122 = scmp.eq.s32.totalorder %s121, 0
      %s124 = sadd.s32 %s123, 1
      %s125 = scalar_select %p122, %s123, %s124
      %p128 = pneg %p122
      %p129 = scmp.eq.s32.totalorder %s15, 3
      %p130 = por %p128, %p129
      %p131 = scmp.ne.s32.totalorder %s123, %s126
      %p132 = scmp.eq.s32.totalorder %s15, 0
      %p133 = por %p131, %p132
      %p134 = scmp.ne.s32.totalorder %s123, %s126
      %p135 = scmp.eq.s32.totalorder %s20, 3
      %p136 = por %p134, %p135
      %p137 = scmp.ne.s32.totalorder %s126, %s127
      %p138 = scmp.eq.s32.totalorder %s20, 0
      %p139 = por %p137, %p138
      %p140 = scmp.ne.s32.totalorder %s126, %s127
      %p141 = scmp.eq.s32.totalorder %s21, 3
      %p142 = por %p140, %p141
      %p144 = scmp.ne.s32.totalorder %s127, %s143
      %p145 = scmp.eq.s32.totalorder %s21, 0
      %p146 = por %p144, %p145
      %p147 = scmp.le.s32.totalorder 1, %s15
      %p148 = scmp.lt.s32.totalorder %s15, 5
      %p149 = pnand %p147, %p148
      %p150 = pneg %p149
      // Predicated region
      $region9: #{tpu_custom_call.1} parent=5 // pred_check
        _
      $region10: #{tpu_custom_call.1} parent=5 // pred_check_branch
        %152 = sbr.rel (%p149) target = $region12
      $region11: #{tpu_custom_call.1} parent=5 // pred_region
        %s153 = ssub.s32 %s15, 1
        // Predicated region
        $region13: #{tpu_custom_call.1} parent=11 // pred_check
          %p154 = pneg %p48
        $region14: #{tpu_custom_call.1} parent=11 // pred_check_branch
          %156 = sbr.rel (%p154) target = $region16
        $region15: #{tpu_custom_call.1} parent=11 // pred_region
          _
        $region16: #{tpu_custom_call.1} parent=11 // pred_fallthru
          _
        // Predicated region
        $region17: #{tpu_custom_call.1} parent=11 // pred_check
          %p157 = pneg %p69
        $region18: #{tpu_custom_call.1} parent=11 // pred_check_branch
          %159 = sbr.rel (%p157) target = $region20
        $region19: #{tpu_custom_call.1} parent=11 // pred_region
          _
        $region20: #{tpu_custom_call.1} parent=11 // pred_fallthru
          _
        // Predicated region
        $region21: #{tpu_custom_call.1} parent=11 // pred_check
          %p160 = pneg %p90
        $region22: #{tpu_custom_call.1} parent=11 // pred_check_branch
          %162 = sbr.rel (%p160) target = $region24
        $region23: #{tpu_custom_call.1} parent=11 // pred_region
          %s164 = ssub.s32 18432, 18432
          %165 = vsyncadd [#allocation6], %s164
          %s166 = sshll.u32 [#allocation5], 4
          %s167 = int_to_ptr.vmem [resolvable:$true] %s166
          %172 = dma.hbm_to_vmem [thread:$0]  %s3, 18432, %s167, [#allocation6], 128, 128, 8
        $region24: #{tpu_custom_call.1} parent=11 // pred_fallthru
          _
        // Predicated region
        $region25: #{tpu_custom_call.1} parent=11 // pred_check
          %p173 = pneg %p111
        $region26: #{tpu_custom_call.1} parent=11 // pred_check_branch
          %175 = sbr.rel (%p173) target = $region28
        $region27: #{tpu_custom_call.1} parent=11 // pred_region
          _
        $region28: #{tpu_custom_call.1} parent=11 // pred_fallthru
          _
      $region12: #{tpu_custom_call.1} parent=5 // pred_fallthru
        _
      %p176 = scmp.lt.s32.totalorder %s15, 4
      // Predicated region
      $region29: #{tpu_custom_call.1} parent=5 // pred_check
        %p177 = pneg %p176
      $region30: #{tpu_custom_call.1} parent=5 // pred_check_branch
        %179 = sbr.rel (%p177) target = $region32
      $region31: #{tpu_custom_call.1} parent=5 // pred_region
        _
      $region32: #{tpu_custom_call.1} parent=5 // pred_fallthru
        _
      %p180 = scmp.le.s32.totalorder 1, %s15
      %p181 = scmp.lt.s32.totalorder %s15, 5
      %p182 = pnand %p180, %p181
      %p183 = pneg %p182
      // Predicated region
      $region33: #{tpu_custom_call.1} parent=5 // pred_check
        _
      $region34: #{tpu_custom_call.1} parent=5 // pred_check_branch
        %185 = sbr.rel (%p182) target = $region36
      $region35: #{tpu_custom_call.1} parent=5 // pred_region
        %s186 = ssub.s32 %s15, 1
        // Predicated region
        $region37: #{tpu_custom_call.1} parent=35 // pred_check
          %p187 = pneg %p90
        $region38: #{tpu_custom_call.1} parent=35 // pred_check_branch
          %189 = sbr.rel (%p187) target = $region40
        $region39: #{tpu_custom_call.1} parent=35 // pred_region
          %190 = dma.done [#allocation6], 18432
        $region40: #{tpu_custom_call.1} parent=35 // pred_fallthru
          _
        %p191 = pneg %p48
        %p192 = pneg %p45
        %p193 = pneg %p69
        %p194 = pneg %p66
        %p195 = pneg %p90
        %p196 = pneg %p87
        %p197 = pneg %p111
        %p198 = pneg %p108
        %p199 = pneg %p139
        %p200 = pneg %p136
        %s201 = sand.u32 %s126, 1
        %s202 = scalar_lea.sflag [#allocation7], %s201
        %s203 = sand.u32 %s126, 1
        %s204 = smul.addr %s203, 128
        %s205 = scalar_lea.vmem [#allocation8], %s204
        %s206 = smul.u32 8, %s25
        %p207 = scmp.eq.s32.totalorder %s25, 0
        // Predicated region
        $region41: #{tpu_custom_call.1} parent=35 // pred_check
          %p208 = pneg %p207
        $region42: #{tpu_custom_call.1} parent=35 // pred_check_branch
          %210 = sbr.rel (%p208) target = $region44
        $region43: #{tpu_custom_call.1} parent=35 // pred_region
          %s211 = smul.u32 %s24, 480
          %s212 = scalar_lea.vmem %s0, %s211
          %p214 = scmp.lt.u32.totalorder 18, 8
          %p215 = pneg %p214
          // Predicated region
          $region45: #{tpu_custom_call.1} parent=43 // pred_check
            _
          $region46: #{tpu_custom_call.1} parent=43 // pred_check_branch
            %217 = sbr.rel (%p214) target = $region48
          $region47: #{tpu_custom_call.1} parent=43 // pred_region
            %s254 = sand.u32 18, 7
            %p255 = scmp.eq.s32.totalorder %s254, 0
            %p256 = pneg %p255
            // Predicated region
            $region60: #{tpu_custom_call.1} parent=47 // pred_check
              _
            $region61: #{tpu_custom_call.1} parent=47 // pred_check_branch
              %258 = sbr.rel (%p255) target = $region63
            $region62: #{tpu_custom_call.1} parent=47 // pred_region
              %s259 = sand.u32 18, 7
              %s260 = ssub.s32 18, %s259
              %s261 = scalar_lea.vmem %s212, %s260
              %s262 = ssub.s32 18, %s259
              %s263 = scalar_lea.vmem [#allocation2], %s262
              loop: start=0, step=1, limit=1
              $region64: #{tpu_custom_call.1} parent=62 // loop_pre_header
                _
              $region65: #{tpu_custom_call.1} parent=62 // loop_header
                %s265 = sphi 0, %s269
                %p266 = scmp.ge.s32.totalorder %s265, 1
                %s270 = sphi %s212, %s212
                %s271 = sphi [#allocation2], [#allocation2]
              $region66: #{tpu_custom_call.1} parent=62 // loop_header_branch
                %268 = sbr.rel (%p266) target = $region70
              $region67: #{tpu_custom_call.1} parent=62 // loop_body
                %v272 = vld [vmem:[%s270] sm:$0xff]
                %273 = vst [vmem:[%s271] sm:$0xff] %v272
                %v274 = vld [vmem:[%s270 + $0x8] sm:$0xff]
                %275 = vst [vmem:[%s271 + $0x8] sm:$0xff] %v274
                %v276 = vld [vmem:[%s270 + $0x18] sm:$0xff]
                %277 = vst [vmem:[%s271 + $0x18] sm:$0xff] %v276
                %v278 = vld [vmem:[%s270 + $0x20] sm:$0xff]
                %279 = vst [vmem:[%s271 + $0x20] sm:$0xff] %v278
                %v280 = vld [vmem:[%s270 + $0x30] sm:$0xff]
                %281 = vst [vmem:[%s271 + $0x30] sm:$0xff] %v280
                %v282 = vld [vmem:[%s270 + $0x38] sm:$0xff]
                %283 = vst [vmem:[%s271 + $0x38] sm:$0xff] %v282
                %v284 = vld [vmem:[%s270 + $0x48] sm:$0xff]
                %285 = vst [vmem:[%s271 + $0x48] sm:$0xff] %v284
                %v286 = vld [vmem:[%s270 + $0x50] sm:$0xff]
                %287 = vst [vmem:[%s271 + $0x50] sm:$0xff] %v286
                %v288 = vld [vmem:[%s270 + $0x60] sm:$0xff]
                %289 = vst [vmem:[%s271 + $0x60] sm:$0xff] %v288
                %v290 = vld [vmem:[%s270 + $0x68] sm:$0xff]
                %291 = vst [vmem:[%s271 + $0x68] sm:$0xff] %v290
                %v292 = vld [vmem:[%s270 + $0x78] sm:$0xff]
                %293 = vst [vmem:[%s271 + $0x78] sm:$0xff] %v292
                %v294 = vld [vmem:[%s270 + $0x80] sm:$0xff]
                %295 = vst [vmem:[%s271 + $0x80] sm:$0xff] %v294
                %v296 = vld [vmem:[%s270 + $0x90] sm:$0xff]
                %297 = vst [vmem:[%s271 + $0x90] sm:$0xff] %v296
                %v298 = vld [vmem:[%s270 + $0x98] sm:$0xff]
                %299 = vst [vmem:[%s271 + $0x98] sm:$0xff] %v298
                %v300 = vld [vmem:[%s270 + $0xa8] sm:$0xff]
                %301 = vst [vmem:[%s271 + $0xa8] sm:$0xff] %v300
                %v302 = vld [vmem:[%s270 + $0xb0] sm:$0xff]
                %303 = vst [vmem:[%s271 + $0xb0] sm:$0xff] %v302
                %v304 = vld [vmem:[%s270 + $0xc0] sm:$0xff]
                %305 = vst [vmem:[%s271 + $0xc0] sm:$0xff] %v304
                %v306 = vld [vmem:[%s270 + $0xc8] sm:$0xff]
                %307 = vst [vmem:[%s271 + $0xc8] sm:$0xff] %v306
                %v308 = vld [vmem:[%s270 + $0xd8] sm:$0xff]
                %309 = vst [vmem:[%s271 + $0xd8] sm:$0xff] %v308
                %v310 = vld [vmem:[%s270 + $0xe0] sm:$0xff]
                %311 = vst [vmem:[%s271 + $0xe0] sm:$0xff] %v310
                %v312 = vld [vmem:[%s270 + $0xf0] sm:$0xff]
                %313 = vst [vmem:[%s271 + $0xf0] sm:$0xff] %v312
                %v314 = vld [vmem:[%s270 + $0xf8] sm:$0xff]
                %315 = vst [vmem:[%s271 + $0xf8] sm:$0xff] %v314
                %v316 = vld [vmem:[%s270 + $0x108] sm:$0xff]
                %317 = vst [vmem:[%s271 + $0x108] sm:$0xff] %v316
                %v318 = vld [vmem:[%s270 + $0x110] sm:$0xff]
                %319 = vst [vmem:[%s271 + $0x110] sm:$0xff] %v318
              $region68: #{tpu_custom_call.1} parent=62 // loop_footer
                %s269 = sadd.s32 1, %s265
              $region69: #{tpu_custom_call.1} parent=62 // loop_footer_branch
                %264 = sbr.rel target = $region65
              $region70: #{tpu_custom_call.1} parent=62 // loop_exit
                _
              %s320 = sshllo.u32 0, %s259
              loop: start=0, step=1, limit=1
              $region71: #{tpu_custom_call.1} parent=62 // loop_pre_header
                _
              $region72: #{tpu_custom_call.1} parent=62 // loop_header
                %s322 = sphi 0, %s326
                %p323 = scmp.ge.s32.totalorder %s322, 1
                %s327 = sphi %s261, %s261
                %s328 = sphi %s263, %s263
              $region73: #{tpu_custom_call.1} parent=62 // loop_header_branch
                %325 = sbr.rel (%p323) target = $region77
              $region74: #{tpu_custom_call.1} parent=62 // loop_body
                %v329 = vld [vmem:[%s327] sm:%s320]
                %330 = vst [vmem:[%s328] sm:%s320] %v329
                %v331 = vld [vmem:[%s327 + $0x18] sm:%s320]
                %332 = vst [vmem:[%s328 + $0x18] sm:%s320] %v331
                %v333 = vld [vmem:[%s327 + $0x30] sm:%s320]
                %334 = vst [vmem:[%s328 + $0x30] sm:%s320] %v333
                %v335 = vld [vmem:[%s327 + $0x48] sm:%s320]
                %336 = vst [vmem:[%s328 + $0x48] sm:%s320] %v335
                %v337 = vld [vmem:[%s327 + $0x60] sm:%s320]
                %338 = vst [vmem:[%s328 + $0x60] sm:%s320] %v337
                %v339 = vld [vmem:[%s327 + $0x78] sm:%s320]
                %340 = vst [vmem:[%s328 + $0x78] sm:%s320] %v339
                %v341 = vld [vmem:[%s327 + $0x90] sm:%s320]
                %342 = vst [vmem:[%s328 + $0x90] sm:%s320] %v341
                %v343 = vld [vmem:[%s327 + $0xa8] sm:%s320]
                %344 = vst [vmem:[%s328 + $0xa8] sm:%s320] %v343
                %v345 = vld [vmem:[%s327 + $0xc0] sm:%s320]
                %346 = vst [vmem:[%s328 + $0xc0] sm:%s320] %v345
                %v347 = vld [vmem:[%s327 + $0xd8] sm:%s320]
                %348 = vst [vmem:[%s328 + $0xd8] sm:%s320] %v347
                %v349 = vld [vmem:[%s327 + $0xf0] sm:%s320]
                %350 = vst [vmem:[%s328 + $0xf0] sm:%s320] %v349
                %v351 = vld [vmem:[%s327 + $0x108] sm:%s320]
                %352 = vst [vmem:[%s328 + $0x108] sm:%s320] %v351
              $region75: #{tpu_custom_call.1} parent=62 // loop_footer
                %s326 = sadd.s32 1, %s322
              $region76: #{tpu_custom_call.1} parent=62 // loop_footer_branch
                %321 = sbr.rel target = $region72
              $region77: #{tpu_custom_call.1} parent=62 // loop_exit
                _
            $region63: #{tpu_custom_call.1} parent=47 // pred_fallthru
              _
          $region48: #{tpu_custom_call.1} parent=43 // pred_fallthru
            _
          // Predicated region
          $region49: #{tpu_custom_call.1} parent=43 // pred_check
            %p218 = pneg %p214
          $region50: #{tpu_custom_call.1} parent=43 // pred_check_branch
            %220 = sbr.rel (%p218) target = $region52
          $region51: #{tpu_custom_call.1} parent=43 // pred_region
            %s221 = sshllo.u32 0, 18
            loop: start=0, step=1, limit=1
            $region53: #{tpu_custom_call.1} parent=51 // loop_pre_header
              _
            $region54: #{tpu_custom_call.1} parent=51 // loop_header
              %s223 = sphi 0, %s227
              %p224 = scmp.ge.s32.totalorder %s223, 1
              %s228 = sphi %s212, %s212
              %s229 = sphi [#allocation2], [#allocation2]
            $region55: #{tpu_custom_call.1} parent=51 // loop_header_branch
              %226 = sbr.rel (%p224) target = $region59
            $region56: #{tpu_custom_call.1} parent=51 // loop_body
              %v230 = vld [vmem:[%s228] sm:%s221]
              %231 = vst [vmem:[%s229] sm:%s221] %v230
              %v232 = vld [vmem:[%s228 + $0x18] sm:%s221]
              %233 = vst [vmem:[%s229 + $0x18] sm:%s221] %v232
              %v234 = vld [vmem:[%s228 + $0x30] sm:%s221]
              %235 = vst [vmem:[%s229 + $0x30] sm:%s221] %v234
              %v236 = vld [vmem:[%s228 + $0x48] sm:%s221]
              %237 = vst [vmem:[%s229 + $0x48] sm:%s221] %v236
              %v238 = vld [vmem:[%s228 + $0x60] sm:%s221]
              %239 = vst [vmem:[%s229 + $0x60] sm:%s221] %v238
              %v240 = vld [vmem:[%s228 + $0x78] sm:%s221]
              %241 = vst [vmem:[%s229 + $0x78] sm:%s221] %v240
              %v242 = vld [vmem:[%s228 + $0x90] sm:%s221]
              %243 = vst [vmem:[%s229 + $0x90] sm:%s221] %v242
              %v244 = vld [vmem:[%s228 + $0xa8] sm:%s221]
              %245 = vst [vmem:[%s229 + $0xa8] sm:%s221] %v244
              %v246 = vld [vmem:[%s228 + $0xc0] sm:%s221]
              %247 = vst [vmem:[%s229 + $0xc0] sm:%s221] %v246
              %v248 = vld [vmem:[%s228 + $0xd8] sm:%s221]
              %249 = vst [vmem:[%s229 + $0xd8] sm:%s221] %v248
              %v250 = vld [vmem:[%s228 + $0xf0] sm:%s221]
              %251 = vst [vmem:[%s229 + $0xf0] sm:%s221] %v250
              %v252 = vld [vmem:[%s228 + $0x108] sm:%s221]
              %253 = vst [vmem:[%s229 + $0x108] sm:%s221] %v252
            $region57: #{tpu_custom_call.1} parent=51 // loop_footer
              %s227 = sadd.s32 1, %s223
            $region58: #{tpu_custom_call.1} parent=51 // loop_footer_branch
              %222 = sbr.rel target = $region54
            $region59: #{tpu_custom_call.1} parent=51 // loop_exit
              _
          $region52: #{tpu_custom_call.1} parent=43 // pred_fallthru
            _
          // Predicated region
          $region78: #{tpu_custom_call.1} parent=43 // pred_check
            _
          $region79: #{tpu_custom_call.1} parent=43 // pred_check_branch
            %355 = sbr.rel (0) target = $region81
          $region80: #{tpu_custom_call.1} parent=43 // pred_region
            %356 = vsyncadd [#allocation4], 3456
          $region81: #{tpu_custom_call.1} parent=43 // pred_fallthru
            _
        $region44: #{tpu_custom_call.1} parent=35 // pred_fallthru
          _
        %p357 = scmp.lt.s32.totalorder %s25, 0
        %s358 = ssub.s32 0, %s25
        %s359 = scalar_select %p357, %s358, %s25
        %s360 = sand.u32 %s359, 1
        %s361 = ssub.s32 0, %s360
        %s362 = scalar_select %p357, %s361, %s360
        %p363 = scmp.ne.s32.totalorder %s362, 0
        %p364 = scmp.lt.s32.totalorder %s362, 0
        %p365 = pnand %p364, %p363
        %p366 = pneg %p365
        %s367 = sadd.s32 %s362, 2
        %s368 = scalar_select %p366, %s367, %s362
        %s369 = smul.u32 %s368, 288
        %s370 = scalar_lea.vmem [#allocation2], %s369
        %s371 = scalar_lea.sflag [#allocation4], %s368
        %s372 = smul.u32 12, 18
        %s373 = smul.u32 %s372, 1
        %s374 = sshll.u32 %s373, 4
        %375 = dma.done %s371, %s374
        %s376 = sadd.s32 %s25, 1
        %p377 = scmp.lt.s32.totalorder %s376, 2
        // Predicated region
        $region82: #{tpu_custom_call.1} parent=35 // pred_check
          %p378 = pneg %p377
        $region83: #{tpu_custom_call.1} parent=35 // pred_check_branch
          %380 = sbr.rel (%p378) target = $region85
        $region84: #{tpu_custom_call.1} parent=35 // pred_region
          %s381 = ssub.s32 1, %s368
          %s382 = smul.u32 %s376, 8
          %s383 = smul.u32 %s382, 24
          %s384 = smul.u32 %s24, 480
          %s385 = sadd.s32 %s383, %s384
          %s386 = scalar_lea.vmem %s0, %s385
          %s387 = smul.u32 %s381, 288
          %s388 = scalar_lea.vmem [#allocation2], %s387
          %s389 = scalar_lea.sflag [#allocation4], %s381
          %p391 = scmp.lt.u32.totalorder 18, 8
          %p392 = pneg %p391
          // Predicated region
          $region86: #{tpu_custom_call.1} parent=84 // pred_check
            _
          $region87: #{tpu_custom_call.1} parent=84 // pred_check_branch
            %394 = sbr.rel (%p391) target = $region89
          $region88: #{tpu_custom_call.1} parent=84 // pred_region
            %s431 = sand.u32 18, 7
            %p432 = scmp.eq.s32.totalorder %s431, 0
            %p433 = pneg %p432
            // Predicated region
            $region101: #{tpu_custom_call.1} parent=88 // pred_check
              _
            $region102: #{tpu_custom_call.1} parent=88 // pred_check_branch
              %435 = sbr.rel (%p432) target = $region104
            $region103: #{tpu_custom_call.1} parent=88 // pred_region
              %s436 = sand.u32 18, 7
              %s437 = ssub.s32 18, %s436
              %s438 = scalar_lea.vmem %s386, %s437
              %s439 = ssub.s32 18, %s436
              %s440 = scalar_lea.vmem %s388, %s439 [#allocation2]
              loop: start=0, step=1, limit=1
              $region105: #{tpu_custom_call.1} parent=103 // loop_pre_header
                _
              $region106: #{tpu_custom_call.1} parent=103 // loop_header
                %s442 = sphi 0, %s446
                %p443 = scmp.ge.s32.totalorder %s442, 1
                %s447 = sphi %s386, %s386
                %s448 = sphi %s388, %s388
              $region107: #{tpu_custom_call.1} parent=103 // loop_header_branch
                %445 = sbr.rel (%p443) target = $region111
              $region108: #{tpu_custom_call.1} parent=103 // loop_body
                %v449 = vld [vmem:[%s447] sm:$0xff]
                %450 = vst [vmem:[%s448] sm:$0xff] %v449
                %v451 = vld [vmem:[%s447 + $0x8] sm:$0xff]
                %452 = vst [vmem:[%s448 + $0x8] sm:$0xff] %v451
                %v453 = vld [vmem:[%s447 + $0x18] sm:$0xff]
                %454 = vst [vmem:[%s448 + $0x18] sm:$0xff] %v453
                %v455 = vld [vmem:[%s447 + $0x20] sm:$0xff]
                %456 = vst [vmem:[%s448 + $0x20] sm:$0xff] %v455
                %v457 = vld [vmem:[%s447 + $0x30] sm:$0xff]
                %458 = vst [vmem:[%s448 + $0x30] sm:$0xff] %v457
                %v459 = vld [vmem:[%s447 + $0x38] sm:$0xff]
                %460 = vst [vmem:[%s448 + $0x38] sm:$0xff] %v459
                %v461 = vld [vmem:[%s447 + $0x48] sm:$0xff]
                %462 = vst [vmem:[%s448 + $0x48] sm:$0xff] %v461
                %v463 = vld [vmem:[%s447 + $0x50] sm:$0xff]
                %464 = vst [vmem:[%s448 + $0x50] sm:$0xff] %v463
                %v465 = vld [vmem:[%s447 + $0x60] sm:$0xff]
                %466 = vst [vmem:[%s448 + $0x60] sm:$0xff] %v465
                %v467 = vld [vmem:[%s447 + $0x68] sm:$0xff]
                %468 = vst [vmem:[%s448 + $0x68] sm:$0xff] %v467
                %v469 = vld [vmem:[%s447 + $0x78] sm:$0xff]
                %470 = vst [vmem:[%s448 + $0x78] sm:$0xff] %v469
                %v471 = vld [vmem:[%s447 + $0x80] sm:$0xff]
                %472 = vst [vmem:[%s448 + $0x80] sm:$0xff] %v471
                %v473 = vld [vmem:[%s447 + $0x90] sm:$0xff]
                %474 = vst [vmem:[%s448 + $0x90] sm:$0xff] %v473
                %v475 = vld [vmem:[%s447 + $0x98] sm:$0xff]
                %476 = vst [vmem:[%s448 + $0x98] sm:$0xff] %v475
                %v477 = vld [vmem:[%s447 + $0xa8] sm:$0xff]
                %478 = vst [vmem:[%s448 + $0xa8] sm:$0xff] %v477
                %v479 = vld [vmem:[%s447 + $0xb0] sm:$0xff]
                %480 = vst [vmem:[%s448 + $0xb0] sm:$0xff] %v479
                %v481 = vld [vmem:[%s447 + $0xc0] sm:$0xff]
                %482 = vst [vmem:[%s448 + $0xc0] sm:$0xff] %v481
                %v483 = vld [vmem:[%s447 + $0xc8] sm:$0xff]
                %484 = vst [vmem:[%s448 + $0xc8] sm:$0xff] %v483
                %v485 = vld [vmem:[%s447 + $0xd8] sm:$0xff]
                %486 = vst [vmem:[%s448 + $0xd8] sm:$0xff] %v485
                %v487 = vld [vmem:[%s447 + $0xe0] sm:$0xff]
                %488 = vst [vmem:[%s448 + $0xe0] sm:$0xff] %v487
                %v489 = vld [vmem:[%s447 + $0xf0] sm:$0xff]
                %490 = vst [vmem:[%s448 + $0xf0] sm:$0xff] %v489
                %v491 = vld [vmem:[%s447 + $0xf8] sm:$0xff]
                %492 = vst [vmem:[%s448 + $0xf8] sm:$0xff] %v491
                %v493 = vld [vmem:[%s447 + $0x108] sm:$0xff]
                %494 = vst [vmem:[%s448 + $0x108] sm:$0xff] %v493
                %v495 = vld [vmem:[%s447 + $0x110] sm:$0xff]
                %496 = vst [vmem:[%s448 + $0x110] sm:$0xff] %v495
              $region109: #{tpu_custom_call.1} parent=103 // loop_footer
                %s446 = sadd.s32 1, %s442
              $region110: #{tpu_custom_call.1} parent=103 // loop_footer_branch
                %441 = sbr.rel target = $region106
              $region111: #{tpu_custom_call.1} parent=103 // loop_exit
                _
              %s497 = sshllo.u32 0, %s436
              loop: start=0, step=1, limit=1
              $region112: #{tpu_custom_call.1} parent=103 // loop_pre_header
                _
              $region113: #{tpu_custom_call.1} parent=103 // loop_header
                %s499 = sphi 0, %s503
                %p500 = scmp.ge.s32.totalorder %s499, 1
                %s504 = sphi %s438, %s438
                %s505 = sphi %s440, %s440
              $region114: #{tpu_custom_call.1} parent=103 // loop_header_branch
                %502 = sbr.rel (%p500) target = $region118
              $region115: #{tpu_custom_call.1} parent=103 // loop_body
                %v506 = vld [vmem:[%s504] sm:%s497]
                %507 = vst [vmem:[%s505] sm:%s497] %v506
                %v508 = vld [vmem:[%s504 + $0x18] sm:%s497]
                %509 = vst [vmem:[%s505 + $0x18] sm:%s497] %v508
                %v510 = vld [vmem:[%s504 + $0x30] sm:%s497]
                %511 = vst [vmem:[%s505 + $0x30] sm:%s497] %v510
                %v512 = vld [vmem:[%s504 + $0x48] sm:%s497]
                %513 = vst [vmem:[%s505 + $0x48] sm:%s497] %v512
                %v514 = vld [vmem:[%s504 + $0x60] sm:%s497]
                %515 = vst [vmem:[%s505 + $0x60] sm:%s497] %v514
                %v516 = vld [vmem:[%s504 + $0x78] sm:%s497]
                %517 = vst [vmem:[%s505 + $0x78] sm:%s497] %v516
                %v518 = vld [vmem:[%s504 + $0x90] sm:%s497]
                %519 = vst [vmem:[%s505 + $0x90] sm:%s497] %v518
                %v520 = vld [vmem:[%s504 + $0xa8] sm:%s497]
                %521 = vst [vmem:[%s505 + $0xa8] sm:%s497] %v520
                %v522 = vld [vmem:[%s504 + $0xc0] sm:%s497]
                %523 = vst [vmem:[%s505 + $0xc0] sm:%s497] %v522
                %v524 = vld [vmem:[%s504 + $0xd8] sm:%s497]
                %525 = vst [vmem:[%s505 + $0xd8] sm:%s497] %v524
                %v526 = vld [vmem:[%s504 + $0xf0] sm:%s497]
                %527 = vst [vmem:[%s505 + $0xf0] sm:%s497] %v526
                %v528 = vld [vmem:[%s504 + $0x108] sm:%s497]
                %529 = vst [vmem:[%s505 + $0x108] sm:%s497] %v528
              $region116: #{tpu_custom_call.1} parent=103 // loop_footer
                %s503 = sadd.s32 1, %s499
              $region117: #{tpu_custom_call.1} parent=103 // loop_footer_branch
                %498 = sbr.rel target = $region113
              $region118: #{tpu_custom_call.1} parent=103 // loop_exit
                _
            $region104: #{tpu_custom_call.1} parent=88 // pred_fallthru
              _
          $region89: #{tpu_custom_call.1} parent=84 // pred_fallthru
            _
          // Predicated region
          $region90: #{tpu_custom_call.1} parent=84 // pred_check
            %p395 = pneg %p391
          $region91: #{tpu_custom_call.1} parent=84 // pred_check_branch
            %397 = sbr.rel (%p395) target = $region93
          $region92: #{tpu_custom_call.1} parent=84 // pred_region
            %s398 = sshllo.u32 0, 18
            loop: start=0, step=1, limit=1
            $region94: #{tpu_custom_call.1} parent=92 // loop_pre_header
              _
            $region95: #{tpu_custom_call.1} parent=92 // loop_header
              %s400 = sphi 0, %s404
              %p401 = scmp.ge.s32.totalorder %s400, 1
              %s405 = sphi %s386, %s386
              %s406 = sphi %s388, %s388
            $region96: #{tpu_custom_call.1} parent=92 // loop_header_branch
              %403 = sbr.rel (%p401) target = $region100
            $region97: #{tpu_custom_call.1} parent=92 // loop_body
              %v407 = vld [vmem:[%s405] sm:%s398]
              %408 = vst [vmem:[%s406] sm:%s398] %v407
              %v409 = vld [vmem:[%s405 + $0x18] sm:%s398]
              %410 = vst [vmem:[%s406 + $0x18] sm:%s398] %v409
              %v411 = vld [vmem:[%s405 + $0x30] sm:%s398]
              %412 = vst [vmem:[%s406 + $0x30] sm:%s398] %v411
              %v413 = vld [vmem:[%s405 + $0x48] sm:%s398]
              %414 = vst [vmem:[%s406 + $0x48] sm:%s398] %v413
              %v415 = vld [vmem:[%s405 + $0x60] sm:%s398]
              %416 = vst [vmem:[%s406 + $0x60] sm:%s398] %v415
              %v417 = vld [vmem:[%s405 + $0x78] sm:%s398]
              %418 = vst [vmem:[%s406 + $0x78] sm:%s398] %v417
              %v419 = vld [vmem:[%s405 + $0x90] sm:%s398]
              %420 = vst [vmem:[%s406 + $0x90] sm:%s398] %v419
              %v421 = vld [vmem:[%s405 + $0xa8] sm:%s398]
              %422 = vst [vmem:[%s406 + $0xa8] sm:%s398] %v421
              %v423 = vld [vmem:[%s405 + $0xc0] sm:%s398]
              %424 = vst [vmem:[%s406 + $0xc0] sm:%s398] %v423
              %v425 = vld [vmem:[%s405 + $0xd8] sm:%s398]
              %426 = vst [vmem:[%s406 + $0xd8] sm:%s398] %v425
              %v427 = vld [vmem:[%s405 + $0xf0] sm:%s398]
              %428 = vst [vmem:[%s406 + $0xf0] sm:%s398] %v427
              %v429 = vld [vmem:[%s405 + $0x108] sm:%s398]
              %430 = vst [vmem:[%s406 + $0x108] sm:%s398] %v429
            $region98: #{tpu_custom_call.1} parent=92 // loop_footer
              %s404 = sadd.s32 1, %s400
            $region99: #{tpu_custom_call.1} parent=92 // loop_footer_branch
              %399 = sbr.rel target = $region95
            $region100: #{tpu_custom_call.1} parent=92 // loop_exit
              _
          $region93: #{tpu_custom_call.1} parent=84 // pred_fallthru
            _
          // Predicated region
          $region119: #{tpu_custom_call.1} parent=84 // pred_check
            _
          $region120: #{tpu_custom_call.1} parent=84 // pred_check_branch
            %532 = sbr.rel (0) target = $region122
          $region121: #{tpu_custom_call.1} parent=84 // pred_region
            %533 = vsyncadd %s389, 3456
          $region122: #{tpu_custom_call.1} parent=84 // pred_fallthru
            _
        $region85: #{tpu_custom_call.1} parent=35 // pred_fallthru
          _
        %v534 = vld [vmem:[%s370] sm:$0xff]
        %v535 = vld [vmem:[%s370 + $0x8] sm:$0xff]
        %v536 = vld [vmem:[%s370 + $0x10] sm:$0x3]
        %v537 = vld [vmem:[%s370 + $0x18] sm:$0xff]
        %v538 = vld [vmem:[%s370 + $0x20] sm:$0xff]
        %v539 = vld [vmem:[%s370 + $0x28] sm:$0x3]
        %v540 = vld [vmem:[%s370 + $0x30] sm:$0xff]
        %v541 = vld [vmem:[%s370 + $0x38] sm:$0xff]
        %v542 = vld [vmem:[%s370 + $0x40] sm:$0x3]
        %v543 = vld [vmem:[%s370 + $0x48] sm:$0xff]
        %v544 = vld [vmem:[%s370 + $0x50] sm:$0xff]
        %v545 = vld [vmem:[%s370 + $0x58] sm:$0x3]
        %v546 = vld [vmem:[%s370 + $0x60] sm:$0xff]
        %v547 = vld [vmem:[%s370 + $0x68] sm:$0xff]
        %v548 = vld [vmem:[%s370 + $0x70] sm:$0x3]
        %v549 = vld [vmem:[%s370 + $0x78] sm:$0xff]
        %v550 = vld [vmem:[%s370 + $0x80] sm:$0xff]
        %v551 = vld [vmem:[%s370 + $0x88] sm:$0x3]
        %v552 = vld [vmem:[%s370 + $0x90] sm:$0xff]
        %v553 = vld [vmem:[%s370 + $0x98] sm:$0xff]
        %v554 = vld [vmem:[%s370 + $0xa0] sm:$0x3]
        %v555 = vld [vmem:[%s370 + $0xa8] sm:$0xff]
        %v556 = vld [vmem:[%s370 + $0xb0] sm:$0xff]
        %v557 = vld [vmem:[%s370 + $0xb8] sm:$0x3]
        %v558 = vld [vmem:[%s370 + $0xc0] sm:$0xff]
        %v559 = vld [vmem:[%s370 + $0xc8] sm:$0xff]
        %v560 = vld [vmem:[%s370 + $0xd0] sm:$0x3]
        %v561 = vld [vmem:[%s370 + $0xd8] sm:$0xff]
        %v562 = vld [vmem:[%s370 + $0xe0] sm:$0xff]
        %v563 = vld [vmem:[%s370 + $0xe8] sm:$0x3]
        %v564 = vld [vmem:[%s370 + $0xf0] sm:$0xff]
        %v565 = vld [vmem:[%s370 + $0xf8] sm:$0xff]
        %v566 = vld [vmem:[%s370 + $0x100] sm:$0x3]
        %v567 = vld [vmem:[%s370 + $0x108] sm:$0xff]
        %v568 = vld [vmem:[%s370 + $0x110] sm:$0xff]
        %v569 = vld [vmem:[%s370 + $0x118] sm:$0x3]
        %v570 = vld [vmem:[%s2] sm:$0x1]
        %v572 = vlaneseq
        %v573 = vshrl.u32 %v572, 7
        %v574 = vsub.s32 0, %v573
        %v575 = vrot.slane %v570, %v574
        %v577 = vld [vmem:[%s1] sm:$0xff]
        %v578 = vld [vmem:[%s1 + $0x8] sm:$0xff]
        %v579 = vld [vmem:[%s1 + $0x10] sm:$0xff]
        %v580 = vld [vmem:[%s1 + $0x18] sm:$0xff]
        %v581 = vld [vmem:[%s1 + $0x20] sm:$0xff]
        %v582 = vld [vmem:[%s1 + $0x28] sm:$0xff]
        %v583 = vld [vmem:[%s1 + $0x30] sm:$0xff]
        %v584 = vld [vmem:[%s1 + $0x38] sm:$0xff]
        %v585 = vld [vmem:[%s1 + $0x40] sm:$0xff]
        %v586 = vld [vmem:[%s1 + $0x48] sm:$0xff]
        %v587 = vld [vmem:[%s1 + $0x50] sm:$0xff]
        %v588 = vld [vmem:[%s1 + $0x58] sm:$0xff]
        %v589 = vld [vmem:[%s1 + $0x60] sm:$0xff]
        %v590 = vld [vmem:[%s1 + $0x68] sm:$0xff]
        %v591 = vld [vmem:[%s1 + $0x70] sm:$0xff]
        %v592 = vld [vmem:[%s1 + $0x78] sm:$0xff]
        %593 = vmatprep.subr.mxu0 0.0
        %594 = vmatpush1.msra.mxu0 %v577
        %595 = vmatprep.subr.mxu0 0.0
        %596 = vmatpush1.msra.mxu0 %v578
        %597 = vmatprep.subr.mxu0 0.0
        %598 = vmatpush1.msra.mxu0 %v579
        %599 = vmatprep.subr.mxu0 0.0
        %600 = vmatpush1.msra.mxu0 %v580
        %601 = vmatprep.subr.mxu0 0.0
        %602 = vmatpush1.msra.mxu0 %v581
        %603 = vmatprep.subr.mxu0 0.0
        %604 = vmatpush1.msra.mxu0 %v582
        %605 = vmatprep.subr.mxu0 0.0
        %606 = vmatpush1.msra.mxu0 %v583
        %607 = vmatprep.subr.mxu0 0.0
        %608 = vmatpush1.msra.mxu0 %v584
        %609 = vmatprep.subr.mxu0 0.0
        %610 = vmatpush1.msra.mxu0 %v585
        %611 = vmatprep.subr.mxu0 0.0
        %612 = vmatpush1.msra.mxu0 %v586
        %613 = vmatprep.subr.mxu0 0.0
        %614 = vmatpush1.msra.mxu0 %v587
        %615 = vmatprep.subr.mxu0 0.0
        %616 = vmatpush1.msra.mxu0 %v588
        %617 = vmatprep.subr.mxu0 0.0
        %618 = vmatpush1.msra.mxu0 %v589
        %619 = vmatprep.subr.mxu0 0.0
        %620 = vmatpush1.msra.mxu0 %v590
        %621 = vmatprep.subr.mxu0 0.0
        %622 = vmatpush1.msra.mxu0 %v591
        %623 = vmatprep.subr.mxu0 0.0
        %624 = vmatpush1.msra.mxu0 %v592
        %625 = vmatprep.subr.mxu0 0.0
        %626 = vmatpush1.msra.mxu0 0.0
        %627 = vmatprep.subr.mxu0 0.0
        %628 = vmatpush1.msra.mxu0 0.0
        %629 = vmatprep.subr.mxu0 0.0
        %630 = vmatpush1.msra.mxu0 0.0
        %631 = vmatprep.subr.mxu0 0.0
        %632 = vmatpush1.msra.mxu0 0.0
        %633 = vmatprep.subr.mxu0 0.0
        %634 = vmatpush1.msra.mxu0 0.0
        %635 = vmatprep.subr.mxu0 0.0
        %636 = vmatpush1.msra.mxu0 0.0
        %637 = vmatprep.subr.mxu0 0.0
        %638 = vmatpush1.msra.mxu0 0.0
        %639 = vmatprep.subr.mxu0 0.0
        %640 = vmatpush1.msra.mxu0 0.0
        %641 = vmatprep.subr.mxu0 0.0
        %642 = vmatpush1.msra.mxu0 0.0
        %643 = vmatprep.subr.mxu0 0.0
        %644 = vmatpush1.msra.mxu0 0.0
        %645 = vmatprep.subr.mxu0 0.0
        %646 = vmatpush1.msra.mxu0 0.0
        %647 = vmatprep.subr.mxu0 0.0
        %648 = vmatpush1.msra.mxu0 0.0
        %649 = vmatprep.subr.mxu0 0.0
        %650 = vmatpush1.msra.mxu0 0.0
        %651 = vmatprep.subr.mxu0 0.0
        %652 = vmatpush1.msra.mxu0 0.0
        %653 = vmatprep.subr.mxu0 0.0
        %654 = vmatpush1.msra.mxu0 0.0
        %655 = vmatprep.subr.mxu0 0.0
        %656 = vmatpush1.msra.mxu0 0.0
        %657 = vmatprep.mubr.f32.mxu0 0.0
        %658 = vmatmul.mubr.f32.gmra.mrb[0].mxu0 %v534
        %v659 = vpop.f32.mrb[0].mxu0
        %v660 = vadd.f32 0.0, %v659
        %v661 = vpop.f32.mrb[0].mxu0
        %662 = vmatprep.mubr.f32.mxu0 0.0
        %663 = vmatmul.mubr.f32.gmra.mrb[0].mxu0 %v535
        %v664 = vpop.f32.mrb[0].mxu0
        %v665 = vadd.f32 0.0, %v664
        %v666 = vpop.f32.mrb[0].mxu0
        %667 = vmatprep.mubr.f32.mxu0 0.0
        %668 = vmatmul.mubr.f32.gmra.mrb[0].mxu0 %v537
        %v669 = vpop.f32.mrb[0].mxu0
        %v670 = vadd.f32 0.0, %v669
        %v671 = vpop.f32.mrb[0].mxu0
        %672 = vmatprep.mubr.f32.mxu0 0.0
        %673 = vmatmul.mubr.f32.gmra.mrb[0].mxu0 %v538
        %v674 = vpop.f32.mrb[0].mxu0
        %v675 = vadd.f32 0.0, %v674
        %v676 = vpop.f32.mrb[0].mxu0
        %677 = vmatprep.mubr.f32.mxu0 0.0
        %678 = vmatmul.mubr.f32.gmra.mrb[0].mxu0 %v540
        %v679 = vpop.f32.mrb[0].mxu0
        %v680 = vadd.f32 0.0, %v679
        %v681 = vpop.f32.mrb[0].mxu0
        %682 = vmatprep.mubr.f32.mxu0 0.0
        %683 = vmatmul.mubr.f32.gmra.mrb[0].mxu0 %v541
        %v684 = vpop.f32.mrb[0].mxu0
        %v685 = vadd.f32 0.0, %v684
        %v686 = vpop.f32.mrb[0].mxu0
        %687 = vmatprep.mubr.f32.mxu0 0.0
        %688 = vmatmul.mubr.f32.gmra.mrb[0].mxu0 %v543
        %v689 = vpop.f32.mrb[0].mxu0
        %v690 = vadd.f32 0.0, %v689
        %v691 = vpop.f32.mrb[0].mxu0
        %692 = vmatprep.mubr.f32.mxu0 0.0
        %693 = vmatmul.mubr.f32.gmra.mrb[0].mxu0 %v544
        %v694 = vpop.f32.mrb[0].mxu0
        %v695 = vadd.f32 0.0, %v694
        %v696 = vpop.f32.mrb[0].mxu0
        %697 = vmatprep.mubr.f32.mxu0 0.0
        %698 = vmatmul.mubr.f32.gmra.mrb[0].mxu0 %v546
        %v699 = vpop.f32.mrb[0].mxu0
        %v700 = vadd.f32 0.0, %v699
        %v701 = vpop.f32.mrb[0].mxu0
        %702 = vmatprep.mubr.f32.mxu0 0.0
        %703 = vmatmul.mubr.f32.gmra.mrb[0].mxu0 %v547
        %v704 = vpop.f32.mrb[0].mxu0
        %v705 = vadd.f32 0.0, %v704
        %v706 = vpop.f32.mrb[0].mxu0
        %707 = vmatprep.mubr.f32.mxu0 0.0
        %708 = vmatmul.mubr.f32.gmra.mrb[0].mxu0 %v549
        %v709 = vpop.f32.mrb[0].mxu0
        %v710 = vadd.f32 0.0, %v709
        %v711 = vpop.f32.mrb[0].mxu0
        %712 = vmatprep.mubr.f32.mxu0 0.0
        %713 = vmatmul.mubr.f32.gmra.mrb[0].mxu0 %v550
        %v714 = vpop.f32.mrb[0].mxu0
        %v715 = vadd.f32 0.0, %v714
        %v716 = vpop.f32.mrb[0].mxu0
        %717 = vmatprep.mubr.f32.mxu0 0.0
        %718 = vmatmul.mubr.f32.gmra.mrb[0].mxu0 %v552
        %v719 = vpop.f32.mrb[0].mxu0
        %v720 = vadd.f32 0.0, %v719
        %v721 = vpop.f32.mrb[0].mxu0
        %722 = vmatprep.mubr.f32.mxu0 0.0
        %723 = vmatmul.mubr.f32.gmra.mrb[0].mxu0 %v553
        %v724 = vpop.f32.mrb[0].mxu0
        %v725 = vadd.f32 0.0, %v724
        %v726 = vpop.f32.mrb[0].mxu0
        %727 = vmatprep.mubr.f32.mxu0 0.0
        %728 = vmatmul.mubr.f32.gmra.mrb[0].mxu0 %v555
        %v729 = vpop.f32.mrb[0].mxu0
        %v730 = vadd.f32 0.0, %v729
        %v731 = vpop.f32.mrb[0].mxu0
        %732 = vmatprep.mubr.f32.mxu0 0.0
        %733 = vmatmul.mubr.f32.gmra.mrb[0].mxu0 %v556
        %v734 = vpop.f32.mrb[0].mxu0
        %v735 = vadd.f32 0.0, %v734
        %v736 = vpop.f32.mrb[0].mxu0
        %737 = vmatprep.mubr.f32.mxu0 0.0
        %738 = vmatmul.mubr.f32.gmra.mrb[0].mxu0 %v558
        %v739 = vpop.f32.mrb[0].mxu0
        %v740 = vadd.f32 0.0, %v739
        %v741 = vpop.f32.mrb[0].mxu0
        %742 = vmatprep.mubr.f32.mxu0 0.0
        %743 = vmatmul.mubr.f32.gmra.mrb[0].mxu0 %v559
        %v744 = vpop.f32.mrb[0].mxu0
        %v745 = vadd.f32 0.0, %v744
        %v746 = vpop.f32.mrb[0].mxu0
        %747 = vmatprep.mubr.f32.mxu0 0.0
        %748 = vmatmul.mubr.f32.gmra.mrb[0].mxu0 %v561
        %v749 = vpop.f32.mrb[0].mxu0
        %v750 = vadd.f32 0.0, %v749
        %v751 = vpop.f32.mrb[0].mxu0
        %752 = vmatprep.mubr.f32.mxu0 0.0
        %753 = vmatmul.mubr.f32.gmra.mrb[0].mxu0 %v562
        %v754 = vpop.f32.mrb[0].mxu0
        %v755 = vadd.f32 0.0, %v754
        %v756 = vpop.f32.mrb[0].mxu0
        %757 = vdwg.mxu0
        %v758 = vadd.f32 %v575, %v660
        %v759 = vadd.f32 %v575, %v665
        %v760 = vadd.f32 %v575, %v670
        %v761 = vadd.f32 %v575, %v675
        %v762 = vadd.f32 %v575, %v680
        %v763 = vadd.f32 %v575, %v685
        %v764 = vadd.f32 %v575, %v690
        %v765 = vadd.f32 %v575, %v695
        %v766 = vadd.f32 %v575, %v700
        %v767 = vadd.f32 %v575, %v705
        %v768 = vadd.f32 %v575, %v710
        %v769 = vadd.f32 %v575, %v715
        %v770 = vadd.f32 %v575, %v720
        %v771 = vadd.f32 %v575, %v725
        %v772 = vadd.f32 %v575, %v730
        %v773 = vadd.f32 %v575, %v735
        %v774 = vadd.f32 %v575, %v740
        %v775 = vadd.f32 %v575, %v745
        %v776 = vadd.f32 %v575, %v750
        %v777 = vadd.f32 %v575, %v755
        %s778 = scalar_lea.vmem %s1, 128
        %v779 = vld [vmem:[%s778] sm:$0xff]
        %v780 = vld [vmem:[%s778 + $0x8] sm:$0xff]
        %v781 = vld [vmem:[%s778 + $0x10] sm:$0xff]
        %v782 = vld [vmem:[%s778 + $0x18] sm:$0xff]
        %v783 = vld [vmem:[%s778 + $0x20] sm:$0xff]
        %v784 = vld [vmem:[%s778 + $0x28] sm:$0xff]
        %v785 = vld [vmem:[%s778 + $0x30] sm:$0xff]
        %v786 = vld [vmem:[%s778 + $0x38] sm:$0xff]
        %v787 = vld [vmem:[%s778 + $0x40] sm:$0xff]
        %v788 = vld [vmem:[%s778 + $0x48] sm:$0xff]
        %v789 = vld [vmem:[%s778 + $0x50] sm:$0xff]
        %v790 = vld [vmem:[%s778 + $0x58] sm:$0xff]
        %v791 = vld [vmem:[%s778 + $0x60] sm:$0xff]
        %v792 = vld [vmem:[%s778 + $0x68] sm:$0xff]
        %v793 = vld [vmem:[%s778 + $0x70] sm:$0xff]
        %v794 = vld [vmem:[%s778 + $0x78] sm:$0xff]
        %vm825 = vcmask 1046528
        %v826 = vrot.slane %v534, 1
        %v827 = vrot.slane %v535, 1
        %v828 = vsel %vm825, %v826, %v827
        %v829 = vrot.slane %v536, 1
        %v830 = vsel %vm825, %v827, %v829
        %v831 = vrot.slane %v537, 1
        %v832 = vrot.slane %v538, 1
        %v833 = vsel %vm825, %v831, %v832
        %v834 = vrot.slane %v539, 1
        %v835 = vsel %vm825, %v832, %v834
        %v836 = vrot.slane %v540, 1
        %v837 = vrot.slane %v541, 1
        %v838 = vsel %vm825, %v836, %v837
        %v839 = vrot.slane %v542, 1
        %v840 = vsel %vm825, %v837, %v839
        %v841 = vrot.slane %v543, 1
        %v842 = vrot.slane %v544, 1
        %v843 = vsel %vm825, %v841, %v842
        %v844 = vrot.slane %v545, 1
        %v845 = vsel %vm825, %v842, %v844
        %v846 = vrot.slane %v546, 1
        %v847 = vrot.slane %v547, 1
        %v848 = vsel %vm825, %v846, %v847
        %v849 = vrot.slane %v548, 1
        %v850 = vsel %vm825, %v847, %v849
        %v851 = vrot.slane %v549, 1
        %v852 = vrot.slane %v550, 1
        %v853 = vsel %vm825, %v851, %v852
        %v854 = vrot.slane %v551, 1
        %v855 = vsel %vm825, %v852, %v854
        %v856 = vrot.slane %v552, 1
        %v857 = vrot.slane %v553, 1
        %v858 = vsel %vm825, %v856, %v857
        %v859 = vrot.slane %v554, 1
        %v860 = vsel %vm825, %v857, %v859
        %v861 = vrot.slane %v555, 1
        %v862 = vrot.slane %v556, 1
        %v863 = vsel %vm825, %v861, %v862
        %v864 = vrot.slane %v557, 1
        %v865 = vsel %vm825, %v862, %v864
        %v866 = vrot.slane %v558, 1
        %v867 = vrot.slane %v559, 1
        %v868 = vsel %vm825, %v866, %v867
        %v869 = vrot.slane %v560, 1
        %v870 = vsel %vm825, %v867, %v869
        %v871 = vrot.slane %v561, 1
        %v872 = vrot.slane %v562, 1
        %v873 = vsel %vm825, %v871, %v872
        %v874 = vrot.slane %v563, 1
        %v875 = vsel %vm825, %v872, %v874
        %896 = vmatprep.subr.mxu0 0.0
        %897 = vmatpush1.msra.mxu0 %v779
        %898 = vmatprep.subr.mxu0 0.0
        %899 = vmatpush1.msra.mxu0 %v780
        %900 = vmatprep.subr.mxu0 0.0
        %901 = vmatpush1.msra.mxu0 %v781
        %902 = vmatprep.subr.mxu0 0.0
        %903 = vmatpush1.msra.mxu0 %v782
        %904 = vmatprep.subr.mxu0 0.0
        %905 = vmatpush1.msra.mxu0 %v783
        %906 = vmatprep.subr.mxu0 0.0
        %907 = vmatpush1.msra.mxu0 %v784
        %908 = vmatprep.subr.mxu0 0.0
        %909 = vmatpush1.msra.mxu0 %v785
        %910 = vmatprep.subr.mxu0 0.0
        %911 = vmatpush1.msra.mxu0 %v786
        %912 = vmatprep.subr.mxu0 0.0
        %913 = vmatpush1.msra.mxu0 %v787
        %914 = vmatprep.subr.mxu0 0.0
        %915 = vmatpush1.msra.mxu0 %v788
        %916 = vmatprep.subr.mxu0 0.0
        %917 = vmatpush1.msra.mxu0 %v789
        %918 = vmatprep.subr.mxu0 0.0
        %919 = vmatpush1.msra.mxu0 %v790
        %920 = vmatprep.subr.mxu0 0.0
        %921 = vmatpush1.msra.mxu0 %v791
        %922 = vmatprep.subr.mxu0 0.0
        %923 = vmatpush1.msra.mxu0 %v792
        %924 = vmatprep.subr.mxu0 0.0
        %925 = vmatpush1.msra.mxu0 %v793
        %926 = vmatprep.subr.mxu0 0.0
        %927 = vmatpush1.msra.mxu0 %v794
        %928 = vmatprep.subr.mxu0 0.0
        %929 = vmatpush1.msra.mxu0 0.0
        %930 = vmatprep.subr.mxu0 0.0
        %931 = vmatpush1.msra.mxu0 0.0
        %932 = vmatprep.subr.mxu0 0.0
        %933 = vmatpush1.msra.mxu0 0.0
        %934 = vmatprep.subr.mxu0 0.0
        %935 = vmatpush1.msra.mxu0 0.0
        %936 = vmatprep.subr.mxu0 0.0
        %937 = vmatpush1.msra.mxu0 0.0
        %938 = vmatprep.subr.mxu0 0.0
        %939 = vmatpush1.msra.mxu0 0.0
        %940 = vmatprep.subr.mxu0 0.0
        %941 = vmatpush1.msra.mxu0 0.0
        %942 = vmatprep.subr.mxu0 0.0
        %943 = vmatpush1.msra.mxu0 0.0
        %944 = vmatprep.subr.mxu0 0.0
        %945 = vmatpush1.msra.mxu0 0.0
        %946 = vmatprep.subr.mxu0 0.0
        %947 = vmatpush1.msra.mxu0 0.0
        %948 = vmatprep.subr.mxu0 0.0
        %949 = vmatpush1.msra.mxu0 0.0
        %950 = vmatprep.subr.mxu0 0.0
        %951 = vmatpush1.msra.mxu0 0.0
        %952 = vmatprep.subr.mxu0 0.0
        %953 = vmatpush1.msra.mxu0 0.0
        %954 = vmatprep.subr.mxu0 0.0
        %955 = vmatpush1.msra.mxu0 0.0
        %956 = vmatprep.subr.mxu0 0.0
        %957 = vmatpush1.msra.mxu0 0.0
        %958 = vmatprep.subr.mxu0 0.0
        %959 = vmatpush1.msra.mxu0 0.0
        %960 = vmatprep.mubr.f32.mxu0 0.0
        %961 = vmatmul.mubr.f32.gmra.mrb[0].mxu0 %v828
        %v962 = vpop.f32.mrb[0].mxu0
        %v963 = vadd.f32 0.0, %v962
        %v964 = vpop.f32.mrb[0].mxu0
        %965 = vmatprep.mubr.f32.mxu0 0.0
        %966 = vmatmul.mubr.f32.gmra.mrb[0].mxu0 %v830
        %v967 = vpop.f32.mrb[0].mxu0
        %v968 = vadd.f32 0.0, %v967
        %v969 = vpop.f32.mrb[0].mxu0
        %970 = vmatprep.mubr.f32.mxu0 0.0
        %971 = vmatmul.mubr.f32.gmra.mrb[0].mxu0 %v833
        %v972 = vpop.f32.mrb[0].mxu0
        %v973 = vadd.f32 0.0, %v972
        %v974 = vpop.f32.mrb[0].mxu0
        %975 = vmatprep.mubr.f32.mxu0 0.0
        %976 = vmatmul.mubr.f32.gmra.mrb[0].mxu0 %v835
        %v977 = vpop.f32.mrb[0].mxu0
        %v978 = vadd.f32 0.0, %v977
        %v979 = vpop.f32.mrb[0].mxu0
        %980 = vmatprep.mubr.f32.mxu0 0.0
        %981 = vmatmul.mubr.f32.gmra.mrb[0].mxu0 %v838
        %v982 = vpop.f32.mrb[0].mxu0
        %v983 = vadd.f32 0.0, %v982
        %v984 = vpop.f32.mrb[0].mxu0
        %985 = vmatprep.mubr.f32.mxu0 0.0
        %986 = vmatmul.mubr.f32.gmra.mrb[0].mxu0 %v840
        %v987 = vpop.f32.mrb[0].mxu0
        %v988 = vadd.f32 0.0, %v987
        %v989 = vpop.f32.mrb[0].mxu0
        %990 = vmatprep.mubr.f32.mxu0 0.0
        %991 = vmatmul.mubr.f32.gmra.mrb[0].mxu0 %v843
        %v992 = vpop.f32.mrb[0].mxu0
        %v993 = vadd.f32 0.0, %v992
        %v994 = vpop.f32.mrb[0].mxu0
        %995 = vmatprep.mubr.f32.mxu0 0.0
        %996 = vmatmul.mubr.f32.gmra.mrb[0].mxu0 %v845
        %v997 = vpop.f32.mrb[0].mxu0
        %v998 = vadd.f32 0.0, %v997
        %v999 = vpop.f32.mrb[0].mxu0
        %1000 = vmatprep.mubr.f32.mxu0 0.0
        %1001 = vmatmul.mubr.f32.gmra.mrb[0].mxu0 %v848
        %v1002 = vpop.f32.mrb[0].mxu0
        %v1003 = vadd.f32 0.0, %v1002
        %v1004 = vpop.f32.mrb[0].mxu0
        %1005 = vmatprep.mubr.f32.mxu0 0.0
        %1006 = vmatmul.mubr.f32.gmra.mrb[0].mxu0 %v850
        %v1007 = vpop.f32.mrb[0].mxu0
        %v1008 = vadd.f32 0.0, %v1007
        %v1009 = vpop.f32.mrb[0].mxu0
        %1010 = vmatprep.mubr.f32.mxu0 0.0
        %1011 = vmatmul.mubr.f32.gmra.mrb[0].mxu0 %v853
        %v1012 = vpop.f32.mrb[0].mxu0
        %v1013 = vadd.f32 0.0, %v1012
        %v1014 = vpop.f32.mrb[0].mxu0
        %1015 = vmatprep.mubr.f32.mxu0 0.0
        %1016 = vmatmul.mubr.f32.gmra.mrb[0].mxu0 %v855
        %v1017 = vpop.f32.mrb[0].mxu0
        %v1018 = vadd.f32 0.0, %v1017
        %v1019 = vpop.f32.mrb[0].mxu0
        %1020 = vmatprep.mubr.f32.mxu0 0.0
        %1021 = vmatmul.mubr.f32.gmra.mrb[0].mxu0 %v858
        %v1022 = vpop.f32.mrb[0].mxu0
        %v1023 = vadd.f32 0.0, %v1022
        %v1024 = vpop.f32.mrb[0].mxu0
        %1025 = vmatprep.mubr.f32.mxu0 0.0
        %1026 = vmatmul.mubr.f32.gmra.mrb[0].mxu0 %v860
        %v1027 = vpop.f32.mrb[0].mxu0
        %v1028 = vadd.f32 0.0, %v1027
        %v1029 = vpop.f32.mrb[0].mxu0
        %1030 = vmatprep.mubr.f32.mxu0 0.0
        %1031 = vmatmul.mubr.f32.gmra.mrb[0].mxu0 %v863
        %v1032 = vpop.f32.mrb[0].mxu0
        %v1033 = vadd.f32 0.0, %v1032
        %v1034 = vpop.f32.mrb[0].mxu0
        %1035 = vmatprep.mubr.f32.mxu0 0.0
        %1036 = vmatmul.mubr.f32.gmra.mrb[0].mxu0 %v865
        %v1037 = vpop.f32.mrb[0].mxu0
        %v1038 = vadd.f32 0.0, %v1037
        %v1039 = vpop.f32.mrb[0].mxu0
        %1040 = vmatprep.mubr.f32.mxu0 0.0
        %1041 = vmatmul.mubr.f32.gmra.mrb[0].mxu0 %v868
        %v1042 = vpop.f32.mrb[0].mxu0
        %v1043 = vadd.f32 0.0, %v1042
        %v1044 = vpop.f32.mrb[0].mxu0
        %1045 = vmatprep.mubr.f32.mxu0 0.0
        %1046 = vmatmul.mubr.f32.gmra.mrb[0].mxu0 %v870
        %v1047 = vpop.f32.mrb[0].mxu0
        %v1048 = vadd.f32 0.0, %v1047
        %v1049 = vpop.f32.mrb[0].mxu0
        %1050 = vmatprep.mubr.f32.mxu0 0.0
        %1051 = vmatmul.mubr.f32.gmra.mrb[0].mxu0 %v873
        %v1052 = vpop.f32.mrb[0].mxu0
        %v1053 = vadd.f32 0.0, %v1052
        %v1054 = vpop.f32.mrb[0].mxu0
        %1055 = vmatprep.mubr.f32.mxu0 0.0
        %1056 = vmatmul.mubr.f32.gmra.mrb[0].mxu0 %v875
        %v1057 = vpop.f32.mrb[0].mxu0
        %v1058 = vadd.f32 0.0, %v1057
        %v1059 = vpop.f32.mrb[0].mxu0
        %1060 = vdwg.mxu0
        %v1061 = vadd.f32 %v758, %v963
        %v1062 = vadd.f32 %v759, %v968
        %v1063 = vadd.f32 %v760, %v973
        %v1064 = vadd.f32 %v761, %v978
        %v1065 = vadd.f32 %v762, %v983
        %v1066 = vadd.f32 %v763, %v988
        %v1067 = vadd.f32 %v764, %v993
        %v1068 = vadd.f32 %v765, %v998
        %v1069 = vadd.f32 %v766, %v1003
        %v1070 = vadd.f32 %v767, %v1008
        %v1071 = vadd.f32 %v768, %v1013
        %v1072 = vadd.f32 %v769, %v1018
        %v1073 = vadd.f32 %v770, %v1023
        %v1074 = vadd.f32 %v771, %v1028
        %v1075 = vadd.f32 %v772, %v1033
        %v1076 = vadd.f32 %v773, %v1038
        %v1077 = vadd.f32 %v774, %v1043
        %v1078 = vadd.f32 %v775, %v1048
        %v1079 = vadd.f32 %v776, %v1053
        %v1080 = vadd.f32 %v777, %v1058
        %s1081 = scalar_lea.vmem %s1, 256
        %v1082 = vld [vmem:[%s1081] sm:$0xff]
        %v1083 = vld [vmem:[%s1081 + $0x8] sm:$0xff]
        %v1084 = vld [vmem:[%s1081 + $0x10] sm:$0xff]
        %v1085 = vld [vmem:[%s1081 + $0x18] sm:$0xff]
        %v1086 = vld [vmem:[%s1081 + $0x20] sm:$0xff]
        %v1087 = vld [vmem:[%s1081 + $0x28] sm:$0xff]
        %v1088 = vld [vmem:[%s1081 + $0x30] sm:$0xff]
        %v1089 = vld [vmem:[%s1081 + $0x38] sm:$0xff]
        %v1090 = vld [vmem:[%s1081 + $0x40] sm:$0xff]
        %v1091 = vld [vmem:[%s1081 + $0x48] sm:$0xff]
        %v1092 = vld [vmem:[%s1081 + $0x50] sm:$0xff]
        %v1093 = vld [vmem:[%s1081 + $0x58] sm:$0xff]
        %v1094 = vld [vmem:[%s1081 + $0x60] sm:$0xff]
        %v1095 = vld [vmem:[%s1081 + $0x68] sm:$0xff]
        %v1096 = vld [vmem:[%s1081 + $0x70] sm:$0xff]
        %v1097 = vld [vmem:[%s1081 + $0x78] sm:$0xff]
        %vm1098 = vcmask 1045504
        %v1099 = vrot.slane %v534, 2
        %v1100 = vrot.slane %v535, 2
        %v1101 = vsel %vm1098, %v1099, %v1100
        %v1102 = vrot.slane %v536, 2
        %v1103 = vsel %vm1098, %v1100, %v1102
        %v1104 = vrot.slane %v537, 2
        %v1105 = vrot.slane %v538, 2
        %v1106 = vsel %vm1098, %v1104, %v1105
        %v1107 = vrot.slane %v539, 2
        %v1108 = vsel %vm1098, %v1105, %v1107
        %v1109 = vrot.slane %v540, 2
        %v1110 = vrot.slane %v541, 2
        %v1111 = vsel %vm1098, %v1109, %v1110
        %v1112 = vrot.slane %v542, 2
        %v1113 = vsel %vm1098, %v1110, %v1112
        %v1114 = vrot.slane %v543, 2
        %v1115 = vrot.slane %v544, 2
        %v1116 = vsel %vm1098, %v1114, %v1115
        %v1117 = vrot.slane %v545, 2
        %v1118 = vsel %vm1098, %v1115, %v1117
        %v1119 = vrot.slane %v546, 2
        %v1120 = vrot.slane %v547, 2
        %v1121 = vsel %vm1098, %v1119, %v1120
        %v1122 = vrot.slane %v548, 2
        %v1123 = vsel %vm1098, %v1120, %v1122
        %v1124 = vrot.slane %v549, 2
        %v1125 = vrot.slane %v550, 2
        %v1126 = vsel %vm1098, %v1124, %v1125
        %v1127 = vrot.slane %v551, 2
        %v1128 = vsel %vm1098, %v1125, %v1127
        %v1129 = vrot.slane %v552, 2
        %v1130 = vrot.slane %v553, 2
        %v1131 = vsel %vm1098, %v1129, %v1130
        %v1132 = vrot.slane %v554, 2
        %v1133 = vsel %vm1098, %v1130, %v1132
        %v1134 = vrot.slane %v555, 2
        %v1135 = vrot.slane %v556, 2
        %v1136 = vsel %vm1098, %v1134, %v1135
        %v1137 = vrot.slane %v557, 2
        %v1138 = vsel %vm1098, %v1135, %v1137
        %v1139 = vrot.slane %v558, 2
        %v1140 = vrot.slane %v559, 2
        %v1141 = vsel %vm1098, %v1139, %v1140
        %v1142 = vrot.slane %v560, 2
        %v1143 = vsel %vm1098, %v1140, %v1142
        %v1144 = vrot.slane %v561, 2
        %v1145 = vrot.slane %v562, 2
        %v1146 = vsel %vm1098, %v1144, %v1145
        %v1147 = vrot.slane %v563, 2
        %v1148 = vsel %vm1098, %v1145, %v1147
        %1169 = vmatprep.subr.mxu0 0.0
        %1170 = vmatpush1.msra.mxu0 %v1082
        %1171 = vmatprep.subr.mxu0 0.0
        %1172 = vmatpush1.msra.mxu0 %v1083
        %1173 = vmatprep.subr.mxu0 0.0
        %1174 = vmatpush1.msra.mxu0 %v1084
        %1175 = vmatprep.subr.mxu0 0.0
        %1176 = vmatpush1.msra.mxu0 %v1085
        %1177 = vmatprep.subr.mxu0 0.0
        %1178 = vmatpush1.msra.mxu0 %v1086
        %1179 = vmatprep.subr.mxu0 0.0
        %1180 = vmatpush1.msra.mxu0 %v1087
        %1181 = vmatprep.subr.mxu0 0.0
        %1182 = vmatpush1.msra.mxu0 %v1088
        %1183 = vmatprep.subr.mxu0 0.0
        %1184 = vmatpush1.msra.mxu0 %v1089
        %1185 = vmatprep.subr.mxu0 0.0
        %1186 = vmatpush1.msra.mxu0 %v1090
        %1187 = vmatprep.subr.mxu0 0.0
        %1188 = vmatpush1.msra.mxu0 %v1091
        %1189 = vmatprep.subr.mxu0 0.0
        %1190 = vmatpush1.msra.mxu0 %v1092
        %1191 = vmatprep.subr.mxu0 0.0
        %1192 = vmatpush1.msra.mxu0 %v1093
        %1193 = vmatprep.subr.mxu0 0.0
        %1194 = vmatpush1.msra.mxu0 %v1094
        %1195 = vmatprep.subr.mxu0 0.0
        %1196 = vmatpush1.msra.mxu0 %v1095
        %1197 = vmatprep.subr.mxu0 0.0
        %1198 = vmatpush1.msra.mxu0 %v1096
        %1199 = vmatprep.subr.mxu0 0.0
        %1200 = vmatpush1.msra.mxu0 %v1097
        %1201 = vmatprep.subr.mxu0 0.0
        %1202 = vmatpush1.msra.mxu0 0.0
        %1203 = vmatprep.subr.mxu0 0.0
        %1204 = vmatpush1.msra.mxu0 0.0
        %1205 = vmatprep.subr.mxu0 0.0
        %1206 = vmatpush1.msra.mxu0 0.0
        %1207 = vmatprep.subr.mxu0 0.0
        %1208 = vmatpush1.msra.mxu0 0.0
        %1209 = vmatprep.subr.mxu0 0.0
        %1210 = vmatpush1.msra.mxu0 0.0
        %1211 = vmatprep.subr.mxu0 0.0
        %1212 = vmatpush1.msra.mxu0 0.0
        %1213 = vmatprep.subr.mxu0 0.0
        %1214 = vmatpush1.msra.mxu0 0.0
        %1215 = vmatprep.subr.mxu0 0.0
        %1216 = vmatpush1.msra.mxu0 0.0
        %1217 = vmatprep.subr.mxu0 0.0
        %1218 = vmatpush1.msra.mxu0 0.0
        %1219 = vmatprep.subr.mxu0 0.0
        %1220 = vmatpush1.msra.mxu0 0.0
        %1221 = vmatprep.subr.mxu0 0.0
        %1222 = vmatpush1.msra.mxu0 0.0
        %1223 = vmatprep.subr.mxu0 0.0
        %1224 = vmatpush1.msra.mxu0 0.0
        %1225 = vmatprep.subr.mxu0 0.0
        %1226 = vmatpush1.msra.mxu0 0.0
        %1227 = vmatprep.subr.mxu0 0.0
        %1228 = vmatpush1.msra.mxu0 0.0
        %1229 = vmatprep.subr.mxu0 0.0
        %1230 = vmatpush1.msra.mxu0 0.0
        %1231 = vmatprep.subr.mxu0 0.0
        %1232 = vmatpush1.msra.mxu0 0.0
        %1233 = vmatprep.mubr.f32.mxu0 0.0
        %1234 = vmatmul.mubr.f32.gmra.mrb[0].mxu0 %v1101
        %v1235 = vpop.f32.mrb[0].mxu0
        %v1236 = vadd.f32 0.0, %v1235
        %v1237 = vpop.f32.mrb[0].mxu0
        %1238 = vmatprep.mubr.f32.mxu0 0.0
        %1239 = vmatmul.mubr.f32.gmra.mrb[0].mxu0 %v1103
        %v1240 = vpop.f32.mrb[0].mxu0
        %v1241 = vadd.f32 0.0, %v1240
        %v1242 = vpop.f32.mrb[0].mxu0
        %1243 = vmatprep.mubr.f32.mxu0 0.0
        %1244 = vmatmul.mubr.f32.gmra.mrb[0].mxu0 %v1106
        %v1245 = vpop.f32.mrb[0].mxu0
        %v1246 = vadd.f32 0.0, %v1245
        %v1247 = vpop.f32.mrb[0].mxu0
        %1248 = vmatprep.mubr.f32.mxu0 0.0
        %1249 = vmatmul.mubr.f32.gmra.mrb[0].mxu0 %v1108
        %v1250 = vpop.f32.mrb[0].mxu0
        %v1251 = vadd.f32 0.0, %v1250
        %v1252 = vpop.f32.mrb[0].mxu0
        %1253 = vmatprep.mubr.f32.mxu0 0.0
        %1254 = vmatmul.mubr.f32.gmra.mrb[0].mxu0 %v1111
        %v1255 = vpop.f32.mrb[0].mxu0
        %v1256 = vadd.f32 0.0, %v1255
        %v1257 = vpop.f32.mrb[0].mxu0
        %1258 = vmatprep.mubr.f32.mxu0 0.0
        %1259 = vmatmul.mubr.f32.gmra.mrb[0].mxu0 %v1113
        %v1260 = vpop.f32.mrb[0].mxu0
        %v1261 = vadd.f32 0.0, %v1260
        %v1262 = vpop.f32.mrb[0].mxu0
        %1263 = vmatprep.mubr.f32.mxu0 0.0
        %1264 = vmatmul.mubr.f32.gmra.mrb[0].mxu0 %v1116
        %v1265 = vpop.f32.mrb[0].mxu0
        %v1266 = vadd.f32 0.0, %v1265
        %v1267 = vpop.f32.mrb[0].mxu0
        %1268 = vmatprep.mubr.f32.mxu0 0.0
        %1269 = vmatmul.mubr.f32.gmra.mrb[0].mxu0 %v1118
        %v1270 = vpop.f32.mrb[0].mxu0
        %v1271 = vadd.f32 0.0, %v1270
        %v1272 = vpop.f32.mrb[0].mxu0
        %1273 = vmatprep.mubr.f32.mxu0 0.0
        %1274 = vmatmul.mubr.f32.gmra.mrb[0].mxu0 %v1121
        %v1275 = vpop.f32.mrb[0].mxu0
        %v1276 = vadd.f32 0.0, %v1275
        %v1277 = vpop.f32.mrb[0].mxu0
        %1278 = vmatprep.mubr.f32.mxu0 0.0
        %1279 = vmatmul.mubr.f32.gmra.mrb[0].mxu0 %v1123
        %v1280 = vpop.f32.mrb[0].mxu0
        %v1281 = vadd.f32 0.0, %v1280
        %v1282 = vpop.f32.mrb[0].mxu0
        %1283 = vmatprep.mubr.f32.mxu0 0.0
        %1284 = vmatmul.mubr.f32.gmra.mrb[0].mxu0 %v1126
        %v1285 = vpop.f32.mrb[0].mxu0
        %v1286 = vadd.f32 0.0, %v1285
        %v1287 = vpop.f32.mrb[0].mxu0
        %1288 = vmatprep.mubr.f32.mxu0 0.0
        %1289 = vmatmul.mubr.f32.gmra.mrb[0].mxu0 %v1128
        %v1290 = vpop.f32.mrb[0].mxu0
        %v1291 = vadd.f32 0.0, %v1290
        %v1292 = vpop.f32.mrb[0].mxu0
        %1293 = vmatprep.mubr.f32.mxu0 0.0
        %1294 = vmatmul.mubr.f32.gmra.mrb[0].mxu0 %v1131
        %v1295 = vpop.f32.mrb[0].mxu0
        %v1296 = vadd.f32 0.0, %v1295
        %v1297 = vpop.f32.mrb[0].mxu0
        %1298 = vmatprep.mubr.f32.mxu0 0.0
        %1299 = vmatmul.mubr.f32.gmra.mrb[0].mxu0 %v1133
        %v1300 = vpop.f32.mrb[0].mxu0
        %v1301 = vadd.f32 0.0, %v1300
        %v1302 = vpop.f32.mrb[0].mxu0
        %1303 = vmatprep.mubr.f32.mxu0 0.0
        %1304 = vmatmul.mubr.f32.gmra.mrb[0].mxu0 %v1136
        %v1305 = vpop.f32.mrb[0].mxu0
        %v1306 = vadd.f32 0.0, %v1305
        %v1307 = vpop.f32.mrb[0].mxu0
        %1308 = vmatprep.mubr.f32.mxu0 0.0
        %1309 = vmatmul.mubr.f32.gmra.mrb[0].mxu0 %v1138
        %v1310 = vpop.f32.mrb[0].mxu0
        %v1311 = vadd.f32 0.0, %v1310
        %v1312 = vpop.f32.mrb[0].mxu0
        %1313 = vmatprep.mubr.f32.mxu0 0.0
        %1314 = vmatmul.mubr.f32.gmra.mrb[0].mxu0 %v1141
        %v1315 = vpop.f32.mrb[0].mxu0
        %v1316 = vadd.f32 0.0, %v1315
        %v1317 = vpop.f32.mrb[0].mxu0
        %1318 = vmatprep.mubr.f32.mxu0 0.0
        %1319 = vmatmul.mubr.f32.gmra.mrb[0].mxu0 %v1143
        %v1320 = vpop.f32.mrb[0].mxu0
        %v1321 = vadd.f32 0.0, %v1320
        %v1322 = vpop.f32.mrb[0].mxu0
        %1323 = vmatprep.mubr.f32.mxu0 0.0
        %1324 = vmatmul.mubr.f32.gmra.mrb[0].mxu0 %v1146
        %v1325 = vpop.f32.mrb[0].mxu0
        %v1326 = vadd.f32 0.0, %v1325
        %v1327 = vpop.f32.mrb[0].mxu0
        %1328 = vmatprep.mubr.f32.mxu0 0.0
        %1329 = vmatmul.mubr.f32.gmra.mrb[0].mxu0 %v1148
        %v1330 = vpop.f32.mrb[0].mxu0
        %v1331 = vadd.f32 0.0, %v1330
        %v1332 = vpop.f32.mrb[0].mxu0
        %1333 = vdwg.mxu0
        %v1334 = vadd.f32 %v1061, %v1236
        %v1335 = vadd.f32 %v1062, %v1241
        %v1336 = vadd.f32 %v1063, %v1246
        %v1337 = vadd.f32 %v1064, %v1251
        %v1338 = vadd.f32 %v1065, %v1256
        %v1339 = vadd.f32 %v1066, %v1261
        %v1340 = vadd.f32 %v1067, %v1266
        %v1341 = vadd.f32 %v1068, %v1271
        %v1342 = vadd.f32 %v1069, %v1276
        %v1343 = vadd.f32 %v1070, %v1281
        %v1344 = vadd.f32 %v1071, %v1286
        %v1345 = vadd.f32 %v1072, %v1291
        %v1346 = vadd.f32 %v1073, %v1296
        %v1347 = vadd.f32 %v1074, %v1301
        %v1348 = vadd.f32 %v1075, %v1306
        %v1349 = vadd.f32 %v1076, %v1311
        %v1350 = vadd.f32 %v1077, %v1316
        %v1351 = vadd.f32 %v1078, %v1321
        %v1352 = vadd.f32 %v1079, %v1326
        %v1353 = vadd.f32 %v1080, %v1331
        %s1354 = scalar_lea.vmem %s1, 384
        %v1355 = vld [vmem:[%s1354] sm:$0xff]
        %v1356 = vld [vmem:[%s1354 + $0x8] sm:$0xff]
        %v1357 = vld [vmem:[%s1354 + $0x10] sm:$0xff]
        %v1358 = vld [vmem:[%s1354 + $0x18] sm:$0xff]
        %v1359 = vld [vmem:[%s1354 + $0x20] sm:$0xff]
        %v1360 = vld [vmem:[%s1354 + $0x28] sm:$0xff]
        %v1361 = vld [vmem:[%s1354 + $0x30] sm:$0xff]
        %v1362 = vld [vmem:[%s1354 + $0x38] sm:$0xff]
        %v1363 = vld [vmem:[%s1354 + $0x40] sm:$0xff]
        %v1364 = vld [vmem:[%s1354 + $0x48] sm:$0xff]
        %v1365 = vld [vmem:[%s1354 + $0x50] sm:$0xff]
        %v1366 = vld [vmem:[%s1354 + $0x58] sm:$0xff]
        %v1367 = vld [vmem:[%s1354 + $0x60] sm:$0xff]
        %v1368 = vld [vmem:[%s1354 + $0x68] sm:$0xff]
        %v1369 = vld [vmem:[%s1354 + $0x70] sm:$0xff]
        %v1370 = vld [vmem:[%s1354 + $0x78] sm:$0xff]
        %1371 = vmatprep.subr.mxu0 0.0
        %1372 = vmatpush1.msra.mxu0 %v1355
        %1373 = vmatprep.subr.mxu0 0.0
        %1374 = vmatpush1.msra.mxu0 %v1356
        %1375 = vmatprep.subr.mxu0 0.0
        %1376 = vmatpush1.msra.mxu0 %v1357
        %1377 = vmatprep.subr.mxu0 0.0
        %1378 = vmatpush1.msra.mxu0 %v1358
        %1379 = vmatprep.subr.mxu0 0.0
        %1380 = vmatpush1.msra.mxu0 %v1359
        %1381 = vmatprep.subr.mxu0 0.0
        %1382 = vmatpush1.msra.mxu0 %v1360
        %1383 = vmatprep.subr.mxu0 0.0
        %1384 = vmatpush1.msra.mxu0 %v1361
        %1385 = vmatprep.subr.mxu0 0.0
        %1386 = vmatpush1.msra.mxu0 %v1362
        %1387 = vmatprep.subr.mxu0 0.0
        %1388 = vmatpush1.msra.mxu0 %v1363
        %1389 = vmatprep.subr.mxu0 0.0
        %1390 = vmatpush1.msra.mxu0 %v1364
        %1391 = vmatprep.subr.mxu0 0.0
        %1392 = vmatpush1.msra.mxu0 %v1365
        %1393 = vmatprep.subr.mxu0 0.0
        %1394 = vmatpush1.msra.mxu0 %v1366
        %1395 = vmatprep.subr.mxu0 0.0
        %1396 = vmatpush1.msra.mxu0 %v1367
        %1397 = vmatprep.subr.mxu0 0.0
        %1398 = vmatpush1.msra.mxu0 %v1368
        %1399 = vmatprep.subr.mxu0 0.0
        %1400 = vmatpush1.msra.mxu0 %v1369
        %1401 = vmatprep.subr.mxu0 0.0
        %1402 = vmatpush1.msra.mxu0 %v1370
        %1403 = vmatprep.subr.mxu0 0.0
        %1404 = vmatpush1.msra.mxu0 0.0
        %1405 = vmatprep.subr.mxu0 0.0
        %1406 = vmatpush1.msra.mxu0 0.0
        %1407 = vmatprep.subr.mxu0 0.0
        %1408 = vmatpush1.msra.mxu0 0.0
        %1409 = vmatprep.subr.mxu0 0.0
        %1410 = vmatpush1.msra.mxu0 0.0
        %1411 = vmatprep.subr.mxu0 0.0
        %1412 = vmatpush1.msra.mxu0 0.0
        %1413 = vmatprep.subr.mxu0 0.0
        %1414 = vmatpush1.msra.mxu0 0.0
        %1415 = vmatprep.subr.mxu0 0.0
        %1416 = vmatpush1.msra.mxu0 0.0
        %1417 = vmatprep.subr.mxu0 0.0
        %1418 = vmatpush1.msra.mxu0 0.0
        %1419 = vmatprep.subr.mxu0 0.0
        %1420 = vmatpush1.msra.mxu0 0.0
        %1421 = vmatprep.subr.mxu0 0.0
        %1422 = vmatpush1.msra.mxu0 0.0
        %1423 = vmatprep.subr.mxu0 0.0
        %1424 = vmatpush1.msra.mxu0 0.0
        %1425 = vmatprep.subr.mxu0 0.0
        %1426 = vmatpush1.msra.mxu0 0.0
        %1427 = vmatprep.subr.mxu0 0.0
        %1428 = vmatpush1.msra.mxu0 0.0
        %1429 = vmatprep.subr.mxu0 0.0
        %1430 = vmatpush1.msra.mxu0 0.0
        %1431 = vmatprep.subr.mxu0 0.0
        %1432 = vmatpush1.msra.mxu0 0.0
        %1433 = vmatprep.subr.mxu0 0.0
        %1434 = vmatpush1.msra.mxu0 0.0
        %1435 = vmatprep.mubr.f32.mxu0 0.0
        %1436 = vmatmul.mubr.f32.gmra.mrb[0].mxu0 %v537
        %v1437 = vpop.f32.mrb[0].mxu0
        %v1438 = vadd.f32 0.0, %v1437
        %v1439 = vpop.f32.mrb[0].mxu0
        %1440 = vmatprep.mubr.f32.mxu0 0.0
        %1441 = vmatmul.mubr.f32.gmra.mrb[0].mxu0 %v538
        %v1442 = vpop.f32.mrb[0].mxu0
        %v1443 = vadd.f32 0.0, %v1442
        %v1444 = vpop.f32.mrb[0].mxu0
        %1445 = vmatprep.mubr.f32.mxu0 0.0
        %1446 = vmatmul.mubr.f32.gmra.mrb[0].mxu0 %v540
        %v1447 = vpop.f32.mrb[0].mxu0
        %v1448 = vadd.f32 0.0, %v1447
        %v1449 = vpop.f32.mrb[0].mxu0
        %1450 = vmatprep.mubr.f32.mxu0 0.0
        %1451 = vmatmul.mubr.f32.gmra.mrb[0].mxu0 %v541
        %v1452 = vpop.f32.mrb[0].mxu0
        %v1453 = vadd.f32 0.0, %v1452
        %v1454 = vpop.f32.mrb[0].mxu0
        %1455 = vmatprep.mubr.f32.mxu0 0.0
        %1456 = vmatmul.mubr.f32.gmra.mrb[0].mxu0 %v543
        %v1457 = vpop.f32.mrb[0].mxu0
        %v1458 = vadd.f32 0.0, %v1457
        %v1459 = vpop.f32.mrb[0].mxu0
        %1460 = vmatprep.mubr.f32.mxu0 0.0
        %1461 = vmatmul.mubr.f32.gmra.mrb[0].mxu0 %v544
        %v1462 = vpop.f32.mrb[0].mxu0
        %v1463 = vadd.f32 0.0, %v1462
        %v1464 = vpop.f32.mrb[0].mxu0
        %1465 = vmatprep.mubr.f32.mxu0 0.0
        %1466 = vmatmul.mubr.f32.gmra.mrb[0].mxu0 %v546
        %v1467 = vpop.f32.mrb[0].mxu0
        %v1468 = vadd.f32 0.0, %v1467
        %v1469 = vpop.f32.mrb[0].mxu0
        %1470 = vmatprep.mubr.f32.mxu0 0.0
        %1471 = vmatmul.mubr.f32.gmra.mrb[0].mxu0 %v547
        %v1472 = vpop.f32.mrb[0].mxu0
        %v1473 = vadd.f32 0.0, %v1472
        %v1474 = vpop.f32.mrb[0].mxu0
        %1475 = vmatprep.mubr.f32.mxu0 0.0
        %1476 = vmatmul.mubr.f32.gmra.mrb[0].mxu0 %v549
        %v1477 = vpop.f32.mrb[0].mxu0
        %v1478 = vadd.f32 0.0, %v1477
        %v1479 = vpop.f32.mrb[0].mxu0
        %1480 = vmatprep.mubr.f32.mxu0 0.0
        %1481 = vmatmul.mubr.f32.gmra.mrb[0].mxu0 %v550
        %v1482 = vpop.f32.mrb[0].mxu0
        %v1483 = vadd.f32 0.0, %v1482
        %v1484 = vpop.f32.mrb[0].mxu0
        %1485 = vmatprep.mubr.f32.mxu0 0.0
        %1486 = vmatmul.mubr.f32.gmra.mrb[0].mxu0 %v552
        %v1487 = vpop.f32.mrb[0].mxu0
        %v1488 = vadd.f32 0.0, %v1487
        %v1489 = vpop.f32.mrb[0].mxu0
        %1490 = vmatprep.mubr.f32.mxu0 0.0
        %1491 = vmatmul.mubr.f32.gmra.mrb[0].mxu0 %v553
        %v1492 = vpop.f32.mrb[0].mxu0
        %v1493 = vadd.f32 0.0, %v1492
        %v1494 = vpop.f32.mrb[0].mxu0
        %1495 = vmatprep.mubr.f32.mxu0 0.0
        %1496 = vmatmul.mubr.f32.gmra.mrb[0].mxu0 %v555
        %v1497 = vpop.f32.mrb[0].mxu0
        %v1498 = vadd.f32 0.0, %v1497
        %v1499 = vpop.f32.mrb[0].mxu0
        %1500 = vmatprep.mubr.f32.mxu0 0.0
        %1501 = vmatmul.mubr.f32.gmra.mrb[0].mxu0 %v556
        %v1502 = vpop.f32.mrb[0].mxu0
        %v1503 = vadd.f32 0.0, %v1502
        %v1504 = vpop.f32.mrb[0].mxu0
        %1505 = vmatprep.mubr.f32.mxu0 0.0
        %1506 = vmatmul.mubr.f32.gmra.mrb[0].mxu0 %v558
        %v1507 = vpop.f32.mrb[0].mxu0
        %v1508 = vadd.f32 0.0, %v1507
        %v1509 = vpop.f32.mrb[0].mxu0
        %1510 = vmatprep.mubr.f32.mxu0 0.0
        %1511 = vmatmul.mubr.f32.gmra.mrb[0].mxu0 %v559
        %v1512 = vpop.f32.mrb[0].mxu0
        %v1513 = vadd.f32 0.0, %v1512
        %v1514 = vpop.f32.mrb[0].mxu0
        %1515 = vmatprep.mubr.f32.mxu0 0.0
        %1516 = vmatmul.mubr.f32.gmra.mrb[0].mxu0 %v561
        %v1517 = vpop.f32.mrb[0].mxu0
        %v1518 = vadd.f32 0.0, %v1517
        %v1519 = vpop.f32.mrb[0].mxu0
        %1520 = vmatprep.mubr.f32.mxu0 0.0
        %1521 = vmatmul.mubr.f32.gmra.mrb[0].mxu0 %v562
        %v1522 = vpop.f32.mrb[0].mxu0
        %v1523 = vadd.f32 0.0, %v1522
        %v1524 = vpop.f32.mrb[0].mxu0
        %1525 = vmatprep.mubr.f32.mxu0 0.0
        %1526 = vmatmul.mubr.f32.gmra.mrb[0].mxu0 %v564
        %v1527 = vpop.f32.mrb[0].mxu0
        %v1528 = vadd.f32 0.0, %v1527
        %v1529 = vpop.f32.mrb[0].mxu0
        %1530 = vmatprep.mubr.f32.mxu0 0.0
        %1531 = vmatmul.mubr.f32.gmra.mrb[0].mxu0 %v565
        %v1532 = vpop.f32.mrb[0].mxu0
        %v1533 = vadd.f32 0.0, %v1532
        %v1534 = vpop.f32.mrb[0].mxu0
        %1535 = vdwg.mxu0
        %v1536 = vadd.f32 %v1334, %v1438
        %v1537 = vadd.f32 %v1335, %v1443
        %v1538 = vadd.f32 %v1336, %v1448
        %v1539 = vadd.f32 %v1337, %v1453
        %v1540 = vadd.f32 %v1338, %v1458
        %v1541 = vadd.f32 %v1339, %v1463
        %v1542 = vadd.f32 %v1340, %v1468
        %v1543 = vadd.f32 %v1341, %v1473
        %v1544 = vadd.f32 %v1342, %v1478
        %v1545 = vadd.f32 %v1343, %v1483
        %v1546 = vadd.f32 %v1344, %v1488
        %v1547 = vadd.f32 %v1345, %v1493
        %v1548 = vadd.f32 %v1346, %v1498
        %v1549 = vadd.f32 %v1347, %v1503
        %v1550 = vadd.f32 %v1348, %v1508
        %v1551 = vadd.f32 %v1349, %v1513
        %v1552 = vadd.f32 %v1350, %v1518
        %v1553 = vadd.f32 %v1351, %v1523
        %v1554 = vadd.f32 %v1352, %v1528
        %v1555 = vadd.f32 %v1353, %v1533
        %s1556 = scalar_lea.vmem %s1, 512
        %v1557 = vld [vmem:[%s1556] sm:$0xff]
        %v1558 = vld [vmem:[%s1556 + $0x8] sm:$0xff]
        %v1559 = vld [vmem:[%s1556 + $0x10] sm:$0xff]
        %v1560 = vld [vmem:[%s1556 + $0x18] sm:$0xff]
        %v1561 = vld [vmem:[%s1556 + $0x20] sm:$0xff]
        %v1562 = vld [vmem:[%s1556 + $0x28] sm:$0xff]
        %v1563 = vld [vmem:[%s1556 + $0x30] sm:$0xff]
        %v1564 = vld [vmem:[%s1556 + $0x38] sm:$0xff]
        %v1565 = vld [vmem:[%s1556 + $0x40] sm:$0xff]
        %v1566 = vld [vmem:[%s1556 + $0x48] sm:$0xff]
        %v1567 = vld [vmem:[%s1556 + $0x50] sm:$0xff]
        %v1568 = vld [vmem:[%s1556 + $0x58] sm:$0xff]
        %v1569 = vld [vmem:[%s1556 + $0x60] sm:$0xff]
        %v1570 = vld [vmem:[%s1556 + $0x68] sm:$0xff]
        %v1571 = vld [vmem:[%s1556 + $0x70] sm:$0xff]
        %v1572 = vld [vmem:[%s1556 + $0x78] sm:$0xff]
        %v1576 = vrot.slane %v564, 1
        %v1577 = vrot.slane %v565, 1
        %v1578 = vsel %vm825, %v1576, %v1577
        %v1579 = vrot.slane %v566, 1
        %v1580 = vsel %vm825, %v1577, %v1579
        %1583 = vmatprep.subr.mxu0 0.0
        %1584 = vmatpush1.msra.mxu0 %v1557
        %1585 = vmatprep.subr.mxu0 0.0
        %1586 = vmatpush1.msra.mxu0 %v1558
        %1587 = vmatprep.subr.mxu0 0.0
        %1588 = vmatpush1.msra.mxu0 %v1559
        %1589 = vmatprep.subr.mxu0 0.0
        %1590 = vmatpush1.msra.mxu0 %v1560
        %1591 = vmatprep.subr.mxu0 0.0
        %1592 = vmatpush1.msra.mxu0 %v1561
        %1593 = vmatprep.subr.mxu0 0.0
        %1594 = vmatpush1.msra.mxu0 %v1562
        %1595 = vmatprep.subr.mxu0 0.0
        %1596 = vmatpush1.msra.mxu0 %v1563
        %1597 = vmatprep.subr.mxu0 0.0
        %1598 = vmatpush1.msra.mxu0 %v1564
        %1599 = vmatprep.subr.mxu0 0.0
        %1600 = vmatpush1.msra.mxu0 %v1565
        %1601 = vmatprep.subr.mxu0 0.0
        %1602 = vmatpush1.msra.mxu0 %v1566
        %1603 = vmatprep.subr.mxu0 0.0
        %1604 = vmatpush1.msra.mxu0 %v1567
        %1605 = vmatprep.subr.mxu0 0.0
        %1606 = vmatpush1.msra.mxu0 %v1568
        %1607 = vmatprep.subr.mxu0 0.0
        %1608 = vmatpush1.msra.mxu0 %v1569
        %1609 = vmatprep.subr.mxu0 0.0
        %1610 = vmatpush1.msra.mxu0 %v1570
        %1611 = vmatprep.subr.mxu0 0.0
        %1612 = vmatpush1.msra.mxu0 %v1571
        %1613 = vmatprep.subr.mxu0 0.0
        %1614 = vmatpush1.msra.mxu0 %v1572
        %1615 = vmatprep.subr.mxu0 0.0
        %1616 = vmatpush1.msra.mxu0 0.0
        %1617 = vmatprep.subr.mxu0 0.0
        %1618 = vmatpush1.msra.mxu0 0.0
        %1619 = vmatprep.subr.mxu0 0.0
        %1620 = vmatpush1.msra.mxu0 0.0
        %1621 = vmatprep.subr.mxu0 0.0
        %1622 = vmatpush1.msra.mxu0 0.0
        %1623 = vmatprep.subr.mxu0 0.0
        %1624 = vmatpush1.msra.mxu0 0.0
        %1625 = vmatprep.subr.mxu0 0.0
        %1626 = vmatpush1.msra.mxu0 0.0
        %1627 = vmatprep.subr.mxu0 0.0
        %1628 = vmatpush1.msra.mxu0 0.0
        %1629 = vmatprep.subr.mxu0 0.0
        %1630 = vmatpush1.msra.mxu0 0.0
        %1631 = vmatprep.subr.mxu0 0.0
        %1632 = vmatpush1.msra.mxu0 0.0
        %1633 = vmatprep.subr.mxu0 0.0
        %1634 = vmatpush1.msra.mxu0 0.0
        %1635 = vmatprep.subr.mxu0 0.0
        %1636 = vmatpush1.msra.mxu0 0.0
        %1637 = vmatprep.subr.mxu0 0.0
        %1638 = vmatpush1.msra.mxu0 0.0
        %1639 = vmatprep.subr.mxu0 0.0
        %1640 = vmatpush1.msra.mxu0 0.0
        %1641 = vmatprep.subr.mxu0 0.0
        %1642 = vmatpush1.msra.mxu0 0.0
        %1643 = vmatprep.subr.mxu0 0.0
        %1644 = vmatpush1.msra.mxu0 0.0
        %1645 = vmatprep.subr.mxu0 0.0
        %1646 = vmatpush1.msra.mxu0 0.0
        %1647 = vmatprep.mubr.f32.mxu0 0.0
        %1648 = vmatmul.mubr.f32.gmra.mrb[0].mxu0 %v833
        %v1649 = vpop.f32.mrb[0].mxu0
        %v1650 = vadd.f32 0.0, %v1649
        %v1651 = vpop.f32.mrb[0].mxu0
        %1652 = vmatprep.mubr.f32.mxu0 0.0
        %1653 = vmatmul.mubr.f32.gmra.mrb[0].mxu0 %v835
        %v1654 = vpop.f32.mrb[0].mxu0
        %v1655 = vadd.f32 0.0, %v1654
        %v1656 = vpop.f32.mrb[0].mxu0
        %1657 = vmatprep.mubr.f32.mxu0 0.0
        %1658 = vmatmul.mubr.f32.gmra.mrb[0].mxu0 %v838
        %v1659 = vpop.f32.mrb[0].mxu0
        %v1660 = vadd.f32 0.0, %v1659
        %v1661 = vpop.f32.mrb[0].mxu0
        %1662 = vmatprep.mubr.f32.mxu0 0.0
        %1663 = vmatmul.mubr.f32.gmra.mrb[0].mxu0 %v840
        %v1664 = vpop.f32.mrb[0].mxu0
        %v1665 = vadd.f32 0.0, %v1664
        %v1666 = vpop.f32.mrb[0].mxu0
        %1667 = vmatprep.mubr.f32.mxu0 0.0
        %1668 = vmatmul.mubr.f32.gmra.mrb[0].mxu0 %v843
        %v1669 = vpop.f32.mrb[0].mxu0
        %v1670 = vadd.f32 0.0, %v1669
        %v1671 = vpop.f32.mrb[0].mxu0
        %1672 = vmatprep.mubr.f32.mxu0 0.0
        %1673 = vmatmul.mubr.f32.gmra.mrb[0].mxu0 %v845
        %v1674 = vpop.f32.mrb[0].mxu0
        %v1675 = vadd.f32 0.0, %v1674
        %v1676 = vpop.f32.mrb[0].mxu0
        %1677 = vmatprep.mubr.f32.mxu0 0.0
        %1678 = vmatmul.mubr.f32.gmra.mrb[0].mxu0 %v848
        %v1679 = vpop.f32.mrb[0].mxu0
        %v1680 = vadd.f32 0.0, %v1679
        %v1681 = vpop.f32.mrb[0].mxu0
        %1682 = vmatprep.mubr.f32.mxu0 0.0
        %1683 = vmatmul.mubr.f32.gmra.mrb[0].mxu0 %v850
        %v1684 = vpop.f32.mrb[0].mxu0
        %v1685 = vadd.f32 0.0, %v1684
        %v1686 = vpop.f32.mrb[0].mxu0
        %1687 = vmatprep.mubr.f32.mxu0 0.0
        %1688 = vmatmul.mubr.f32.gmra.mrb[0].mxu0 %v853
        %v1689 = vpop.f32.mrb[0].mxu0
        %v1690 = vadd.f32 0.0, %v1689
        %v1691 = vpop.f32.mrb[0].mxu0
        %1692 = vmatprep.mubr.f32.mxu0 0.0
        %1693 = vmatmul.mubr.f32.gmra.mrb[0].mxu0 %v855
        %v1694 = vpop.f32.mrb[0].mxu0
        %v1695 = vadd.f32 0.0, %v1694
        %v1696 = vpop.f32.mrb[0].mxu0
        %1697 = vmatprep.mubr.f32.mxu0 0.0
        %1698 = vmatmul.mubr.f32.gmra.mrb[0].mxu0 %v858
        %v1699 = vpop.f32.mrb[0].mxu0
        %v1700 = vadd.f32 0.0, %v1699
        %v1701 = vpop.f32.mrb[0].mxu0
        %1702 = vmatprep.mubr.f32.mxu0 0.0
        %1703 = vmatmul.mubr.f32.gmra.mrb[0].mxu0 %v860
        %v1704 = vpop.f32.mrb[0].mxu0
        %v1705 = vadd.f32 0.0, %v1704
        %v1706 = vpop.f32.mrb[0].mxu0
        %1707 = vmatprep.mubr.f32.mxu0 0.0
        %1708 = vmatmul.mubr.f32.gmra.mrb[0].mxu0 %v863
        %v1709 = vpop.f32.mrb[0].mxu0
        %v1710 = vadd.f32 0.0, %v1709
        %v1711 = vpop.f32.mrb[0].mxu0
        %1712 = vmatprep.mubr.f32.mxu0 0.0
        %1713 = vmatmul.mubr.f32.gmra.mrb[0].mxu0 %v865
        %v1714 = vpop.f32.mrb[0].mxu0
        %v1715 = vadd.f32 0.0, %v1714
        %v1716 = vpop.f32.mrb[0].mxu0
        %1717 = vmatprep.mubr.f32.mxu0 0.0
        %1718 = vmatmul.mubr.f32.gmra.mrb[0].mxu0 %v868
        %v1719 = vpop.f32.mrb[0].mxu0
        %v1720 = vadd.f32 0.0, %v1719
        %v1721 = vpop.f32.mrb[0].mxu0
        %1722 = vmatprep.mubr.f32.mxu0 0.0
        %1723 = vmatmul.mubr.f32.gmra.mrb[0].mxu0 %v870
        %v1724 = vpop.f32.mrb[0].mxu0
        %v1725 = vadd.f32 0.0, %v1724
        %v1726 = vpop.f32.mrb[0].mxu0
        %1727 = vmatprep.mubr.f32.mxu0 0.0
        %1728 = vmatmul.mubr.f32.gmra.mrb[0].mxu0 %v873
        %v1729 = vpop.f32.mrb[0].mxu0
        %v1730 = vadd.f32 0.0, %v1729
        %v1731 = vpop.f32.mrb[0].mxu0
        %1732 = vmatprep.mubr.f32.mxu0 0.0
        %1733 = vmatmul.mubr.f32.gmra.mrb[0].mxu0 %v875
        %v1734 = vpop.f32.mrb[0].mxu0
        %v1735 = vadd.f32 0.0, %v1734
        %v1736 = vpop.f32.mrb[0].mxu0
        %1737 = vmatprep.mubr.f32.mxu0 0.0
        %1738 = vmatmul.mubr.f32.gmra.mrb[0].mxu0 %v1578
        %v1739 = vpop.f32.mrb[0].mxu0
        %v1740 = vadd.f32 0.0, %v1739
        %v1741 = vpop.f32.mrb[0].mxu0
        %1742 = vmatprep.mubr.f32.mxu0 0.0
        %1743 = vmatmul.mubr.f32.gmra.mrb[0].mxu0 %v1580
        %v1744 = vpop.f32.mrb[0].mxu0
        %v1745 = vadd.f32 0.0, %v1744
        %v1746 = vpop.f32.mrb[0].mxu0
        %1747 = vdwg.mxu0
        %v1748 = vadd.f32 %v1536, %v1650
        %v1749 = vadd.f32 %v1537, %v1655
        %v1750 = vadd.f32 %v1538, %v1660
        %v1751 = vadd.f32 %v1539, %v1665
        %v1752 = vadd.f32 %v1540, %v1670
        %v1753 = vadd.f32 %v1541, %v1675
        %v1754 = vadd.f32 %v1542, %v1680
        %v1755 = vadd.f32 %v1543, %v1685
        %v1756 = vadd.f32 %v1544, %v1690
        %v1757 = vadd.f32 %v1545, %v1695
        %v1758 = vadd.f32 %v1546, %v1700
        %v1759 = vadd.f32 %v1547, %v1705
        %v1760 = vadd.f32 %v1548, %v1710
        %v1761 = vadd.f32 %v1549, %v1715
        %v1762 = vadd.f32 %v1550, %v1720
        %v1763 = vadd.f32 %v1551, %v1725
        %v1764 = vadd.f32 %v1552, %v1730
        %v1765 = vadd.f32 %v1553, %v1735
        %v1766 = vadd.f32 %v1554, %v1740
        %v1767 = vadd.f32 %v1555, %v1745
        %s1768 = scalar_lea.vmem %s1, 640
        %v1769 = vld [vmem:[%s1768] sm:$0xff]
        %v1770 = vld [vmem:[%s1768 + $0x8] sm:$0xff]
        %v1771 = vld [vmem:[%s1768 + $0x10] sm:$0xff]
        %v1772 = vld [vmem:[%s1768 + $0x18] sm:$0xff]
        %v1773 = vld [vmem:[%s1768 + $0x20] sm:$0xff]
        %v1774 = vld [vmem:[%s1768 + $0x28] sm:$0xff]
        %v1775 = vld [vmem:[%s1768 + $0x30] sm:$0xff]
        %v1776 = vld [vmem:[%s1768 + $0x38] sm:$0xff]
        %v1777 = vld [vmem:[%s1768 + $0x40] sm:$0xff]
        %v1778 = vld [vmem:[%s1768 + $0x48] sm:$0xff]
        %v1779 = vld [vmem:[%s1768 + $0x50] sm:$0xff]
        %v1780 = vld [vmem:[%s1768 + $0x58] sm:$0xff]
        %v1781 = vld [vmem:[%s1768 + $0x60] sm:$0xff]
        %v1782 = vld [vmem:[%s1768 + $0x68] sm:$0xff]
        %v1783 = vld [vmem:[%s1768 + $0x70] sm:$0xff]
        %v1784 = vld [vmem:[%s1768 + $0x78] sm:$0xff]
        %v1785 = vrot.slane %v564, 2
        %v1786 = vrot.slane %v565, 2
        %v1787 = vsel %vm1098, %v1785, %v1786
        %v1788 = vrot.slane %v566, 2
        %v1789 = vsel %vm1098, %v1786, %v1788
        %1792 = vmatprep.subr.mxu0 0.0
        %1793 = vmatpush1.msra.mxu0 %v1769
        %1794 = vmatprep.subr.mxu0 0.0
        %1795 = vmatpush1.msra.mxu0 %v1770
        %1796 = vmatprep.subr.mxu0 0.0
        %1797 = vmatpush1.msra.mxu0 %v1771
        %1798 = vmatprep.subr.mxu0 0.0
        %1799 = vmatpush1.msra.mxu0 %v1772
        %1800 = vmatprep.subr.mxu0 0.0
        %1801 = vmatpush1.msra.mxu0 %v1773
        %1802 = vmatprep.subr.mxu0 0.0
        %1803 = vmatpush1.msra.mxu0 %v1774
        %1804 = vmatprep.subr.mxu0 0.0
        %1805 = vmatpush1.msra.mxu0 %v1775
        %1806 = vmatprep.subr.mxu0 0.0
        %1807 = vmatpush1.msra.mxu0 %v1776
        %1808 = vmatprep.subr.mxu0 0.0
        %1809 = vmatpush1.msra.mxu0 %v1777
        %1810 = vmatprep.subr.mxu0 0.0
        %1811 = vmatpush1.msra.mxu0 %v1778
        %1812 = vmatprep.subr.mxu0 0.0
        %1813 = vmatpush1.msra.mxu0 %v1779
        %1814 = vmatprep.subr.mxu0 0.0
        %1815 = vmatpush1.msra.mxu0 %v1780
        %1816 = vmatprep.subr.mxu0 0.0
        %1817 = vmatpush1.msra.mxu0 %v1781
        %1818 = vmatprep.subr.mxu0 0.0
        %1819 = vmatpush1.msra.mxu0 %v1782
        %1820 = vmatprep.subr.mxu0 0.0
        %1821 = vmatpush1.msra.mxu0 %v1783
        %1822 = vmatprep.subr.mxu0 0.0
        %1823 = vmatpush1.msra.mxu0 %v1784
        %1824 = vmatprep.subr.mxu0 0.0
        %1825 = vmatpush1.msra.mxu0 0.0
        %1826 = vmatprep.subr.mxu0 0.0
        %1827 = vmatpush1.msra.mxu0 0.0
        %1828 = vmatprep.subr.mxu0 0.0
        %1829 = vmatpush1.msra.mxu0 0.0
        %1830 = vmatprep.subr.mxu0 0.0
        %1831 = vmatpush1.msra.mxu0 0.0
        %1832 = vmatprep.subr.mxu0 0.0
        %1833 = vmatpush1.msra.mxu0 0.0
        %1834 = vmatprep.subr.mxu0 0.0
        %1835 = vmatpush1.msra.mxu0 0.0
        %1836 = vmatprep.subr.mxu0 0.0
        %1837 = vmatpush1.msra.mxu0 0.0
        %1838 = vmatprep.subr.mxu0 0.0
        %1839 = vmatpush1.msra.mxu0 0.0
        %1840 = vmatprep.subr.mxu0 0.0
        %1841 = vmatpush1.msra.mxu0 0.0
        %1842 = vmatprep.subr.mxu0 0.0
        %1843 = vmatpush1.msra.mxu0 0.0
        %1844 = vmatprep.subr.mxu0 0.0
        %1845 = vmatpush1.msra.mxu0 0.0
        %1846 = vmatprep.subr.mxu0 0.0
        %1847 = vmatpush1.msra.mxu0 0.0
        %1848 = vmatprep.subr.mxu0 0.0
        %1849 = vmatpush1.msra.mxu0 0.0
        %1850 = vmatprep.subr.mxu0 0.0
        %1851 = vmatpush1.msra.mxu0 0.0
        %1852 = vmatprep.subr.mxu0 0.0
        %1853 = vmatpush1.msra.mxu0 0.0
        %1854 = vmatprep.subr.mxu0 0.0
        %1855 = vmatpush1.msra.mxu0 0.0
        %1856 = vmatprep.mubr.f32.mxu0 0.0
        %1857 = vmatmul.mubr.f32.gmra.mrb[0].mxu0 %v1106
        %v1858 = vpop.f32.mrb[0].mxu0
        %v1859 = vadd.f32 0.0, %v1858
        %v1860 = vpop.f32.mrb[0].mxu0
        %1861 = vmatprep.mubr.f32.mxu0 0.0
        %1862 = vmatmul.mubr.f32.gmra.mrb[0].mxu0 %v1108
        %v1863 = vpop.f32.mrb[0].mxu0
        %v1864 = vadd.f32 0.0, %v1863
        %v1865 = vpop.f32.mrb[0].mxu0
        %1866 = vmatprep.mubr.f32.mxu0 0.0
        %1867 = vmatmul.mubr.f32.gmra.mrb[0].mxu0 %v1111
        %v1868 = vpop.f32.mrb[0].mxu0
        %v1869 = vadd.f32 0.0, %v1868
        %v1870 = vpop.f32.mrb[0].mxu0
        %1871 = vmatprep.mubr.f32.mxu0 0.0
        %1872 = vmatmul.mubr.f32.gmra.mrb[0].mxu0 %v1113
        %v1873 = vpop.f32.mrb[0].mxu0
        %v1874 = vadd.f32 0.0, %v1873
        %v1875 = vpop.f32.mrb[0].mxu0
        %1876 = vmatprep.mubr.f32.mxu0 0.0
        %1877 = vmatmul.mubr.f32.gmra.mrb[0].mxu0 %v1116
        %v1878 = vpop.f32.mrb[0].mxu0
        %v1879 = vadd.f32 0.0, %v1878
        %v1880 = vpop.f32.mrb[0].mxu0
        %1881 = vmatprep.mubr.f32.mxu0 0.0
        %1882 = vmatmul.mubr.f32.gmra.mrb[0].mxu0 %v1118
        %v1883 = vpop.f32.mrb[0].mxu0
        %v1884 = vadd.f32 0.0, %v1883
        %v1885 = vpop.f32.mrb[0].mxu0
        %1886 = vmatprep.mubr.f32.mxu0 0.0
        %1887 = vmatmul.mubr.f32.gmra.mrb[0].mxu0 %v1121
        %v1888 = vpop.f32.mrb[0].mxu0
        %v1889 = vadd.f32 0.0, %v1888
        %v1890 = vpop.f32.mrb[0].mxu0
        %1891 = vmatprep.mubr.f32.mxu0 0.0
        %1892 = vmatmul.mubr.f32.gmra.mrb[0].mxu0 %v1123
        %v1893 = vpop.f32.mrb[0].mxu0
        %v1894 = vadd.f32 0.0, %v1893
        %v1895 = vpop.f32.mrb[0].mxu0
        %1896 = vmatprep.mubr.f32.mxu0 0.0
        %1897 = vmatmul.mubr.f32.gmra.mrb[0].mxu0 %v1126
        %v1898 = vpop.f32.mrb[0].mxu0
        %v1899 = vadd.f32 0.0, %v1898
        %v1900 = vpop.f32.mrb[0].mxu0
        %1901 = vmatprep.mubr.f32.mxu0 0.0
        %1902 = vmatmul.mubr.f32.gmra.mrb[0].mxu0 %v1128
        %v1903 = vpop.f32.mrb[0].mxu0
        %v1904 = vadd.f32 0.0, %v1903
        %v1905 = vpop.f32.mrb[0].mxu0
        %1906 = vmatprep.mubr.f32.mxu0 0.0
        %1907 = vmatmul.mubr.f32.gmra.mrb[0].mxu0 %v1131
        %v1908 = vpop.f32.mrb[0].mxu0
        %v1909 = vadd.f32 0.0, %v1908
        %v1910 = vpop.f32.mrb[0].mxu0
        %1911 = vmatprep.mubr.f32.mxu0 0.0
        %1912 = vmatmul.mubr.f32.gmra.mrb[0].mxu0 %v1133
        %v1913 = vpop.f32.mrb[0].mxu0
        %v1914 = vadd.f32 0.0, %v1913
        %v1915 = vpop.f32.mrb[0].mxu0
        %1916 = vmatprep.mubr.f32.mxu0 0.0
        %1917 = vmatmul.mubr.f32.gmra.mrb[0].mxu0 %v1136
        %v1918 = vpop.f32.mrb[0].mxu0
        %v1919 = vadd.f32 0.0, %v1918
        %v1920 = vpop.f32.mrb[0].mxu0
        %1921 = vmatprep.mubr.f32.mxu0 0.0
        %1922 = vmatmul.mubr.f32.gmra.mrb[0].mxu0 %v1138
        %v1923 = vpop.f32.mrb[0].mxu0
        %v1924 = vadd.f32 0.0, %v1923
        %v1925 = vpop.f32.mrb[0].mxu0
        %1926 = vmatprep.mubr.f32.mxu0 0.0
        %1927 = vmatmul.mubr.f32.gmra.mrb[0].mxu0 %v1141
        %v1928 = vpop.f32.mrb[0].mxu0
        %v1929 = vadd.f32 0.0, %v1928
        %v1930 = vpop.f32.mrb[0].mxu0
        %1931 = vmatprep.mubr.f32.mxu0 0.0
        %1932 = vmatmul.mubr.f32.gmra.mrb[0].mxu0 %v1143
        %v1933 = vpop.f32.mrb[0].mxu0
        %v1934 = vadd.f32 0.0, %v1933
        %v1935 = vpop.f32.mrb[0].mxu0
        %1936 = vmatprep.mubr.f32.mxu0 0.0
        %1937 = vmatmul.mubr.f32.gmra.mrb[0].mxu0 %v1146
        %v1938 = vpop.f32.mrb[0].mxu0
        %v1939 = vadd.f32 0.0, %v1938
        %v1940 = vpop.f32.mrb[0].mxu0
        %1941 = vmatprep.mubr.f32.mxu0 0.0
        %1942 = vmatmul.mubr.f32.gmra.mrb[0].mxu0 %v1148
        %v1943 = vpop.f32.mrb[0].mxu0
        %v1944 = vadd.f32 0.0, %v1943
        %v1945 = vpop.f32.mrb[0].mxu0
        %1946 = vmatprep.mubr.f32.mxu0 0.0
        %1947 = vmatmul.mubr.f32.gmra.mrb[0].mxu0 %v1787
        %v1948 = vpop.f32.mrb[0].mxu0
        %v1949 = vadd.f32 0.0, %v1948
        %v1950 = vpop.f32.mrb[0].mxu0
        %1951 = vmatprep.mubr.f32.mxu0 0.0
        %1952 = vmatmul.mubr.f32.gmra.mrb[0].mxu0 %v1789
        %v1953 = vpop.f32.mrb[0].mxu0
        %v1954 = vadd.f32 0.0, %v1953
        %v1955 = vpop.f32.mrb[0].mxu0
        %1956 = vdwg.mxu0
        %v1957 = vadd.f32 %v1748, %v1859
        %v1958 = vadd.f32 %v1749, %v1864
        %v1959 = vadd.f32 %v1750, %v1869
        %v1960 = vadd.f32 %v1751, %v1874
        %v1961 = vadd.f32 %v1752, %v1879
        %v1962 = vadd.f32 %v1753, %v1884
        %v1963 = vadd.f32 %v1754, %v1889
        %v1964 = vadd.f32 %v1755, %v1894
        %v1965 = vadd.f32 %v1756, %v1899
        %v1966 = vadd.f32 %v1757, %v1904
        %v1967 = vadd.f32 %v1758, %v1909
        %v1968 = vadd.f32 %v1759, %v1914
        %v1969 = vadd.f32 %v1760, %v1919
        %v1970 = vadd.f32 %v1761, %v1924
        %v1971 = vadd.f32 %v1762, %v1929
        %v1972 = vadd.f32 %v1763, %v1934
        %v1973 = vadd.f32 %v1764, %v1939
        %v1974 = vadd.f32 %v1765, %v1944
        %v1975 = vadd.f32 %v1766, %v1949
        %v1976 = vadd.f32 %v1767, %v1954
        %s1977 = scalar_lea.vmem %s1, 768
        %v1978 = vld [vmem:[%s1977] sm:$0xff]
        %v1979 = vld [vmem:[%s1977 + $0x8] sm:$0xff]
        %v1980 = vld [vmem:[%s1977 + $0x10] sm:$0xff]
        %v1981 = vld [vmem:[%s1977 + $0x18] sm:$0xff]
        %v1982 = vld [vmem:[%s1977 + $0x20] sm:$0xff]
        %v1983 = vld [vmem:[%s1977 + $0x28] sm:$0xff]
        %v1984 = vld [vmem:[%s1977 + $0x30] sm:$0xff]
        %v1985 = vld [vmem:[%s1977 + $0x38] sm:$0xff]
        %v1986 = vld [vmem:[%s1977 + $0x40] sm:$0xff]
        %v1987 = vld [vmem:[%s1977 + $0x48] sm:$0xff]
        %v1988 = vld [vmem:[%s1977 + $0x50] sm:$0xff]
        %v1989 = vld [vmem:[%s1977 + $0x58] sm:$0xff]
        %v1990 = vld [vmem:[%s1977 + $0x60] sm:$0xff]
        %v1991 = vld [vmem:[%s1977 + $0x68] sm:$0xff]
        %v1992 = vld [vmem:[%s1977 + $0x70] sm:$0xff]
        %v1993 = vld [vmem:[%s1977 + $0x78] sm:$0xff]
        %1994 = vmatprep.subr.mxu0 0.0
        %1995 = vmatpush1.msra.mxu0 %v1978
        %1996 = vmatprep.subr.mxu0 0.0
        %1997 = vmatpush1.msra.mxu0 %v1979
        %1998 = vmatprep.subr.mxu0 0.0
        %1999 = vmatpush1.msra.mxu0 %v1980
        %2000 = vmatprep.subr.mxu0 0.0
        %2001 = vmatpush1.msra.mxu0 %v1981
        %2002 = vmatprep.subr.mxu0 0.0
        %2003 = vmatpush1.msra.mxu0 %v1982
        %2004 = vmatprep.subr.mxu0 0.0
        %2005 = vmatpush1.msra.mxu0 %v1983
        %2006 = vmatprep.subr.mxu0 0.0
        %2007 = vmatpush1.msra.mxu0 %v1984
        %2008 = vmatprep.subr.mxu0 0.0
        %2009 = vmatpush1.msra.mxu0 %v1985
        %2010 = vmatprep.subr.mxu0 0.0
        %2011 = vmatpush1.msra.mxu0 %v1986
        %2012 = vmatprep.subr.mxu0 0.0
        %2013 = vmatpush1.msra.mxu0 %v1987
        %2014 = vmatprep.subr.mxu0 0.0
        %2015 = vmatpush1.msra.mxu0 %v1988
        %2016 = vmatprep.subr.mxu0 0.0
        %2017 = vmatpush1.msra.mxu0 %v1989
        %2018 = vmatprep.subr.mxu0 0.0
        %2019 = vmatpush1.msra.mxu0 %v1990
        %2020 = vmatprep.subr.mxu0 0.0
        %2021 = vmatpush1.msra.mxu0 %v1991
        %2022 = vmatprep.subr.mxu0 0.0
        %2023 = vmatpush1.msra.mxu0 %v1992
        %2024 = vmatprep.subr.mxu0 0.0
        %2025 = vmatpush1.msra.mxu0 %v1993
        %2026 = vmatprep.subr.mxu0 0.0
        %2027 = vmatpush1.msra.mxu0 0.0
        %2028 = vmatprep.subr.mxu0 0.0
        %2029 = vmatpush1.msra.mxu0 0.0
        %2030 = vmatprep.subr.mxu0 0.0
        %2031 = vmatpush1.msra.mxu0 0.0
        %2032 = vmatprep.subr.mxu0 0.0
        %2033 = vmatpush1.msra.mxu0 0.0
        %2034 = vmatprep.subr.mxu0 0.0
        %2035 = vmatpush1.msra.mxu0 0.0
        %2036 = vmatprep.subr.mxu0 0.0
        %2037 = vmatpush1.msra.mxu0 0.0
        %2038 = vmatprep.subr.mxu0 0.0
        %2039 = vmatpush1.msra.mxu0 0.0
        %2040 = vmatprep.subr.mxu0 0.0
        %2041 = vmatpush1.msra.mxu0 0.0
        %2042 = vmatprep.subr.mxu0 0.0
        %2043 = vmatpush1.msra.mxu0 0.0
        %2044 = vmatprep.subr.mxu0 0.0
        %2045 = vmatpush1.msra.mxu0 0.0
        %2046 = vmatprep.subr.mxu0 0.0
        %2047 = vmatpush1.msra.mxu0 0.0
        %2048 = vmatprep.subr.mxu0 0.0
        %2049 = vmatpush1.msra.mxu0 0.0
        %2050 = vmatprep.subr.mxu0 0.0
        %2051 = vmatpush1.msra.mxu0 0.0
        %2052 = vmatprep.subr.mxu0 0.0
        %2053 = vmatpush1.msra.mxu0 0.0
        %2054 = vmatprep.subr.mxu0 0.0
        %2055 = vmatpush1.msra.mxu0 0.0
        %2056 = vmatprep.subr.mxu0 0.0
        %2057 = vmatpush1.msra.mxu0 0.0
        %2058 = vmatprep.mubr.f32.mxu0 0.0
        %2059 = vmatmul.mubr.f32.gmra.mrb[0].mxu0 %v540
        %v2060 = vpop.f32.mrb[0].mxu0
        %v2061 = vadd.f32 0.0, %v2060
        %v2062 = vpop.f32.mrb[0].mxu0
        %2063 = vmatprep.mubr.f32.mxu0 0.0
        %2064 = vmatmul.mubr.f32.gmra.mrb[0].mxu0 %v541
        %v2065 = vpop.f32.mrb[0].mxu0
        %v2066 = vadd.f32 0.0, %v2065
        %v2067 = vpop.f32.mrb[0].mxu0
        %2068 = vmatprep.mubr.f32.mxu0 0.0
        %2069 = vmatmul.mubr.f32.gmra.mrb[0].mxu0 %v543
        %v2070 = vpop.f32.mrb[0].mxu0
        %v2071 = vadd.f32 0.0, %v2070
        %v2072 = vpop.f32.mrb[0].mxu0
        %2073 = vmatprep.mubr.f32.mxu0 0.0
        %2074 = vmatmul.mubr.f32.gmra.mrb[0].mxu0 %v544
        %v2075 = vpop.f32.mrb[0].mxu0
        %v2076 = vadd.f32 0.0, %v2075
        %v2077 = vpop.f32.mrb[0].mxu0
        %2078 = vmatprep.mubr.f32.mxu0 0.0
        %2079 = vmatmul.mubr.f32.gmra.mrb[0].mxu0 %v546
        %v2080 = vpop.f32.mrb[0].mxu0
        %v2081 = vadd.f32 0.0, %v2080
        %v2082 = vpop.f32.mrb[0].mxu0
        %2083 = vmatprep.mubr.f32.mxu0 0.0
        %2084 = vmatmul.mubr.f32.gmra.mrb[0].mxu0 %v547
        %v2085 = vpop.f32.mrb[0].mxu0
        %v2086 = vadd.f32 0.0, %v2085
        %v2087 = vpop.f32.mrb[0].mxu0
        %2088 = vmatprep.mubr.f32.mxu0 0.0
        %2089 = vmatmul.mubr.f32.gmra.mrb[0].mxu0 %v549
        %v2090 = vpop.f32.mrb[0].mxu0
        %v2091 = vadd.f32 0.0, %v2090
        %v2092 = vpop.f32.mrb[0].mxu0
        %2093 = vmatprep.mubr.f32.mxu0 0.0
        %2094 = vmatmul.mubr.f32.gmra.mrb[0].mxu0 %v550
        %v2095 = vpop.f32.mrb[0].mxu0
        %v2096 = vadd.f32 0.0, %v2095
        %v2097 = vpop.f32.mrb[0].mxu0
        %2098 = vmatprep.mubr.f32.mxu0 0.0
        %2099 = vmatmul.mubr.f32.gmra.mrb[0].mxu0 %v552
        %v2100 = vpop.f32.mrb[0].mxu0
        %v2101 = vadd.f32 0.0, %v2100
        %v2102 = vpop.f32.mrb[0].mxu0
        %2103 = vmatprep.mubr.f32.mxu0 0.0
        %2104 = vmatmul.mubr.f32.gmra.mrb[0].mxu0 %v553
        %v2105 = vpop.f32.mrb[0].mxu0
        %v2106 = vadd.f32 0.0, %v2105
        %v2107 = vpop.f32.mrb[0].mxu0
        %2108 = vmatprep.mubr.f32.mxu0 0.0
        %2109 = vmatmul.mubr.f32.gmra.mrb[0].mxu0 %v555
        %v2110 = vpop.f32.mrb[0].mxu0
        %v2111 = vadd.f32 0.0, %v2110
        %v2112 = vpop.f32.mrb[0].mxu0
        %2113 = vmatprep.mubr.f32.mxu0 0.0
        %2114 = vmatmul.mubr.f32.gmra.mrb[0].mxu0 %v556
        %v2115 = vpop.f32.mrb[0].mxu0
        %v2116 = vadd.f32 0.0, %v2115
        %v2117 = vpop.f32.mrb[0].mxu0
        %2118 = vmatprep.mubr.f32.mxu0 0.0
        %2119 = vmatmul.mubr.f32.gmra.mrb[0].mxu0 %v558
        %v2120 = vpop.f32.mrb[0].mxu0
        %v2121 = vadd.f32 0.0, %v2120
        %v2122 = vpop.f32.mrb[0].mxu0
        %2123 = vmatprep.mubr.f32.mxu0 0.0
        %2124 = vmatmul.mubr.f32.gmra.mrb[0].mxu0 %v559
        %v2125 = vpop.f32.mrb[0].mxu0
        %v2126 = vadd.f32 0.0, %v2125
        %v2127 = vpop.f32.mrb[0].mxu0
        %2128 = vmatprep.mubr.f32.mxu0 0.0
        %2129 = vmatmul.mubr.f32.gmra.mrb[0].mxu0 %v561
        %v2130 = vpop.f32.mrb[0].mxu0
        %v2131 = vadd.f32 0.0, %v2130
        %v2132 = vpop.f32.mrb[0].mxu0
        %2133 = vmatprep.mubr.f32.mxu0 0.0
        %2134 = vmatmul.mubr.f32.gmra.mrb[0].mxu0 %v562
        %v2135 = vpop.f32.mrb[0].mxu0
        %v2136 = vadd.f32 0.0, %v2135
        %v2137 = vpop.f32.mrb[0].mxu0
        %2138 = vmatprep.mubr.f32.mxu0 0.0
        %2139 = vmatmul.mubr.f32.gmra.mrb[0].mxu0 %v564
        %v2140 = vpop.f32.mrb[0].mxu0
        %v2141 = vadd.f32 0.0, %v2140
        %v2142 = vpop.f32.mrb[0].mxu0
        %2143 = vmatprep.mubr.f32.mxu0 0.0
        %2144 = vmatmul.mubr.f32.gmra.mrb[0].mxu0 %v565
        %v2145 = vpop.f32.mrb[0].mxu0
        %v2146 = vadd.f32 0.0, %v2145
        %v2147 = vpop.f32.mrb[0].mxu0
        %2148 = vmatprep.mubr.f32.mxu0 0.0
        %2149 = vmatmul.mubr.f32.gmra.mrb[0].mxu0 %v567
        %v2150 = vpop.f32.mrb[0].mxu0
        %v2151 = vadd.f32 0.0, %v2150
        %v2152 = vpop.f32.mrb[0].mxu0
        %2153 = vmatprep.mubr.f32.mxu0 0.0
        %2154 = vmatmul.mubr.f32.gmra.mrb[0].mxu0 %v568
        %v2155 = vpop.f32.mrb[0].mxu0
        %v2156 = vadd.f32 0.0, %v2155
        %v2157 = vpop.f32.mrb[0].mxu0
        %2158 = vdwg.mxu0
        %v2159 = vadd.f32 %v1957, %v2061
        %v2160 = vadd.f32 %v1958, %v2066
        %v2161 = vadd.f32 %v1959, %v2071
        %v2162 = vadd.f32 %v1960, %v2076
        %v2163 = vadd.f32 %v1961, %v2081
        %v2164 = vadd.f32 %v1962, %v2086
        %v2165 = vadd.f32 %v1963, %v2091
        %v2166 = vadd.f32 %v1964, %v2096
        %v2167 = vadd.f32 %v1965, %v2101
        %v2168 = vadd.f32 %v1966, %v2106
        %v2169 = vadd.f32 %v1967, %v2111
        %v2170 = vadd.f32 %v1968, %v2116
        %v2171 = vadd.f32 %v1969, %v2121
        %v2172 = vadd.f32 %v1970, %v2126
        %v2173 = vadd.f32 %v1971, %v2131
        %v2174 = vadd.f32 %v1972, %v2136
        %v2175 = vadd.f32 %v1973, %v2141
        %v2176 = vadd.f32 %v1974, %v2146
        %v2177 = vadd.f32 %v1975, %v2151
        %v2178 = vadd.f32 %v1976, %v2156
        %s2179 = scalar_lea.vmem %s1, 896
        %v2180 = vld [vmem:[%s2179] sm:$0xff]
        %v2181 = vld [vmem:[%s2179 + $0x8] sm:$0xff]
        %v2182 = vld [vmem:[%s2179 + $0x10] sm:$0xff]
        %v2183 = vld [vmem:[%s2179 + $0x18] sm:$0xff]
        %v2184 = vld [vmem:[%s2179 + $0x20] sm:$0xff]
        %v2185 = vld [vmem:[%s2179 + $0x28] sm:$0xff]
        %v2186 = vld [vmem:[%s2179 + $0x30] sm:$0xff]
        %v2187 = vld [vmem:[%s2179 + $0x38] sm:$0xff]
        %v2188 = vld [vmem:[%s2179 + $0x40] sm:$0xff]
        %v2189 = vld [vmem:[%s2179 + $0x48] sm:$0xff]
        %v2190 = vld [vmem:[%s2179 + $0x50] sm:$0xff]
        %v2191 = vld [vmem:[%s2179 + $0x58] sm:$0xff]
        %v2192 = vld [vmem:[%s2179 + $0x60] sm:$0xff]
        %v2193 = vld [vmem:[%s2179 + $0x68] sm:$0xff]
        %v2194 = vld [vmem:[%s2179 + $0x70] sm:$0xff]
        %v2195 = vld [vmem:[%s2179 + $0x78] sm:$0xff]
        %v2199 = vrot.slane %v567, 1
        %v2200 = vrot.slane %v568, 1
        %v2201 = vsel %vm825, %v2199, %v2200
        %v2202 = vrot.slane %v569, 1
        %v2203 = vsel %vm825, %v2200, %v2202
        %2206 = vmatprep.subr.mxu0 0.0
        %2207 = vmatpush1.msra.mxu0 %v2180
        %2208 = vmatprep.subr.mxu0 0.0
        %2209 = vmatpush1.msra.mxu0 %v2181
        %2210 = vmatprep.subr.mxu0 0.0
        %2211 = vmatpush1.msra.mxu0 %v2182
        %2212 = vmatprep.subr.mxu0 0.0
        %2213 = vmatpush1.msra.mxu0 %v2183
        %2214 = vmatprep.subr.mxu0 0.0
        %2215 = vmatpush1.msra.mxu0 %v2184
        %2216 = vmatprep.subr.mxu0 0.0
        %2217 = vmatpush1.msra.mxu0 %v2185
        %2218 = vmatprep.subr.mxu0 0.0
        %2219 = vmatpush1.msra.mxu0 %v2186
        %2220 = vmatprep.subr.mxu0 0.0
        %2221 = vmatpush1.msra.mxu0 %v2187
        %2222 = vmatprep.subr.mxu0 0.0
        %2223 = vmatpush1.msra.mxu0 %v2188
        %2224 = vmatprep.subr.mxu0 0.0
        %2225 = vmatpush1.msra.mxu0 %v2189
        %2226 = vmatprep.subr.mxu0 0.0
        %2227 = vmatpush1.msra.mxu0 %v2190
        %2228 = vmatprep.subr.mxu0 0.0
        %2229 = vmatpush1.msra.mxu0 %v2191
        %2230 = vmatprep.subr.mxu0 0.0
        %2231 = vmatpush1.msra.mxu0 %v2192
        %2232 = vmatprep.subr.mxu0 0.0
        %2233 = vmatpush1.msra.mxu0 %v2193
        %2234 = vmatprep.subr.mxu0 0.0
        %2235 = vmatpush1.msra.mxu0 %v2194
        %2236 = vmatprep.subr.mxu0 0.0
        %2237 = vmatpush1.msra.mxu0 %v2195
        %2238 = vmatprep.subr.mxu0 0.0
        %2239 = vmatpush1.msra.mxu0 0.0
        %2240 = vmatprep.subr.mxu0 0.0
        %2241 = vmatpush1.msra.mxu0 0.0
        %2242 = vmatprep.subr.mxu0 0.0
        %2243 = vmatpush1.msra.mxu0 0.0
        %2244 = vmatprep.subr.mxu0 0.0
        %2245 = vmatpush1.msra.mxu0 0.0
        %2246 = vmatprep.subr.mxu0 0.0
        %2247 = vmatpush1.msra.mxu0 0.0
        %2248 = vmatprep.subr.mxu0 0.0
        %2249 = vmatpush1.msra.mxu0 0.0
        %2250 = vmatprep.subr.mxu0 0.0
        %2251 = vmatpush1.msra.mxu0 0.0
        %2252 = vmatprep.subr.mxu0 0.0
        %2253 = vmatpush1.msra.mxu0 0.0
        %2254 = vmatprep.subr.mxu0 0.0
        %2255 = vmatpush1.msra.mxu0 0.0
        %2256 = vmatprep.subr.mxu0 0.0
        %2257 = vmatpush1.msra.mxu0 0.0
        %2258 = vmatprep.subr.mxu0 0.0
        %2259 = vmatpush1.msra.mxu0 0.0
        %2260 = vmatprep.subr.mxu0 0.0
        %2261 = vmatpush1.msra.mxu0 0.0
        %2262 = vmatprep.subr.mxu0 0.0
        %2263 = vmatpush1.msra.mxu0 0.0
        %2264 = vmatprep.subr.mxu0 0.0
        %2265 = vmatpush1.msra.mxu0 0.0
        %2266 = vmatprep.subr.mxu0 0.0
        %2267 = vmatpush1.msra.mxu0 0.0
        %2268 = vmatprep.subr.mxu0 0.0
        %2269 = vmatpush1.msra.mxu0 0.0
        %2270 = vmatprep.mubr.f32.mxu0 0.0
        %2271 = vmatmul.mubr.f32.gmra.mrb[0].mxu0 %v838
        %v2272 = vpop.f32.mrb[0].mxu0
        %v2273 = vadd.f32 0.0, %v2272
        %v2274 = vpop.f32.mrb[0].mxu0
        %2275 = vmatprep.mubr.f32.mxu0 0.0
        %2276 = vmatmul.mubr.f32.gmra.mrb[0].mxu0 %v840
        %v2277 = vpop.f32.mrb[0].mxu0
        %v2278 = vadd.f32 0.0, %v2277
        %v2279 = vpop.f32.mrb[0].mxu0
        %2280 = vmatprep.mubr.f32.mxu0 0.0
        %2281 = vmatmul.mubr.f32.gmra.mrb[0].mxu0 %v843
        %v2282 = vpop.f32.mrb[0].mxu0
        %v2283 = vadd.f32 0.0, %v2282
        %v2284 = vpop.f32.mrb[0].mxu0
        %2285 = vmatprep.mubr.f32.mxu0 0.0
        %2286 = vmatmul.mubr.f32.gmra.mrb[0].mxu0 %v845
        %v2287 = vpop.f32.mrb[0].mxu0
        %v2288 = vadd.f32 0.0, %v2287
        %v2289 = vpop.f32.mrb[0].mxu0
        %2290 = vmatprep.mubr.f32.mxu0 0.0
        %2291 = vmatmul.mubr.f32.gmra.mrb[0].mxu0 %v848
        %v2292 = vpop.f32.mrb[0].mxu0
        %v2293 = vadd.f32 0.0, %v2292
        %v2294 = vpop.f32.mrb[0].mxu0
        %2295 = vmatprep.mubr.f32.mxu0 0.0
        %2296 = vmatmul.mubr.f32.gmra.mrb[0].mxu0 %v850
        %v2297 = vpop.f32.mrb[0].mxu0
        %v2298 = vadd.f32 0.0, %v2297
        %v2299 = vpop.f32.mrb[0].mxu0
        %2300 = vmatprep.mubr.f32.mxu0 0.0
        %2301 = vmatmul.mubr.f32.gmra.mrb[0].mxu0 %v853
        %v2302 = vpop.f32.mrb[0].mxu0
        %v2303 = vadd.f32 0.0, %v2302
        %v2304 = vpop.f32.mrb[0].mxu0
        %2305 = vmatprep.mubr.f32.mxu0 0.0
        %2306 = vmatmul.mubr.f32.gmra.mrb[0].mxu0 %v855
        %v2307 = vpop.f32.mrb[0].mxu0
        %v2308 = vadd.f32 0.0, %v2307
        %v2309 = vpop.f32.mrb[0].mxu0
        %2310 = vmatprep.mubr.f32.mxu0 0.0
        %2311 = vmatmul.mubr.f32.gmra.mrb[0].mxu0 %v858
        %v2312 = vpop.f32.mrb[0].mxu0
        %v2313 = vadd.f32 0.0, %v2312
        %v2314 = vpop.f32.mrb[0].mxu0
        %2315 = vmatprep.mubr.f32.mxu0 0.0
        %2316 = vmatmul.mubr.f32.gmra.mrb[0].mxu0 %v860
        %v2317 = vpop.f32.mrb[0].mxu0
        %v2318 = vadd.f32 0.0, %v2317
        %v2319 = vpop.f32.mrb[0].mxu0
        %2320 = vmatprep.mubr.f32.mxu0 0.0
        %2321 = vmatmul.mubr.f32.gmra.mrb[0].mxu0 %v863
        %v2322 = vpop.f32.mrb[0].mxu0
        %v2323 = vadd.f32 0.0, %v2322
        %v2324 = vpop.f32.mrb[0].mxu0
        %2325 = vmatprep.mubr.f32.mxu0 0.0
        %2326 = vmatmul.mubr.f32.gmra.mrb[0].mxu0 %v865
        %v2327 = vpop.f32.mrb[0].mxu0
        %v2328 = vadd.f32 0.0, %v2327
        %v2329 = vpop.f32.mrb[0].mxu0
        %2330 = vmatprep.mubr.f32.mxu0 0.0
        %2331 = vmatmul.mubr.f32.gmra.mrb[0].mxu0 %v868
        %v2332 = vpop.f32.mrb[0].mxu0
        %v2333 = vadd.f32 0.0, %v2332
        %v2334 = vpop.f32.mrb[0].mxu0
        %2335 = vmatprep.mubr.f32.mxu0 0.0
        %2336 = vmatmul.mubr.f32.gmra.mrb[0].mxu0 %v870
        %v2337 = vpop.f32.mrb[0].mxu0
        %v2338 = vadd.f32 0.0, %v2337
        %v2339 = vpop.f32.mrb[0].mxu0
        %2340 = vmatprep.mubr.f32.mxu0 0.0
        %2341 = vmatmul.mubr.f32.gmra.mrb[0].mxu0 %v873
        %v2342 = vpop.f32.mrb[0].mxu0
        %v2343 = vadd.f32 0.0, %v2342
        %v2344 = vpop.f32.mrb[0].mxu0
        %2345 = vmatprep.mubr.f32.mxu0 0.0
        %2346 = vmatmul.mubr.f32.gmra.mrb[0].mxu0 %v875
        %v2347 = vpop.f32.mrb[0].mxu0
        %v2348 = vadd.f32 0.0, %v2347
        %v2349 = vpop.f32.mrb[0].mxu0
        %2350 = vmatprep.mubr.f32.mxu0 0.0
        %2351 = vmatmul.mubr.f32.gmra.mrb[0].mxu0 %v1578
        %v2352 = vpop.f32.mrb[0].mxu0
        %v2353 = vadd.f32 0.0, %v2352
        %v2354 = vpop.f32.mrb[0].mxu0
        %2355 = vmatprep.mubr.f32.mxu0 0.0
        %2356 = vmatmul.mubr.f32.gmra.mrb[0].mxu0 %v1580
        %v2357 = vpop.f32.mrb[0].mxu0
        %v2358 = vadd.f32 0.0, %v2357
        %v2359 = vpop.f32.mrb[0].mxu0
        %2360 = vmatprep.mubr.f32.mxu0 0.0
        %2361 = vmatmul.mubr.f32.gmra.mrb[0].mxu0 %v2201
        %v2362 = vpop.f32.mrb[0].mxu0
        %v2363 = vadd.f32 0.0, %v2362
        %v2364 = vpop.f32.mrb[0].mxu0
        %2365 = vmatprep.mubr.f32.mxu0 0.0
        %2366 = vmatmul.mubr.f32.gmra.mrb[0].mxu0 %v2203
        %v2367 = vpop.f32.mrb[0].mxu0
        %v2368 = vadd.f32 0.0, %v2367
        %v2369 = vpop.f32.mrb[0].mxu0
        %2370 = vdwg.mxu0
        %v2371 = vadd.f32 %v2159, %v2273
        %v2372 = vadd.f32 %v2160, %v2278
        %v2373 = vadd.f32 %v2161, %v2283
        %v2374 = vadd.f32 %v2162, %v2288
        %v2375 = vadd.f32 %v2163, %v2293
        %v2376 = vadd.f32 %v2164, %v2298
        %v2377 = vadd.f32 %v2165, %v2303
        %v2378 = vadd.f32 %v2166, %v2308
        %v2379 = vadd.f32 %v2167, %v2313
        %v2380 = vadd.f32 %v2168, %v2318
        %v2381 = vadd.f32 %v2169, %v2323
        %v2382 = vadd.f32 %v2170, %v2328
        %v2383 = vadd.f32 %v2171, %v2333
        %v2384 = vadd.f32 %v2172, %v2338
        %v2385 = vadd.f32 %v2173, %v2343
        %v2386 = vadd.f32 %v2174, %v2348
        %v2387 = vadd.f32 %v2175, %v2353
        %v2388 = vadd.f32 %v2176, %v2358
        %v2389 = vadd.f32 %v2177, %v2363
        %v2390 = vadd.f32 %v2178, %v2368
        %s2391 = scalar_lea.vmem %s1, 1024
        %v2392 = vld [vmem:[%s2391] sm:$0xff]
        %v2393 = vld [vmem:[%s2391 + $0x8] sm:$0xff]
        %v2394 = vld [vmem:[%s2391 + $0x10] sm:$0xff]
        %v2395 = vld [vmem:[%s2391 + $0x18] sm:$0xff]
        %v2396 = vld [vmem:[%s2391 + $0x20] sm:$0xff]
        %v2397 = vld [vmem:[%s2391 + $0x28] sm:$0xff]
        %v2398 = vld [vmem:[%s2391 + $0x30] sm:$0xff]
        %v2399 = vld [vmem:[%s2391 + $0x38] sm:$0xff]
        %v2400 = vld [vmem:[%s2391 + $0x40] sm:$0xff]
        %v2401 = vld [vmem:[%s2391 + $0x48] sm:$0xff]
        %v2402 = vld [vmem:[%s2391 + $0x50] sm:$0xff]
        %v2403 = vld [vmem:[%s2391 + $0x58] sm:$0xff]
        %v2404 = vld [vmem:[%s2391 + $0x60] sm:$0xff]
        %v2405 = vld [vmem:[%s2391 + $0x68] sm:$0xff]
        %v2406 = vld [vmem:[%s2391 + $0x70] sm:$0xff]
        %v2407 = vld [vmem:[%s2391 + $0x78] sm:$0xff]
        %v2408 = vrot.slane %v567, 2
        %v2409 = vrot.slane %v568, 2
        %v2410 = vsel %vm1098, %v2408, %v2409
        %v2411 = vrot.slane %v569, 2
        %v2412 = vsel %vm1098, %v2409, %v2411
        %2415 = vmatprep.subr.mxu0 0.0
        %2416 = vmatpush1.msra.mxu0 %v2392
        %2417 = vmatprep.subr.mxu0 0.0
        %2418 = vmatpush1.msra.mxu0 %v2393
        %2419 = vmatprep.subr.mxu0 0.0
        %2420 = vmatpush1.msra.mxu0 %v2394
        %2421 = vmatprep.subr.mxu0 0.0
        %2422 = vmatpush1.msra.mxu0 %v2395
        %2423 = vmatprep.subr.mxu0 0.0
        %2424 = vmatpush1.msra.mxu0 %v2396
        %2425 = vmatprep.subr.mxu0 0.0
        %2426 = vmatpush1.msra.mxu0 %v2397
        %2427 = vmatprep.subr.mxu0 0.0
        %2428 = vmatpush1.msra.mxu0 %v2398
        %2429 = vmatprep.subr.mxu0 0.0
        %2430 = vmatpush1.msra.mxu0 %v2399
        %2431 = vmatprep.subr.mxu0 0.0
        %2432 = vmatpush1.msra.mxu0 %v2400
        %2433 = vmatprep.subr.mxu0 0.0
        %2434 = vmatpush1.msra.mxu0 %v2401
        %2435 = vmatprep.subr.mxu0 0.0
        %2436 = vmatpush1.msra.mxu0 %v2402
        %2437 = vmatprep.subr.mxu0 0.0
        %2438 = vmatpush1.msra.mxu0 %v2403
        %2439 = vmatprep.subr.mxu0 0.0
        %2440 = vmatpush1.msra.mxu0 %v2404
        %2441 = vmatprep.subr.mxu0 0.0
        %2442 = vmatpush1.msra.mxu0 %v2405
        %2443 = vmatprep.subr.mxu0 0.0
        %2444 = vmatpush1.msra.mxu0 %v2406
        %2445 = vmatprep.subr.mxu0 0.0
        %2446 = vmatpush1.msra.mxu0 %v2407
        %2447 = vmatprep.subr.mxu0 0.0
        %2448 = vmatpush1.msra.mxu0 0.0
        %2449 = vmatprep.subr.mxu0 0.0
        %2450 = vmatpush1.msra.mxu0 0.0
        %2451 = vmatprep.subr.mxu0 0.0
        %2452 = vmatpush1.msra.mxu0 0.0
        %2453 = vmatprep.subr.mxu0 0.0
        %2454 = vmatpush1.msra.mxu0 0.0
        %2455 = vmatprep.subr.mxu0 0.0
        %2456 = vmatpush1.msra.mxu0 0.0
        %2457 = vmatprep.subr.mxu0 0.0
        %2458 = vmatpush1.msra.mxu0 0.0
        %2459 = vmatprep.subr.mxu0 0.0
        %2460 = vmatpush1.msra.mxu0 0.0
        %2461 = vmatprep.subr.mxu0 0.0
        %2462 = vmatpush1.msra.mxu0 0.0
        %2463 = vmatprep.subr.mxu0 0.0
        %2464 = vmatpush1.msra.mxu0 0.0
        %2465 = vmatprep.subr.mxu0 0.0
        %2466 = vmatpush1.msra.mxu0 0.0
        %2467 = vmatprep.subr.mxu0 0.0
        %2468 = vmatpush1.msra.mxu0 0.0
        %2469 = vmatprep.subr.mxu0 0.0
        %2470 = vmatpush1.msra.mxu0 0.0
        %2471 = vmatprep.subr.mxu0 0.0
        %2472 = vmatpush1.msra.mxu0 0.0
        %2473 = vmatprep.subr.mxu0 0.0
        %2474 = vmatpush1.msra.mxu0 0.0
        %2475 = vmatprep.subr.mxu0 0.0
        %2476 = vmatpush1.msra.mxu0 0.0
        %2477 = vmatprep.subr.mxu0 0.0
        %2478 = vmatpush1.msra.mxu0 0.0
        %2479 = vmatprep.mubr.f32.mxu0 0.0
        %2480 = vmatmul.mubr.f32.gmra.mrb[0].mxu0 %v1111
        %v2481 = vpop.f32.mrb[0].mxu0
        %v2482 = vadd.f32 0.0, %v2481
        %v2483 = vpop.f32.mrb[0].mxu0
        %2484 = vmatprep.mubr.f32.mxu0 0.0
        %2485 = vmatmul.mubr.f32.gmra.mrb[0].mxu0 %v1113
        %v2486 = vpop.f32.mrb[0].mxu0
        %v2487 = vadd.f32 0.0, %v2486
        %v2488 = vpop.f32.mrb[0].mxu0
        %2489 = vmatprep.mubr.f32.mxu0 0.0
        %2490 = vmatmul.mubr.f32.gmra.mrb[0].mxu0 %v1116
        %v2491 = vpop.f32.mrb[0].mxu0
        %v2492 = vadd.f32 0.0, %v2491
        %v2493 = vpop.f32.mrb[0].mxu0
        %2494 = vmatprep.mubr.f32.mxu0 0.0
        %2495 = vmatmul.mubr.f32.gmra.mrb[0].mxu0 %v1118
        %v2496 = vpop.f32.mrb[0].mxu0
        %v2497 = vadd.f32 0.0, %v2496
        %v2498 = vpop.f32.mrb[0].mxu0
        %2499 = vmatprep.mubr.f32.mxu0 0.0
        %2500 = vmatmul.mubr.f32.gmra.mrb[0].mxu0 %v1121
        %v2501 = vpop.f32.mrb[0].mxu0
        %v2502 = vadd.f32 0.0, %v2501
        %v2503 = vpop.f32.mrb[0].mxu0
        %2504 = vmatprep.mubr.f32.mxu0 0.0
        %2505 = vmatmul.mubr.f32.gmra.mrb[0].mxu0 %v1123
        %v2506 = vpop.f32.mrb[0].mxu0
        %v2507 = vadd.f32 0.0, %v2506
        %v2508 = vpop.f32.mrb[0].mxu0
        %2509 = vmatprep.mubr.f32.mxu0 0.0
        %2510 = vmatmul.mubr.f32.gmra.mrb[0].mxu0 %v1126
        %v2511 = vpop.f32.mrb[0].mxu0
        %v2512 = vadd.f32 0.0, %v2511
        %v2513 = vpop.f32.mrb[0].mxu0
        %2514 = vmatprep.mubr.f32.mxu0 0.0
        %2515 = vmatmul.mubr.f32.gmra.mrb[0].mxu0 %v1128
        %v2516 = vpop.f32.mrb[0].mxu0
        %v2517 = vadd.f32 0.0, %v2516
        %v2518 = vpop.f32.mrb[0].mxu0
        %2519 = vmatprep.mubr.f32.mxu0 0.0
        %2520 = vmatmul.mubr.f32.gmra.mrb[0].mxu0 %v1131
        %v2521 = vpop.f32.mrb[0].mxu0
        %v2522 = vadd.f32 0.0, %v2521
        %v2523 = vpop.f32.mrb[0].mxu0
        %2524 = vmatprep.mubr.f32.mxu0 0.0
        %2525 = vmatmul.mubr.f32.gmra.mrb[0].mxu0 %v1133
        %v2526 = vpop.f32.mrb[0].mxu0
        %v2527 = vadd.f32 0.0, %v2526
        %v2528 = vpop.f32.mrb[0].mxu0
        %2529 = vmatprep.mubr.f32.mxu0 0.0
        %2530 = vmatmul.mubr.f32.gmra.mrb[0].mxu0 %v1136
        %v2531 = vpop.f32.mrb[0].mxu0
        %v2532 = vadd.f32 0.0, %v2531
        %v2533 = vpop.f32.mrb[0].mxu0
        %2534 = vmatprep.mubr.f32.mxu0 0.0
        %2535 = vmatmul.mubr.f32.gmra.mrb[0].mxu0 %v1138
        %v2536 = vpop.f32.mrb[0].mxu0
        %v2537 = vadd.f32 0.0, %v2536
        %v2538 = vpop.f32.mrb[0].mxu0
        %2539 = vmatprep.mubr.f32.mxu0 0.0
        %2540 = vmatmul.mubr.f32.gmra.mrb[0].mxu0 %v1141
        %v2541 = vpop.f32.mrb[0].mxu0
        %v2542 = vadd.f32 0.0, %v2541
        %v2543 = vpop.f32.mrb[0].mxu0
        %2544 = vmatprep.mubr.f32.mxu0 0.0
        %2545 = vmatmul.mubr.f32.gmra.mrb[0].mxu0 %v1143
        %v2546 = vpop.f32.mrb[0].mxu0
        %v2547 = vadd.f32 0.0, %v2546
        %v2548 = vpop.f32.mrb[0].mxu0
        %2549 = vmatprep.mubr.f32.mxu0 0.0
        %2550 = vmatmul.mubr.f32.gmra.mrb[0].mxu0 %v1146
        %v2551 = vpop.f32.mrb[0].mxu0
        %v2552 = vadd.f32 0.0, %v2551
        %v2553 = vpop.f32.mrb[0].mxu0
        %2554 = vmatprep.mubr.f32.mxu0 0.0
        %2555 = vmatmul.mubr.f32.gmra.mrb[0].mxu0 %v1148
        %v2556 = vpop.f32.mrb[0].mxu0
        %v2557 = vadd.f32 0.0, %v2556
        %v2558 = vpop.f32.mrb[0].mxu0
        %2559 = vmatprep.mubr.f32.mxu0 0.0
        %2560 = vmatmul.mubr.f32.gmra.mrb[0].mxu0 %v1787
        %v2561 = vpop.f32.mrb[0].mxu0
        %v2562 = vadd.f32 0.0, %v2561
        %v2563 = vpop.f32.mrb[0].mxu0
        %2564 = vmatprep.mubr.f32.mxu0 0.0
        %2565 = vmatmul.mubr.f32.gmra.mrb[0].mxu0 %v1789
        %v2566 = vpop.f32.mrb[0].mxu0
        %v2567 = vadd.f32 0.0, %v2566
        %v2568 = vpop.f32.mrb[0].mxu0
        %2569 = vmatprep.mubr.f32.mxu0 0.0
        %2570 = vmatmul.mubr.f32.gmra.mrb[0].mxu0 %v2410
        %v2571 = vpop.f32.mrb[0].mxu0
        %v2572 = vadd.f32 0.0, %v2571
        %v2573 = vpop.f32.mrb[0].mxu0
        %2574 = vmatprep.mubr.f32.mxu0 0.0
        %2575 = vmatmul.mubr.f32.gmra.mrb[0].mxu0 %v2412
        %v2576 = vpop.f32.mrb[0].mxu0
        %v2577 = vadd.f32 0.0, %v2576
        %v2578 = vpop.f32.mrb[0].mxu0
        %2579 = vdwg.mxu0
        %v2580 = vadd.f32 %v2371, %v2482
        %v2581 = vadd.f32 %v2372, %v2487
        %v2582 = vadd.f32 %v2373, %v2492
        %v2583 = vadd.f32 %v2374, %v2497
        %v2584 = vadd.f32 %v2375, %v2502
        %v2585 = vadd.f32 %v2376, %v2507
        %v2586 = vadd.f32 %v2377, %v2512
        %v2587 = vadd.f32 %v2378, %v2517
        %v2588 = vadd.f32 %v2379, %v2522
        %v2589 = vadd.f32 %v2380, %v2527
        %v2590 = vadd.f32 %v2381, %v2532
        %v2591 = vadd.f32 %v2382, %v2537
        %v2592 = vadd.f32 %v2383, %v2542
        %v2593 = vadd.f32 %v2384, %v2547
        %v2594 = vadd.f32 %v2385, %v2552
        %v2595 = vadd.f32 %v2386, %v2557
        %v2596 = vadd.f32 %v2387, %v2562
        %v2597 = vadd.f32 %v2388, %v2567
        %v2598 = vadd.f32 %v2389, %v2572
        %v2599 = vadd.f32 %v2390, %v2577
        %v2600 = vmax.f32 %v2580, 0.0
        %v2601 = vmax.f32 %v2581, 0.0
        %v2602 = vmax.f32 %v2582, 0.0
        %v2603 = vmax.f32 %v2583, 0.0
        %v2604 = vmax.f32 %v2584, 0.0
        %v2605 = vmax.f32 %v2585, 0.0
        %v2606 = vmax.f32 %v2586, 0.0
        %v2607 = vmax.f32 %v2587, 0.0
        %v2608 = vmax.f32 %v2588, 0.0
        %v2609 = vmax.f32 %v2589, 0.0
        %v2610 = vmax.f32 %v2590, 0.0
        %v2611 = vmax.f32 %v2591, 0.0
        %v2612 = vmax.f32 %v2592, 0.0
        %v2613 = vmax.f32 %v2593, 0.0
        %v2614 = vmax.f32 %v2594, 0.0
        %v2615 = vmax.f32 %v2595, 0.0
        %v2616 = vmax.f32 %v2596, 0.0
        %v2617 = vmax.f32 %v2597, 0.0
        %v2618 = vmax.f32 %v2598, 0.0
        %v2619 = vmax.f32 %v2599, 0.0
        %2620 = vst [vmem:[#allocation3 + $0x1] sm:$0xff] %v2600
        %2621 = vst [vmem:[#allocation3 + $0x9] sm:$0xff] %v2601
        %2622 = vst [vmem:[#allocation3 + $0x19] sm:$0xff] %v2602
        %2623 = vst [vmem:[#allocation3 + $0x21] sm:$0xff] %v2603
        %2624 = vst [vmem:[#allocation3 + $0x31] sm:$0xff] %v2604
        %2625 = vst [vmem:[#allocation3 + $0x39] sm:$0xff] %v2605
        %2626 = vst [vmem:[#allocation3 + $0x49] sm:$0xff] %v2606
        %2627 = vst [vmem:[#allocation3 + $0x51] sm:$0xff] %v2607
        %2628 = vst [vmem:[#allocation3 + $0x61] sm:$0xff] %v2608
        %2629 = vst [vmem:[#allocation3 + $0x69] sm:$0xff] %v2609
        %2630 = vst [vmem:[#allocation3 + $0x79] sm:$0xff] %v2610
        %2631 = vst [vmem:[#allocation3 + $0x81] sm:$0xff] %v2611
        %2632 = vst [vmem:[#allocation3 + $0x91] sm:$0xff] %v2612
        %2633 = vst [vmem:[#allocation3 + $0x99] sm:$0xff] %v2613
        %2634 = vst [vmem:[#allocation3 + $0xa9] sm:$0xff] %v2614
        %2635 = vst [vmem:[#allocation3 + $0xb1] sm:$0xff] %v2615
        %2636 = vst [vmem:[#allocation3 + $0xc1] sm:$0xff] %v2616
        %2637 = vst [vmem:[#allocation3 + $0xc9] sm:$0xff] %v2617
        %2638 = vst [vmem:[#allocation3 + $0xd9] sm:$0xff] %v2618
        %2639 = vst [vmem:[#allocation3 + $0xe1] sm:$0xff] %v2619
        %2640 = vst [vmem:[#allocation3 - $0x1] sm:$0x2] %v2600
        %2641 = vst [vmem:[#allocation3 + $0x17] sm:$0x2] %v2602
        %2642 = vst [vmem:[#allocation3 + $0x2f] sm:$0x2] %v2604
        %2643 = vst [vmem:[#allocation3 + $0x47] sm:$0x2] %v2606
        %2644 = vst [vmem:[#allocation3 + $0x5f] sm:$0x2] %v2608
        %2645 = vst [vmem:[#allocation3 + $0x77] sm:$0x2] %v2610
        %2646 = vst [vmem:[#allocation3 + $0x8f] sm:$0x2] %v2612
        %2647 = vst [vmem:[#allocation3 + $0xa7] sm:$0x2] %v2614
        %2648 = vst [vmem:[#allocation3 + $0xbf] sm:$0x2] %v2616
        %2649 = vst [vmem:[#allocation3 + $0xd7] sm:$0x2] %v2618
        %2650 = vst [vmem:[#allocation3 + $0xb] sm:$0x40] %v2601
        %2651 = vst [vmem:[#allocation3 + $0x23] sm:$0x40] %v2603
        %2652 = vst [vmem:[#allocation3 + $0x3b] sm:$0x40] %v2605
        %2653 = vst [vmem:[#allocation3 + $0x53] sm:$0x40] %v2607
        %2654 = vst [vmem:[#allocation3 + $0x6b] sm:$0x40] %v2609
        %2655 = vst [vmem:[#allocation3 + $0x83] sm:$0x40] %v2611
        %2656 = vst [vmem:[#allocation3 + $0x9b] sm:$0x40] %v2613
        %2657 = vst [vmem:[#allocation3 + $0xb3] sm:$0x40] %v2615
        %2658 = vst [vmem:[#allocation3 + $0xcb] sm:$0x40] %v2617
        %2659 = vst [vmem:[#allocation3 + $0xe3] sm:$0x40] %v2619
        // Predicated region
        $region123: #{tpu_custom_call.1} parent=35 // pred_check
          %p2660 = pneg %p207
        $region124: #{tpu_custom_call.1} parent=35 // pred_check_branch
          %2662 = sbr.rel (%p2660) target = $region126
        $region125: #{tpu_custom_call.1} parent=35 // pred_region
          %s2663 = scalar_lea.vmem [#allocation3], 48
          %v2664 = vld [vmem:[%s2663] sm:$0xff]
          %v2665 = vld [vmem:[%s2663 + $0x8] sm:$0xff]
          %v2666 = vld [vmem:[%s2663 + $0x10] sm:$0x3]
          %2667 = vst [vmem:[#allocation3] sm:$0xff] %v2664
          %2668 = vst [vmem:[#allocation3 + $0x8] sm:$0xff] %v2665
          %2669 = vst [vmem:[#allocation3 + $0x10] sm:$0x3] %v2666
        $region126: #{tpu_custom_call.1} parent=35 // pred_fallthru
          _
        %p2670 = scmp.eq.s32.totalorder %s25, 1
        // Predicated region
        $region127: #{tpu_custom_call.1} parent=35 // pred_check
          %p2671 = pneg %p2670
        $region128: #{tpu_custom_call.1} parent=35 // pred_check_branch
          %2673 = sbr.rel (%p2671) target = $region130
        $region129: #{tpu_custom_call.1} parent=35 // pred_region
          %s2674 = scalar_lea.vmem [#allocation3], 168
          %v2675 = vld [vmem:[%s2674] sm:$0xff]
          %v2676 = vld [vmem:[%s2674 + $0x8] sm:$0xff]
          %v2677 = vld [vmem:[%s2674 + $0x10] sm:$0x3]
          %s2678 = scalar_lea.vmem [#allocation3], 216
          %2679 = vst [vmem:[%s2678] sm:$0xff] %v2675
          %2680 = vst [vmem:[%s2678 + $0x8] sm:$0xff] %v2676
          %2681 = vst [vmem:[%s2678 + $0x10] sm:$0x3] %v2677
        $region130: #{tpu_custom_call.1} parent=35 // pred_fallthru
          _
        %v2682 = vld [vmem:[#allocation3] sm:$0xff]
        %v2683 = vld [vmem:[#allocation3 + $0x8] sm:$0xff]
        %v2684 = vld [vmem:[#allocation3 + $0x10] sm:$0x3]
        %v2685 = vld [vmem:[#allocation3 + $0x18] sm:$0xff]
        %v2686 = vld [vmem:[#allocation3 + $0x20] sm:$0xff]
        %v2687 = vld [vmem:[#allocation3 + $0x28] sm:$0x3]
        %v2688 = vld [vmem:[#allocation3 + $0x30] sm:$0xff]
        %v2689 = vld [vmem:[#allocation3 + $0x38] sm:$0xff]
        %v2690 = vld [vmem:[#allocation3 + $0x40] sm:$0x3]
        %v2691 = vld [vmem:[#allocation3 + $0x48] sm:$0xff]
        %v2692 = vld [vmem:[#allocation3 + $0x50] sm:$0xff]
        %v2693 = vld [vmem:[#allocation3 + $0x58] sm:$0x3]
        %v2694 = vld [vmem:[#allocation3 + $0x60] sm:$0xff]
        %v2695 = vld [vmem:[#allocation3 + $0x68] sm:$0xff]
        %v2696 = vld [vmem:[#allocation3 + $0x70] sm:$0x3]
        %v2697 = vld [vmem:[#allocation3 + $0x78] sm:$0xff]
        %v2698 = vld [vmem:[#allocation3 + $0x80] sm:$0xff]
        %v2699 = vld [vmem:[#allocation3 + $0x88] sm:$0x3]
        %v2700 = vld [vmem:[#allocation3 + $0x90] sm:$0xff]
        %v2701 = vld [vmem:[#allocation3 + $0x98] sm:$0xff]
        %v2702 = vld [vmem:[#allocation3 + $0xa0] sm:$0x3]
        %v2703 = vld [vmem:[#allocation3 + $0xa8] sm:$0xff]
        %v2704 = vld [vmem:[#allocation3 + $0xb0] sm:$0xff]
        %v2705 = vld [vmem:[#allocation3 + $0xb8] sm:$0x3]
        %v2706 = vld [vmem:[#allocation3 + $0xc0] sm:$0xff]
        %v2707 = vld [vmem:[#allocation3 + $0xc8] sm:$0xff]
        %v2708 = vld [vmem:[#allocation3 + $0xd0] sm:$0x3]
        %v2709 = vld [vmem:[#allocation3 + $0xd8] sm:$0xff]
        %v2710 = vld [vmem:[#allocation3 + $0xe0] sm:$0xff]
        %v2711 = vld [vmem:[#allocation3 + $0xe8] sm:$0x3]
        %v2712 = vld [vmem:[%s4] sm:$0x1]
        %v2714 = vlaneseq
        %v2715 = vshrl.u32 %v2714, 7
        %v2716 = vsub.s32 0, %v2715
        %v2717 = vrot.slane %v2712, %v2716
        %v2719 = vld [vmem:[#allocation5] sm:$0xff]
        %v2720 = vld [vmem:[#allocation5 + $0x8] sm:$0xff]
        %v2721 = vld [vmem:[#allocation5 + $0x10] sm:$0xff]
        %v2722 = vld [vmem:[#allocation5 + $0x18] sm:$0xff]
        %v2723 = vld [vmem:[#allocation5 + $0x20] sm:$0xff]
        %v2724 = vld [vmem:[#allocation5 + $0x28] sm:$0xff]
        %v2725 = vld [vmem:[#allocation5 + $0x30] sm:$0xff]
        %v2726 = vld [vmem:[#allocation5 + $0x38] sm:$0xff]
        %v2727 = vld [vmem:[#allocation5 + $0x40] sm:$0xff]
        %v2728 = vld [vmem:[#allocation5 + $0x48] sm:$0xff]
        %v2729 = vld [vmem:[#allocation5 + $0x50] sm:$0xff]
        %v2730 = vld [vmem:[#allocation5 + $0x58] sm:$0xff]
        %v2731 = vld [vmem:[#allocation5 + $0x60] sm:$0xff]
        %v2732 = vld [vmem:[#allocation5 + $0x68] sm:$0xff]
        %v2733 = vld [vmem:[#allocation5 + $0x70] sm:$0xff]
        %v2734 = vld [vmem:[#allocation5 + $0x78] sm:$0xff]
        %2735 = vmatprep.subr.mxu0 0.0
        %2736 = vmatpush1.msra.mxu0 %v2719
        %2737 = vmatprep.subr.mxu0 0.0
        %2738 = vmatpush1.msra.mxu0 %v2720
        %2739 = vmatprep.subr.mxu0 0.0
        %2740 = vmatpush1.msra.mxu0 %v2721
        %2741 = vmatprep.subr.mxu0 0.0
        %2742 = vmatpush1.msra.mxu0 %v2722
        %2743 = vmatprep.subr.mxu0 0.0
        %2744 = vmatpush1.msra.mxu0 %v2723
        %2745 = vmatprep.subr.mxu0 0.0
        %2746 = vmatpush1.msra.mxu0 %v2724
        %2747 = vmatprep.subr.mxu0 0.0
        %2748 = vmatpush1.msra.mxu0 %v2725
        %2749 = vmatprep.subr.mxu0 0.0
        %2750 = vmatpush1.msra.mxu0 %v2726
        %2751 = vmatprep.subr.mxu0 0.0
        %2752 = vmatpush1.msra.mxu0 %v2727
        %2753 = vmatprep.subr.mxu0 0.0
        %2754 = vmatpush1.msra.mxu0 %v2728
        %2755 = vmatprep.subr.mxu0 0.0
        %2756 = vmatpush1.msra.mxu0 %v2729
        %2757 = vmatprep.subr.mxu0 0.0
        %2758 = vmatpush1.msra.mxu0 %v2730
        %2759 = vmatprep.subr.mxu0 0.0
        %2760 = vmatpush1.msra.mxu0 %v2731
        %2761 = vmatprep.subr.mxu0 0.0
        %2762 = vmatpush1.msra.mxu0 %v2732
        %2763 = vmatprep.subr.mxu0 0.0
        %2764 = vmatpush1.msra.mxu0 %v2733
        %2765 = vmatprep.subr.mxu0 0.0
        %2766 = vmatpush1.msra.mxu0 %v2734
        %2767 = vmatprep.subr.mxu0 0.0
        %2768 = vmatpush1.msra.mxu0 0.0
        %2769 = vmatprep.subr.mxu0 0.0
        %2770 = vmatpush1.msra.mxu0 0.0
        %2771 = vmatprep.subr.mxu0 0.0
        %2772 = vmatpush1.msra.mxu0 0.0
        %2773 = vmatprep.subr.mxu0 0.0
        %2774 = vmatpush1.msra.mxu0 0.0
        %2775 = vmatprep.subr.mxu0 0.0
        %2776 = vmatpush1.msra.mxu0 0.0
        %2777 = vmatprep.subr.mxu0 0.0
        %2778 = vmatpush1.msra.mxu0 0.0
        %2779 = vmatprep.subr.mxu0 0.0
        %2780 = vmatpush1.msra.mxu0 0.0
        %2781 = vmatprep.subr.mxu0 0.0
        %2782 = vmatpush1.msra.mxu0 0.0
        %2783 = vmatprep.subr.mxu0 0.0
        %2784 = vmatpush1.msra.mxu0 0.0
        %2785 = vmatprep.subr.mxu0 0.0
        %2786 = vmatpush1.msra.mxu0 0.0
        %2787 = vmatprep.subr.mxu0 0.0
        %2788 = vmatpush1.msra.mxu0 0.0
        %2789 = vmatprep.subr.mxu0 0.0
        %2790 = vmatpush1.msra.mxu0 0.0
        %2791 = vmatprep.subr.mxu0 0.0
        %2792 = vmatpush1.msra.mxu0 0.0
        %2793 = vmatprep.subr.mxu0 0.0
        %2794 = vmatpush1.msra.mxu0 0.0
        %2795 = vmatprep.subr.mxu0 0.0
        %2796 = vmatpush1.msra.mxu0 0.0
        %2797 = vmatprep.subr.mxu0 0.0
        %2798 = vmatpush1.msra.mxu0 0.0
        %2799 = vmatprep.mubr.f32.mxu0 0.0
        %2800 = vmatmul.mubr.f32.gmra.mrb[0].mxu0 %v2682
        %v2801 = vpop.f32.mrb[0].mxu0
        %v2802 = vadd.f32 0.0, %v2801
        %v2803 = vpop.f32.mrb[0].mxu0
        %2804 = vmatprep.mubr.f32.mxu0 0.0
        %2805 = vmatmul.mubr.f32.gmra.mrb[0].mxu0 %v2683
        %v2806 = vpop.f32.mrb[0].mxu0
        %v2807 = vadd.f32 0.0, %v2806
        %v2808 = vpop.f32.mrb[0].mxu0
        %2809 = vmatprep.mubr.f32.mxu0 0.0
        %2810 = vmatmul.mubr.f32.gmra.mrb[0].mxu0 %v2685
        %v2811 = vpop.f32.mrb[0].mxu0
        %v2812 = vadd.f32 0.0, %v2811
        %v2813 = vpop.f32.mrb[0].mxu0
        %2814 = vmatprep.mubr.f32.mxu0 0.0
        %2815 = vmatmul.mubr.f32.gmra.mrb[0].mxu0 %v2686
        %v2816 = vpop.f32.mrb[0].mxu0
        %v2817 = vadd.f32 0.0, %v2816
        %v2818 = vpop.f32.mrb[0].mxu0
        %2819 = vmatprep.mubr.f32.mxu0 0.0
        %2820 = vmatmul.mubr.f32.gmra.mrb[0].mxu0 %v2688
        %v2821 = vpop.f32.mrb[0].mxu0
        %v2822 = vadd.f32 0.0, %v2821
        %v2823 = vpop.f32.mrb[0].mxu0
        %2824 = vmatprep.mubr.f32.mxu0 0.0
        %2825 = vmatmul.mubr.f32.gmra.mrb[0].mxu0 %v2689
        %v2826 = vpop.f32.mrb[0].mxu0
        %v2827 = vadd.f32 0.0, %v2826
        %v2828 = vpop.f32.mrb[0].mxu0
        %2829 = vmatprep.mubr.f32.mxu0 0.0
        %2830 = vmatmul.mubr.f32.gmra.mrb[0].mxu0 %v2691
        %v2831 = vpop.f32.mrb[0].mxu0
        %v2832 = vadd.f32 0.0, %v2831
        %v2833 = vpop.f32.mrb[0].mxu0
        %2834 = vmatprep.mubr.f32.mxu0 0.0
        %2835 = vmatmul.mubr.f32.gmra.mrb[0].mxu0 %v2692
        %v2836 = vpop.f32.mrb[0].mxu0
        %v2837 = vadd.f32 0.0, %v2836
        %v2838 = vpop.f32.mrb[0].mxu0
        %2839 = vmatprep.mubr.f32.mxu0 0.0
        %2840 = vmatmul.mubr.f32.gmra.mrb[0].mxu0 %v2694
        %v2841 = vpop.f32.mrb[0].mxu0
        %v2842 = vadd.f32 0.0, %v2841
        %v2843 = vpop.f32.mrb[0].mxu0
        %2844 = vmatprep.mubr.f32.mxu0 0.0
        %2845 = vmatmul.mubr.f32.gmra.mrb[0].mxu0 %v2695
        %v2846 = vpop.f32.mrb[0].mxu0
        %v2847 = vadd.f32 0.0, %v2846
        %v2848 = vpop.f32.mrb[0].mxu0
        %2849 = vmatprep.mubr.f32.mxu0 0.0
        %2850 = vmatmul.mubr.f32.gmra.mrb[0].mxu0 %v2697
        %v2851 = vpop.f32.mrb[0].mxu0
        %v2852 = vadd.f32 0.0, %v2851
        %v2853 = vpop.f32.mrb[0].mxu0
        %2854 = vmatprep.mubr.f32.mxu0 0.0
        %2855 = vmatmul.mubr.f32.gmra.mrb[0].mxu0 %v2698
        %v2856 = vpop.f32.mrb[0].mxu0
        %v2857 = vadd.f32 0.0, %v2856
        %v2858 = vpop.f32.mrb[0].mxu0
        %2859 = vmatprep.mubr.f32.mxu0 0.0
        %2860 = vmatmul.mubr.f32.gmra.mrb[0].mxu0 %v2700
        %v2861 = vpop.f32.mrb[0].mxu0
        %v2862 = vadd.f32 0.0, %v2861
        %v2863 = vpop.f32.mrb[0].mxu0
        %2864 = vmatprep.mubr.f32.mxu0 0.0
        %2865 = vmatmul.mubr.f32.gmra.mrb[0].mxu0 %v2701
        %v2866 = vpop.f32.mrb[0].mxu0
        %v2867 = vadd.f32 0.0, %v2866
        %v2868 = vpop.f32.mrb[0].mxu0
        %2869 = vmatprep.mubr.f32.mxu0 0.0
        %2870 = vmatmul.mubr.f32.gmra.mrb[0].mxu0 %v2703
        %v2871 = vpop.f32.mrb[0].mxu0
        %v2872 = vadd.f32 0.0, %v2871
        %v2873 = vpop.f32.mrb[0].mxu0
        %2874 = vmatprep.mubr.f32.mxu0 0.0
        %2875 = vmatmul.mubr.f32.gmra.mrb[0].mxu0 %v2704
        %v2876 = vpop.f32.mrb[0].mxu0
        %v2877 = vadd.f32 0.0, %v2876
        %v2878 = vpop.f32.mrb[0].mxu0
        %2879 = vdwg.mxu0
        %v2880 = vadd.f32 %v2717, %v2802
        %v2881 = vadd.f32 %v2717, %v2807
        %v2882 = vadd.f32 %v2717, %v2812
        %v2883 = vadd.f32 %v2717, %v2817
        %v2884 = vadd.f32 %v2717, %v2822
        %v2885 = vadd.f32 %v2717, %v2827
        %v2886 = vadd.f32 %v2717, %v2832
        %v2887 = vadd.f32 %v2717, %v2837
        %v2888 = vadd.f32 %v2717, %v2842
        %v2889 = vadd.f32 %v2717, %v2847
        %v2890 = vadd.f32 %v2717, %v2852
        %v2891 = vadd.f32 %v2717, %v2857
        %v2892 = vadd.f32 %v2717, %v2862
        %v2893 = vadd.f32 %v2717, %v2867
        %v2894 = vadd.f32 %v2717, %v2872
        %v2895 = vadd.f32 %v2717, %v2877
        %s2896 = scalar_lea.vmem [#allocation5], 128
        %v2897 = vld [vmem:[%s2896] sm:$0xff]
        %v2898 = vld [vmem:[%s2896 + $0x8] sm:$0xff]
        %v2899 = vld [vmem:[%s2896 + $0x10] sm:$0xff]
        %v2900 = vld [vmem:[%s2896 + $0x18] sm:$0xff]
        %v2901 = vld [vmem:[%s2896 + $0x20] sm:$0xff]
        %v2902 = vld [vmem:[%s2896 + $0x28] sm:$0xff]
        %v2903 = vld [vmem:[%s2896 + $0x30] sm:$0xff]
        %v2904 = vld [vmem:[%s2896 + $0x38] sm:$0xff]
        %v2905 = vld [vmem:[%s2896 + $0x40] sm:$0xff]
        %v2906 = vld [vmem:[%s2896 + $0x48] sm:$0xff]
        %v2907 = vld [vmem:[%s2896 + $0x50] sm:$0xff]
        %v2908 = vld [vmem:[%s2896 + $0x58] sm:$0xff]
        %v2909 = vld [vmem:[%s2896 + $0x60] sm:$0xff]
        %v2910 = vld [vmem:[%s2896 + $0x68] sm:$0xff]
        %v2911 = vld [vmem:[%s2896 + $0x70] sm:$0xff]
        %v2912 = vld [vmem:[%s2896 + $0x78] sm:$0xff]
        %v2937 = vrot.slane %v2682, 1
        %v2938 = vrot.slane %v2683, 1
        %v2939 = vsel %vm825, %v2937, %v2938
        %v2940 = vrot.slane %v2684, 1
        %v2941 = vsel %vm825, %v2938, %v2940
        %v2942 = vrot.slane %v2685, 1
        %v2943 = vrot.slane %v2686, 1
        %v2944 = vsel %vm825, %v2942, %v2943
        %v2945 = vrot.slane %v2687, 1
        %v2946 = vsel %vm825, %v2943, %v2945
        %v2947 = vrot.slane %v2688, 1
        %v2948 = vrot.slane %v2689, 1
        %v2949 = vsel %vm825, %v2947, %v2948
        %v2950 = vrot.slane %v2690, 1
        %v2951 = vsel %vm825, %v2948, %v2950
        %v2952 = vrot.slane %v2691, 1
        %v2953 = vrot.slane %v2692, 1
        %v2954 = vsel %vm825, %v2952, %v2953
        %v2955 = vrot.slane %v2693, 1
        %v2956 = vsel %vm825, %v2953, %v2955
        %v2957 = vrot.slane %v2694, 1
        %v2958 = vrot.slane %v2695, 1
        %v2959 = vsel %vm825, %v2957, %v2958
        %v2960 = vrot.slane %v2696, 1
        %v2961 = vsel %vm825, %v2958, %v2960
        %v2962 = vrot.slane %v2697, 1
        %v2963 = vrot.slane %v2698, 1
        %v2964 = vsel %vm825, %v2962, %v2963
        %v2965 = vrot.slane %v2699, 1
        %v2966 = vsel %vm825, %v2963, %v2965
        %v2967 = vrot.slane %v2700, 1
        %v2968 = vrot.slane %v2701, 1
        %v2969 = vsel %vm825, %v2967, %v2968
        %v2970 = vrot.slane %v2702, 1
        %v2971 = vsel %vm825, %v2968, %v2970
        %v2972 = vrot.slane %v2703, 1
        %v2973 = vrot.slane %v2704, 1
        %v2974 = vsel %vm825, %v2972, %v2973
        %v2975 = vrot.slane %v2705, 1
        %v2976 = vsel %vm825, %v2973, %v2975
        %2993 = vmatprep.subr.mxu0 0.0
        %2994 = vmatpush1.msra.mxu0 %v2897
        %2995 = vmatprep.subr.mxu0 0.0
        %2996 = vmatpush1.msra.mxu0 %v2898
        %2997 = vmatprep.subr.mxu0 0.0
        %2998 = vmatpush1.msra.mxu0 %v2899
        %2999 = vmatprep.subr.mxu0 0.0
        %3000 = vmatpush1.msra.mxu0 %v2900
        %3001 = vmatprep.subr.mxu0 0.0
        %3002 = vmatpush1.msra.mxu0 %v2901
        %3003 = vmatprep.subr.mxu0 0.0
        %3004 = vmatpush1.msra.mxu0 %v2902
        %3005 = vmatprep.subr.mxu0 0.0
        %3006 = vmatpush1.msra.mxu0 %v2903
        %3007 = vmatprep.subr.mxu0 0.0
        %3008 = vmatpush1.msra.mxu0 %v2904
        %3009 = vmatprep.subr.mxu0 0.0
        %3010 = vmatpush1.msra.mxu0 %v2905
        %3011 = vmatprep.subr.mxu0 0.0
        %3012 = vmatpush1.msra.mxu0 %v2906
        %3013 = vmatprep.subr.mxu0 0.0
        %3014 = vmatpush1.msra.mxu0 %v2907
        %3015 = vmatprep.subr.mxu0 0.0
        %3016 = vmatpush1.msra.mxu0 %v2908
        %3017 = vmatprep.subr.mxu0 0.0
        %3018 = vmatpush1.msra.mxu0 %v2909
        %3019 = vmatprep.subr.mxu0 0.0
        %3020 = vmatpush1.msra.mxu0 %v2910
        %3021 = vmatprep.subr.mxu0 0.0
        %3022 = vmatpush1.msra.mxu0 %v2911
        %3023 = vmatprep.subr.mxu0 0.0
        %3024 = vmatpush1.msra.mxu0 %v2912
        %3025 = vmatprep.subr.mxu0 0.0
        %3026 = vmatpush1.msra.mxu0 0.0
        %3027 = vmatprep.subr.mxu0 0.0
        %3028 = vmatpush1.msra.mxu0 0.0
        %3029 = vmatprep.subr.mxu0 0.0
        %3030 = vmatpush1.msra.mxu0 0.0
        %3031 = vmatprep.subr.mxu0 0.0
        %3032 = vmatpush1.msra.mxu0 0.0
        %3033 = vmatprep.subr.mxu0 0.0
        %3034 = vmatpush1.msra.mxu0 0.0
        %3035 = vmatprep.subr.mxu0 0.0
        %3036 = vmatpush1.msra.mxu0 0.0
        %3037 = vmatprep.subr.mxu0 0.0
        %3038 = vmatpush1.msra.mxu0 0.0
        %3039 = vmatprep.subr.mxu0 0.0
        %3040 = vmatpush1.msra.mxu0 0.0
        %3041 = vmatprep.subr.mxu0 0.0
        %3042 = vmatpush1.msra.mxu0 0.0
        %3043 = vmatprep.subr.mxu0 0.0
        %3044 = vmatpush1.msra.mxu0 0.0
        %3045 = vmatprep.subr.mxu0 0.0
        %3046 = vmatpush1.msra.mxu0 0.0
        %3047 = vmatprep.subr.mxu0 0.0
        %3048 = vmatpush1.msra.mxu0 0.0
        %3049 = vmatprep.subr.mxu0 0.0
        %3050 = vmatpush1.msra.mxu0 0.0
        %3051 = vmatprep.subr.mxu0 0.0
        %3052 = vmatpush1.msra.mxu0 0.0
        %3053 = vmatprep.subr.mxu0 0.0
        %3054 = vmatpush1.msra.mxu0 0.0
        %3055 = vmatprep.subr.mxu0 0.0
        %3056 = vmatpush1.msra.mxu0 0.0
        %3057 = vmatprep.mubr.f32.mxu0 0.0
        %3058 = vmatmul.mubr.f32.gmra.mrb[0].mxu0 %v2939
        %v3059 = vpop.f32.mrb[0].mxu0
        %v3060 = vadd.f32 0.0, %v3059
        %v3061 = vpop.f32.mrb[0].mxu0
        %3062 = vmatprep.mubr.f32.mxu0 0.0
        %3063 = vmatmul.mubr.f32.gmra.mrb[0].mxu0 %v2941
        %v3064 = vpop.f32.mrb[0].mxu0
        %v3065 = vadd.f32 0.0, %v3064
        %v3066 = vpop.f32.mrb[0].mxu0
        %3067 = vmatprep.mubr.f32.mxu0 0.0
        %3068 = vmatmul.mubr.f32.gmra.mrb[0].mxu0 %v2944
        %v3069 = vpop.f32.mrb[0].mxu0
        %v3070 = vadd.f32 0.0, %v3069
        %v3071 = vpop.f32.mrb[0].mxu0
        %3072 = vmatprep.mubr.f32.mxu0 0.0
        %3073 = vmatmul.mubr.f32.gmra.mrb[0].mxu0 %v2946
        %v3074 = vpop.f32.mrb[0].mxu0
        %v3075 = vadd.f32 0.0, %v3074
        %v3076 = vpop.f32.mrb[0].mxu0
        %3077 = vmatprep.mubr.f32.mxu0 0.0
        %3078 = vmatmul.mubr.f32.gmra.mrb[0].mxu0 %v2949
        %v3079 = vpop.f32.mrb[0].mxu0
        %v3080 = vadd.f32 0.0, %v3079
        %v3081 = vpop.f32.mrb[0].mxu0
        %3082 = vmatprep.mubr.f32.mxu0 0.0
        %3083 = vmatmul.mubr.f32.gmra.mrb[0].mxu0 %v2951
        %v3084 = vpop.f32.mrb[0].mxu0
        %v3085 = vadd.f32 0.0, %v3084
        %v3086 = vpop.f32.mrb[0].mxu0
        %3087 = vmatprep.mubr.f32.mxu0 0.0
        %3088 = vmatmul.mubr.f32.gmra.mrb[0].mxu0 %v2954
        %v3089 = vpop.f32.mrb[0].mxu0
        %v3090 = vadd.f32 0.0, %v3089
        %v3091 = vpop.f32.mrb[0].mxu0
        %3092 = vmatprep.mubr.f32.mxu0 0.0
        %3093 = vmatmul.mubr.f32.gmra.mrb[0].mxu0 %v2956
        %v3094 = vpop.f32.mrb[0].mxu0
        %v3095 = vadd.f32 0.0, %v3094
        %v3096 = vpop.f32.mrb[0].mxu0
        %3097 = vmatprep.mubr.f32.mxu0 0.0
        %3098 = vmatmul.mubr.f32.gmra.mrb[0].mxu0 %v2959
        %v3099 = vpop.f32.mrb[0].mxu0
        %v3100 = vadd.f32 0.0, %v3099
        %v3101 = vpop.f32.mrb[0].mxu0
        %3102 = vmatprep.mubr.f32.mxu0 0.0
        %3103 = vmatmul.mubr.f32.gmra.mrb[0].mxu0 %v2961
        %v3104 = vpop.f32.mrb[0].mxu0
        %v3105 = vadd.f32 0.0, %v3104
        %v3106 = vpop.f32.mrb[0].mxu0
        %3107 = vmatprep.mubr.f32.mxu0 0.0
        %3108 = vmatmul.mubr.f32.gmra.mrb[0].mxu0 %v2964
        %v3109 = vpop.f32.mrb[0].mxu0
        %v3110 = vadd.f32 0.0, %v3109
        %v3111 = vpop.f32.mrb[0].mxu0
        %3112 = vmatprep.mubr.f32.mxu0 0.0
        %3113 = vmatmul.mubr.f32.gmra.mrb[0].mxu0 %v2966
        %v3114 = vpop.f32.mrb[0].mxu0
        %v3115 = vadd.f32 0.0, %v3114
        %v3116 = vpop.f32.mrb[0].mxu0
        %3117 = vmatprep.mubr.f32.mxu0 0.0
        %3118 = vmatmul.mubr.f32.gmra.mrb[0].mxu0 %v2969
        %v3119 = vpop.f32.mrb[0].mxu0
        %v3120 = vadd.f32 0.0, %v3119
        %v3121 = vpop.f32.mrb[0].mxu0
        %3122 = vmatprep.mubr.f32.mxu0 0.0
        %3123 = vmatmul.mubr.f32.gmra.mrb[0].mxu0 %v2971
        %v3124 = vpop.f32.mrb[0].mxu0
        %v3125 = vadd.f32 0.0, %v3124
        %v3126 = vpop.f32.mrb[0].mxu0
        %3127 = vmatprep.mubr.f32.mxu0 0.0
        %3128 = vmatmul.mubr.f32.gmra.mrb[0].mxu0 %v2974
        %v3129 = vpop.f32.mrb[0].mxu0
        %v3130 = vadd.f32 0.0, %v3129
        %v3131 = vpop.f32.mrb[0].mxu0
        %3132 = vmatprep.mubr.f32.mxu0 0.0
        %3133 = vmatmul.mubr.f32.gmra.mrb[0].mxu0 %v2976
        %v3134 = vpop.f32.mrb[0].mxu0
        %v3135 = vadd.f32 0.0, %v3134
        %v3136 = vpop.f32.mrb[0].mxu0
        %3137 = vdwg.mxu0
        %v3138 = vadd.f32 %v2880, %v3060
        %v3139 = vadd.f32 %v2881, %v3065
        %v3140 = vadd.f32 %v2882, %v3070
        %v3141 = vadd.f32 %v2883, %v3075
        %v3142 = vadd.f32 %v2884, %v3080
        %v3143 = vadd.f32 %v2885, %v3085
        %v3144 = vadd.f32 %v2886, %v3090
        %v3145 = vadd.f32 %v2887, %v3095
        %v3146 = vadd.f32 %v2888, %v3100
        %v3147 = vadd.f32 %v2889, %v3105
        %v3148 = vadd.f32 %v2890, %v3110
        %v3149 = vadd.f32 %v2891, %v3115
        %v3150 = vadd.f32 %v2892, %v3120
        %v3151 = vadd.f32 %v2893, %v3125
        %v3152 = vadd.f32 %v2894, %v3130
        %v3153 = vadd.f32 %v2895, %v3135
        %s3154 = scalar_lea.vmem [#allocation5], 256
        %v3155 = vld [vmem:[%s3154] sm:$0xff]
        %v3156 = vld [vmem:[%s3154 + $0x8] sm:$0xff]
        %v3157 = vld [vmem:[%s3154 + $0x10] sm:$0xff]
        %v3158 = vld [vmem:[%s3154 + $0x18] sm:$0xff]
        %v3159 = vld [vmem:[%s3154 + $0x20] sm:$0xff]
        %v3160 = vld [vmem:[%s3154 + $0x28] sm:$0xff]
        %v3161 = vld [vmem:[%s3154 + $0x30] sm:$0xff]
        %v3162 = vld [vmem:[%s3154 + $0x38] sm:$0xff]
        %v3163 = vld [vmem:[%s3154 + $0x40] sm:$0xff]
        %v3164 = vld [vmem:[%s3154 + $0x48] sm:$0xff]
        %v3165 = vld [vmem:[%s3154 + $0x50] sm:$0xff]
        %v3166 = vld [vmem:[%s3154 + $0x58] sm:$0xff]
        %v3167 = vld [vmem:[%s3154 + $0x60] sm:$0xff]
        %v3168 = vld [vmem:[%s3154 + $0x68] sm:$0xff]
        %v3169 = vld [vmem:[%s3154 + $0x70] sm:$0xff]
        %v3170 = vld [vmem:[%s3154 + $0x78] sm:$0xff]
        %v3171 = vrot.slane %v2682, 2
        %v3172 = vrot.slane %v2683, 2
        %v3173 = vsel %vm1098, %v3171, %v3172
        %v3174 = vrot.slane %v2684, 2
        %v3175 = vsel %vm1098, %v3172, %v3174
        %v3176 = vrot.slane %v2685, 2
        %v3177 = vrot.slane %v2686, 2
        %v3178 = vsel %vm1098, %v3176, %v3177
        %v3179 = vrot.slane %v2687, 2
        %v3180 = vsel %vm1098, %v3177, %v3179
        %v3181 = vrot.slane %v2688, 2
        %v3182 = vrot.slane %v2689, 2
        %v3183 = vsel %vm1098, %v3181, %v3182
        %v3184 = vrot.slane %v2690, 2
        %v3185 = vsel %vm1098, %v3182, %v3184
        %v3186 = vrot.slane %v2691, 2
        %v3187 = vrot.slane %v2692, 2
        %v3188 = vsel %vm1098, %v3186, %v3187
        %v3189 = vrot.slane %v2693, 2
        %v3190 = vsel %vm1098, %v3187, %v3189
        %v3191 = vrot.slane %v2694, 2
        %v3192 = vrot.slane %v2695, 2
        %v3193 = vsel %vm1098, %v3191, %v3192
        %v3194 = vrot.slane %v2696, 2
        %v3195 = vsel %vm1098, %v3192, %v3194
        %v3196 = vrot.slane %v2697, 2
        %v3197 = vrot.slane %v2698, 2
        %v3198 = vsel %vm1098, %v3196, %v3197
        %v3199 = vrot.slane %v2699, 2
        %v3200 = vsel %vm1098, %v3197, %v3199
        %v3201 = vrot.slane %v2700, 2
        %v3202 = vrot.slane %v2701, 2
        %v3203 = vsel %vm1098, %v3201, %v3202
        %v3204 = vrot.slane %v2702, 2
        %v3205 = vsel %vm1098, %v3202, %v3204
        %v3206 = vrot.slane %v2703, 2
        %v3207 = vrot.slane %v2704, 2
        %v3208 = vsel %vm1098, %v3206, %v3207
        %v3209 = vrot.slane %v2705, 2
        %v3210 = vsel %vm1098, %v3207, %v3209
        %3227 = vmatprep.subr.mxu0 0.0
        %3228 = vmatpush1.msra.mxu0 %v3155
        %3229 = vmatprep.subr.mxu0 0.0
        %3230 = vmatpush1.msra.mxu0 %v3156
        %3231 = vmatprep.subr.mxu0 0.0
        %3232 = vmatpush1.msra.mxu0 %v3157
        %3233 = vmatprep.subr.mxu0 0.0
        %3234 = vmatpush1.msra.mxu0 %v3158
        %3235 = vmatprep.subr.mxu0 0.0
        %3236 = vmatpush1.msra.mxu0 %v3159
        %3237 = vmatprep.subr.mxu0 0.0
        %3238 = vmatpush1.msra.mxu0 %v3160
        %3239 = vmatprep.subr.mxu0 0.0
        %3240 = vmatpush1.msra.mxu0 %v3161
        %3241 = vmatprep.subr.mxu0 0.0
        %3242 = vmatpush1.msra.mxu0 %v3162
        %3243 = vmatprep.subr.mxu0 0.0
        %3244 = vmatpush1.msra.mxu0 %v3163
        %3245 = vmatprep.subr.mxu0 0.0
        %3246 = vmatpush1.msra.mxu0 %v3164
        %3247 = vmatprep.subr.mxu0 0.0
        %3248 = vmatpush1.msra.mxu0 %v3165
        %3249 = vmatprep.subr.mxu0 0.0
        %3250 = vmatpush1.msra.mxu0 %v3166
        %3251 = vmatprep.subr.mxu0 0.0
        %3252 = vmatpush1.msra.mxu0 %v3167
        %3253 = vmatprep.subr.mxu0 0.0
        %3254 = vmatpush1.msra.mxu0 %v3168
        %3255 = vmatprep.subr.mxu0 0.0
        %3256 = vmatpush1.msra.mxu0 %v3169
        %3257 = vmatprep.subr.mxu0 0.0
        %3258 = vmatpush1.msra.mxu0 %v3170
        %3259 = vmatprep.subr.mxu0 0.0
        %3260 = vmatpush1.msra.mxu0 0.0
        %3261 = vmatprep.subr.mxu0 0.0
        %3262 = vmatpush1.msra.mxu0 0.0
        %3263 = vmatprep.subr.mxu0 0.0
        %3264 = vmatpush1.msra.mxu0 0.0
        %3265 = vmatprep.subr.mxu0 0.0
        %3266 = vmatpush1.msra.mxu0 0.0
        %3267 = vmatprep.subr.mxu0 0.0
        %3268 = vmatpush1.msra.mxu0 0.0
        %3269 = vmatprep.subr.mxu0 0.0
        %3270 = vmatpush1.msra.mxu0 0.0
        %3271 = vmatprep.subr.mxu0 0.0
        %3272 = vmatpush1.msra.mxu0 0.0
        %3273 = vmatprep.subr.mxu0 0.0
        %3274 = vmatpush1.msra.mxu0 0.0
        %3275 = vmatprep.subr.mxu0 0.0
        %3276 = vmatpush1.msra.mxu0 0.0
        %3277 = vmatprep.subr.mxu0 0.0
        %3278 = vmatpush1.msra.mxu0 0.0
        %3279 = vmatprep.subr.mxu0 0.0
        %3280 = vmatpush1.msra.mxu0 0.0
        %3281 = vmatprep.subr.mxu0 0.0
        %3282 = vmatpush1.msra.mxu0 0.0
        %3283 = vmatprep.subr.mxu0 0.0
        %3284 = vmatpush1.msra.mxu0 0.0
        %3285 = vmatprep.subr.mxu0 0.0
        %3286 = vmatpush1.msra.mxu0 0.0
        %3287 = vmatprep.subr.mxu0 0.0
        %3288 = vmatpush1.msra.mxu0 0.0
        %3289 = vmatprep.subr.mxu0 0.0
        %3290 = vmatpush1.msra.mxu0 0.0
        %3291 = vmatprep.mubr.f32.mxu0 0.0
        %3292 = vmatmul.mubr.f32.gmra.mrb[0].mxu0 %v3173
        %v3293 = vpop.f32.mrb[0].mxu0
        %v3294 = vadd.f32 0.0, %v3293
        %v3295 = vpop.f32.mrb[0].mxu0
        %3296 = vmatprep.mubr.f32.mxu0 0.0
        %3297 = vmatmul.mubr.f32.gmra.mrb[0].mxu0 %v3175
        %v3298 = vpop.f32.mrb[0].mxu0
        %v3299 = vadd.f32 0.0, %v3298
        %v3300 = vpop.f32.mrb[0].mxu0
        %3301 = vmatprep.mubr.f32.mxu0 0.0
        %3302 = vmatmul.mubr.f32.gmra.mrb[0].mxu0 %v3178
        %v3303 = vpop.f32.mrb[0].mxu0
        %v3304 = vadd.f32 0.0, %v3303
        %v3305 = vpop.f32.mrb[0].mxu0
        %3306 = vmatprep.mubr.f32.mxu0 0.0
        %3307 = vmatmul.mubr.f32.gmra.mrb[0].mxu0 %v3180
        %v3308 = vpop.f32.mrb[0].mxu0
        %v3309 = vadd.f32 0.0, %v3308
        %v3310 = vpop.f32.mrb[0].mxu0
        %3311 = vmatprep.mubr.f32.mxu0 0.0
        %3312 = vmatmul.mubr.f32.gmra.mrb[0].mxu0 %v3183
        %v3313 = vpop.f32.mrb[0].mxu0
        %v3314 = vadd.f32 0.0, %v3313
        %v3315 = vpop.f32.mrb[0].mxu0
        %3316 = vmatprep.mubr.f32.mxu0 0.0
        %3317 = vmatmul.mubr.f32.gmra.mrb[0].mxu0 %v3185
        %v3318 = vpop.f32.mrb[0].mxu0
        %v3319 = vadd.f32 0.0, %v3318
        %v3320 = vpop.f32.mrb[0].mxu0
        %3321 = vmatprep.mubr.f32.mxu0 0.0
        %3322 = vmatmul.mubr.f32.gmra.mrb[0].mxu0 %v3188
        %v3323 = vpop.f32.mrb[0].mxu0
        %v3324 = vadd.f32 0.0, %v3323
        %v3325 = vpop.f32.mrb[0].mxu0
        %3326 = vmatprep.mubr.f32.mxu0 0.0
        %3327 = vmatmul.mubr.f32.gmra.mrb[0].mxu0 %v3190
        %v3328 = vpop.f32.mrb[0].mxu0
        %v3329 = vadd.f32 0.0, %v3328
        %v3330 = vpop.f32.mrb[0].mxu0
        %3331 = vmatprep.mubr.f32.mxu0 0.0
        %3332 = vmatmul.mubr.f32.gmra.mrb[0].mxu0 %v3193
        %v3333 = vpop.f32.mrb[0].mxu0
        %v3334 = vadd.f32 0.0, %v3333
        %v3335 = vpop.f32.mrb[0].mxu0
        %3336 = vmatprep.mubr.f32.mxu0 0.0
        %3337 = vmatmul.mubr.f32.gmra.mrb[0].mxu0 %v3195
        %v3338 = vpop.f32.mrb[0].mxu0
        %v3339 = vadd.f32 0.0, %v3338
        %v3340 = vpop.f32.mrb[0].mxu0
        %3341 = vmatprep.mubr.f32.mxu0 0.0
        %3342 = vmatmul.mubr.f32.gmra.mrb[0].mxu0 %v3198
        %v3343 = vpop.f32.mrb[0].mxu0
        %v3344 = vadd.f32 0.0, %v3343
        %v3345 = vpop.f32.mrb[0].mxu0
        %3346 = vmatprep.mubr.f32.mxu0 0.0
        %3347 = vmatmul.mubr.f32.gmra.mrb[0].mxu0 %v3200
        %v3348 = vpop.f32.mrb[0].mxu0
        %v3349 = vadd.f32 0.0, %v3348
        %v3350 = vpop.f32.mrb[0].mxu0
        %3351 = vmatprep.mubr.f32.mxu0 0.0
        %3352 = vmatmul.mubr.f32.gmra.mrb[0].mxu0 %v3203
        %v3353 = vpop.f32.mrb[0].mxu0
        %v3354 = vadd.f32 0.0, %v3353
        %v3355 = vpop.f32.mrb[0].mxu0
        %3356 = vmatprep.mubr.f32.mxu0 0.0
        %3357 = vmatmul.mubr.f32.gmra.mrb[0].mxu0 %v3205
        %v3358 = vpop.f32.mrb[0].mxu0
        %v3359 = vadd.f32 0.0, %v3358
        %v3360 = vpop.f32.mrb[0].mxu0
        %3361 = vmatprep.mubr.f32.mxu0 0.0
        %3362 = vmatmul.mubr.f32.gmra.mrb[0].mxu0 %v3208
        %v3363 = vpop.f32.mrb[0].mxu0
        %v3364 = vadd.f32 0.0, %v3363
        %v3365 = vpop.f32.mrb[0].mxu0
        %3366 = vmatprep.mubr.f32.mxu0 0.0
        %3367 = vmatmul.mubr.f32.gmra.mrb[0].mxu0 %v3210
        %v3368 = vpop.f32.mrb[0].mxu0
        %v3369 = vadd.f32 0.0, %v3368
        %v3370 = vpop.f32.mrb[0].mxu0
        %3371 = vdwg.mxu0
        %v3372 = vadd.f32 %v3138, %v3294
        %v3373 = vadd.f32 %v3139, %v3299
        %v3374 = vadd.f32 %v3140, %v3304
        %v3375 = vadd.f32 %v3141, %v3309
        %v3376 = vadd.f32 %v3142, %v3314
        %v3377 = vadd.f32 %v3143, %v3319
        %v3378 = vadd.f32 %v3144, %v3324
        %v3379 = vadd.f32 %v3145, %v3329
        %v3380 = vadd.f32 %v3146, %v3334
        %v3381 = vadd.f32 %v3147, %v3339
        %v3382 = vadd.f32 %v3148, %v3344
        %v3383 = vadd.f32 %v3149, %v3349
        %v3384 = vadd.f32 %v3150, %v3354
        %v3385 = vadd.f32 %v3151, %v3359
        %v3386 = vadd.f32 %v3152, %v3364
        %v3387 = vadd.f32 %v3153, %v3369
        %s3388 = scalar_lea.vmem [#allocation5], 384
        %v3389 = vld [vmem:[%s3388] sm:$0xff]
        %v3390 = vld [vmem:[%s3388 + $0x8] sm:$0xff]
        %v3391 = vld [vmem:[%s3388 + $0x10] sm:$0xff]
        %v3392 = vld [vmem:[%s3388 + $0x18] sm:$0xff]
        %v3393 = vld [vmem:[%s3388 + $0x20] sm:$0xff]
        %v3394 = vld [vmem:[%s3388 + $0x28] sm:$0xff]
        %v3395 = vld [vmem:[%s3388 + $0x30] sm:$0xff]
        %v3396 = vld [vmem:[%s3388 + $0x38] sm:$0xff]
        %v3397 = vld [vmem:[%s3388 + $0x40] sm:$0xff]
        %v3398 = vld [vmem:[%s3388 + $0x48] sm:$0xff]
        %v3399 = vld [vmem:[%s3388 + $0x50] sm:$0xff]
        %v3400 = vld [vmem:[%s3388 + $0x58] sm:$0xff]
        %v3401 = vld [vmem:[%s3388 + $0x60] sm:$0xff]
        %v3402 = vld [vmem:[%s3388 + $0x68] sm:$0xff]
        %v3403 = vld [vmem:[%s3388 + $0x70] sm:$0xff]
        %v3404 = vld [vmem:[%s3388 + $0x78] sm:$0xff]
        %3405 = vmatprep.subr.mxu0 0.0
        %3406 = vmatpush1.msra.mxu0 %v3389
        %3407 = vmatprep.subr.mxu0 0.0
        %3408 = vmatpush1.msra.mxu0 %v3390
        %3409 = vmatprep.subr.mxu0 0.0
        %3410 = vmatpush1.msra.mxu0 %v3391
        %3411 = vmatprep.subr.mxu0 0.0
        %3412 = vmatpush1.msra.mxu0 %v3392
        %3413 = vmatprep.subr.mxu0 0.0
        %3414 = vmatpush1.msra.mxu0 %v3393
        %3415 = vmatprep.subr.mxu0 0.0
        %3416 = vmatpush1.msra.mxu0 %v3394
        %3417 = vmatprep.subr.mxu0 0.0
        %3418 = vmatpush1.msra.mxu0 %v3395
        %3419 = vmatprep.subr.mxu0 0.0
        %3420 = vmatpush1.msra.mxu0 %v3396
        %3421 = vmatprep.subr.mxu0 0.0
        %3422 = vmatpush1.msra.mxu0 %v3397
        %3423 = vmatprep.subr.mxu0 0.0
        %3424 = vmatpush1.msra.mxu0 %v3398
        %3425 = vmatprep.subr.mxu0 0.0
        %3426 = vmatpush1.msra.mxu0 %v3399
        %3427 = vmatprep.subr.mxu0 0.0
        %3428 = vmatpush1.msra.mxu0 %v3400
        %3429 = vmatprep.subr.mxu0 0.0
        %3430 = vmatpush1.msra.mxu0 %v3401
        %3431 = vmatprep.subr.mxu0 0.0
        %3432 = vmatpush1.msra.mxu0 %v3402
        %3433 = vmatprep.subr.mxu0 0.0
        %3434 = vmatpush1.msra.mxu0 %v3403
        %3435 = vmatprep.subr.mxu0 0.0
        %3436 = vmatpush1.msra.mxu0 %v3404
        %3437 = vmatprep.subr.mxu0 0.0
        %3438 = vmatpush1.msra.mxu0 0.0
        %3439 = vmatprep.subr.mxu0 0.0
        %3440 = vmatpush1.msra.mxu0 0.0
        %3441 = vmatprep.subr.mxu0 0.0
        %3442 = vmatpush1.msra.mxu0 0.0
        %3443 = vmatprep.subr.mxu0 0.0
        %3444 = vmatpush1.msra.mxu0 0.0
        %3445 = vmatprep.subr.mxu0 0.0
        %3446 = vmatpush1.msra.mxu0 0.0
        %3447 = vmatprep.subr.mxu0 0.0
        %3448 = vmatpush1.msra.mxu0 0.0
        %3449 = vmatprep.subr.mxu0 0.0
        %3450 = vmatpush1.msra.mxu0 0.0
        %3451 = vmatprep.subr.mxu0 0.0
        %3452 = vmatpush1.msra.mxu0 0.0
        %3453 = vmatprep.subr.mxu0 0.0
        %3454 = vmatpush1.msra.mxu0 0.0
        %3455 = vmatprep.subr.mxu0 0.0
        %3456 = vmatpush1.msra.mxu0 0.0
        %3457 = vmatprep.subr.mxu0 0.0
        %3458 = vmatpush1.msra.mxu0 0.0
        %3459 = vmatprep.subr.mxu0 0.0
        %3460 = vmatpush1.msra.mxu0 0.0
        %3461 = vmatprep.subr.mxu0 0.0
        %3462 = vmatpush1.msra.mxu0 0.0
        %3463 = vmatprep.subr.mxu0 0.0
        %3464 = vmatpush1.msra.mxu0 0.0
        %3465 = vmatprep.subr.mxu0 0.0
        %3466 = vmatpush1.msra.mxu0 0.0
        %3467 = vmatprep.subr.mxu0 0.0
        %3468 = vmatpush1.msra.mxu0 0.0
        %3469 = vmatprep.mubr.f32.mxu0 0.0
        %3470 = vmatmul.mubr.f32.gmra.mrb[0].mxu0 %v2685
        %v3471 = vpop.f32.mrb[0].mxu0
        %v3472 = vadd.f32 0.0, %v3471
        %v3473 = vpop.f32.mrb[0].mxu0
        %3474 = vmatprep.mubr.f32.mxu0 0.0
        %3475 = vmatmul.mubr.f32.gmra.mrb[0].mxu0 %v2686
        %v3476 = vpop.f32.mrb[0].mxu0
        %v3477 = vadd.f32 0.0, %v3476
        %v3478 = vpop.f32.mrb[0].mxu0
        %3479 = vmatprep.mubr.f32.mxu0 0.0
        %3480 = vmatmul.mubr.f32.gmra.mrb[0].mxu0 %v2688
        %v3481 = vpop.f32.mrb[0].mxu0
        %v3482 = vadd.f32 0.0, %v3481
        %v3483 = vpop.f32.mrb[0].mxu0
        %3484 = vmatprep.mubr.f32.mxu0 0.0
        %3485 = vmatmul.mubr.f32.gmra.mrb[0].mxu0 %v2689
        %v3486 = vpop.f32.mrb[0].mxu0
        %v3487 = vadd.f32 0.0, %v3486
        %v3488 = vpop.f32.mrb[0].mxu0
        %3489 = vmatprep.mubr.f32.mxu0 0.0
        %3490 = vmatmul.mubr.f32.gmra.mrb[0].mxu0 %v2691
        %v3491 = vpop.f32.mrb[0].mxu0
        %v3492 = vadd.f32 0.0, %v3491
        %v3493 = vpop.f32.mrb[0].mxu0
        %3494 = vmatprep.mubr.f32.mxu0 0.0
        %3495 = vmatmul.mubr.f32.gmra.mrb[0].mxu0 %v2692
        %v3496 = vpop.f32.mrb[0].mxu0
        %v3497 = vadd.f32 0.0, %v3496
        %v3498 = vpop.f32.mrb[0].mxu0
        %3499 = vmatprep.mubr.f32.mxu0 0.0
        %3500 = vmatmul.mubr.f32.gmra.mrb[0].mxu0 %v2694
        %v3501 = vpop.f32.mrb[0].mxu0
        %v3502 = vadd.f32 0.0, %v3501
        %v3503 = vpop.f32.mrb[0].mxu0
        %3504 = vmatprep.mubr.f32.mxu0 0.0
        %3505 = vmatmul.mubr.f32.gmra.mrb[0].mxu0 %v2695
        %v3506 = vpop.f32.mrb[0].mxu0
        %v3507 = vadd.f32 0.0, %v3506
        %v3508 = vpop.f32.mrb[0].mxu0
        %3509 = vmatprep.mubr.f32.mxu0 0.0
        %3510 = vmatmul.mubr.f32.gmra.mrb[0].mxu0 %v2697
        %v3511 = vpop.f32.mrb[0].mxu0
        %v3512 = vadd.f32 0.0, %v3511
        %v3513 = vpop.f32.mrb[0].mxu0
        %3514 = vmatprep.mubr.f32.mxu0 0.0
        %3515 = vmatmul.mubr.f32.gmra.mrb[0].mxu0 %v2698
        %v3516 = vpop.f32.mrb[0].mxu0
        %v3517 = vadd.f32 0.0, %v3516
        %v3518 = vpop.f32.mrb[0].mxu0
        %3519 = vmatprep.mubr.f32.mxu0 0.0
        %3520 = vmatmul.mubr.f32.gmra.mrb[0].mxu0 %v2700
        %v3521 = vpop.f32.mrb[0].mxu0
        %v3522 = vadd.f32 0.0, %v3521
        %v3523 = vpop.f32.mrb[0].mxu0
        %3524 = vmatprep.mubr.f32.mxu0 0.0
        %3525 = vmatmul.mubr.f32.gmra.mrb[0].mxu0 %v2701
        %v3526 = vpop.f32.mrb[0].mxu0
        %v3527 = vadd.f32 0.0, %v3526
        %v3528 = vpop.f32.mrb[0].mxu0
        %3529 = vmatprep.mubr.f32.mxu0 0.0
        %3530 = vmatmul.mubr.f32.gmra.mrb[0].mxu0 %v2703
        %v3531 = vpop.f32.mrb[0].mxu0
        %v3532 = vadd.f32 0.0, %v3531
        %v3533 = vpop.f32.mrb[0].mxu0
        %3534 = vmatprep.mubr.f32.mxu0 0.0
        %3535 = vmatmul.mubr.f32.gmra.mrb[0].mxu0 %v2704
        %v3536 = vpop.f32.mrb[0].mxu0
        %v3537 = vadd.f32 0.0, %v3536
        %v3538 = vpop.f32.mrb[0].mxu0
        %3539 = vmatprep.mubr.f32.mxu0 0.0
        %3540 = vmatmul.mubr.f32.gmra.mrb[0].mxu0 %v2706
        %v3541 = vpop.f32.mrb[0].mxu0
        %v3542 = vadd.f32 0.0, %v3541
        %v3543 = vpop.f32.mrb[0].mxu0
        %3544 = vmatprep.mubr.f32.mxu0 0.0
        %3545 = vmatmul.mubr.f32.gmra.mrb[0].mxu0 %v2707
        %v3546 = vpop.f32.mrb[0].mxu0
        %v3547 = vadd.f32 0.0, %v3546
        %v3548 = vpop.f32.mrb[0].mxu0
        %3549 = vdwg.mxu0
        %v3550 = vadd.f32 %v3372, %v3472
        %v3551 = vadd.f32 %v3373, %v3477
        %v3552 = vadd.f32 %v3374, %v3482
        %v3553 = vadd.f32 %v3375, %v3487
        %v3554 = vadd.f32 %v3376, %v3492
        %v3555 = vadd.f32 %v3377, %v3497
        %v3556 = vadd.f32 %v3378, %v3502
        %v3557 = vadd.f32 %v3379, %v3507
        %v3558 = vadd.f32 %v3380, %v3512
        %v3559 = vadd.f32 %v3381, %v3517
        %v3560 = vadd.f32 %v3382, %v3522
        %v3561 = vadd.f32 %v3383, %v3527
        %v3562 = vadd.f32 %v3384, %v3532
        %v3563 = vadd.f32 %v3385, %v3537
        %v3564 = vadd.f32 %v3386, %v3542
        %v3565 = vadd.f32 %v3387, %v3547
        %s3566 = scalar_lea.vmem [#allocation5], 512
        %v3567 = vld [vmem:[%s3566] sm:$0xff]
        %v3568 = vld [vmem:[%s3566 + $0x8] sm:$0xff]
        %v3569 = vld [vmem:[%s3566 + $0x10] sm:$0xff]
        %v3570 = vld [vmem:[%s3566 + $0x18] sm:$0xff]
        %v3571 = vld [vmem:[%s3566 + $0x20] sm:$0xff]
        %v3572 = vld [vmem:[%s3566 + $0x28] sm:$0xff]
        %v3573 = vld [vmem:[%s3566 + $0x30] sm:$0xff]
        %v3574 = vld [vmem:[%s3566 + $0x38] sm:$0xff]
        %v3575 = vld [vmem:[%s3566 + $0x40] sm:$0xff]
        %v3576 = vld [vmem:[%s3566 + $0x48] sm:$0xff]
        %v3577 = vld [vmem:[%s3566 + $0x50] sm:$0xff]
        %v3578 = vld [vmem:[%s3566 + $0x58] sm:$0xff]
        %v3579 = vld [vmem:[%s3566 + $0x60] sm:$0xff]
        %v3580 = vld [vmem:[%s3566 + $0x68] sm:$0xff]
        %v3581 = vld [vmem:[%s3566 + $0x70] sm:$0xff]
        %v3582 = vld [vmem:[%s3566 + $0x78] sm:$0xff]
        %v3586 = vrot.slane %v2706, 1
        %v3587 = vrot.slane %v2707, 1
        %v3588 = vsel %vm825, %v3586, %v3587
        %v3589 = vrot.slane %v2708, 1
        %v3590 = vsel %vm825, %v3587, %v3589
        %3593 = vmatprep.subr.mxu0 0.0
        %3594 = vmatpush1.msra.mxu0 %v3567
        %3595 = vmatprep.subr.mxu0 0.0
        %3596 = vmatpush1.msra.mxu0 %v3568
        %3597 = vmatprep.subr.mxu0 0.0
        %3598 = vmatpush1.msra.mxu0 %v3569
        %3599 = vmatprep.subr.mxu0 0.0
        %3600 = vmatpush1.msra.mxu0 %v3570
        %3601 = vmatprep.subr.mxu0 0.0
        %3602 = vmatpush1.msra.mxu0 %v3571
        %3603 = vmatprep.subr.mxu0 0.0
        %3604 = vmatpush1.msra.mxu0 %v3572
        %3605 = vmatprep.subr.mxu0 0.0
        %3606 = vmatpush1.msra.mxu0 %v3573
        %3607 = vmatprep.subr.mxu0 0.0
        %3608 = vmatpush1.msra.mxu0 %v3574
        %3609 = vmatprep.subr.mxu0 0.0
        %3610 = vmatpush1.msra.mxu0 %v3575
        %3611 = vmatprep.subr.mxu0 0.0
        %3612 = vmatpush1.msra.mxu0 %v3576
        %3613 = vmatprep.subr.mxu0 0.0
        %3614 = vmatpush1.msra.mxu0 %v3577
        %3615 = vmatprep.subr.mxu0 0.0
        %3616 = vmatpush1.msra.mxu0 %v3578
        %3617 = vmatprep.subr.mxu0 0.0
        %3618 = vmatpush1.msra.mxu0 %v3579
        %3619 = vmatprep.subr.mxu0 0.0
        %3620 = vmatpush1.msra.mxu0 %v3580
        %3621 = vmatprep.subr.mxu0 0.0
        %3622 = vmatpush1.msra.mxu0 %v3581
        %3623 = vmatprep.subr.mxu0 0.0
        %3624 = vmatpush1.msra.mxu0 %v3582
        %3625 = vmatprep.subr.mxu0 0.0
        %3626 = vmatpush1.msra.mxu0 0.0
        %3627 = vmatprep.subr.mxu0 0.0
        %3628 = vmatpush1.msra.mxu0 0.0
        %3629 = vmatprep.subr.mxu0 0.0
        %3630 = vmatpush1.msra.mxu0 0.0
        %3631 = vmatprep.subr.mxu0 0.0
        %3632 = vmatpush1.msra.mxu0 0.0
        %3633 = vmatprep.subr.mxu0 0.0
        %3634 = vmatpush1.msra.mxu0 0.0
        %3635 = vmatprep.subr.mxu0 0.0
        %3636 = vmatpush1.msra.mxu0 0.0
        %3637 = vmatprep.subr.mxu0 0.0
        %3638 = vmatpush1.msra.mxu0 0.0
        %3639 = vmatprep.subr.mxu0 0.0
        %3640 = vmatpush1.msra.mxu0 0.0
        %3641 = vmatprep.subr.mxu0 0.0
        %3642 = vmatpush1.msra.mxu0 0.0
        %3643 = vmatprep.subr.mxu0 0.0
        %3644 = vmatpush1.msra.mxu0 0.0
        %3645 = vmatprep.subr.mxu0 0.0
        %3646 = vmatpush1.msra.mxu0 0.0
        %3647 = vmatprep.subr.mxu0 0.0
        %3648 = vmatpush1.msra.mxu0 0.0
        %3649 = vmatprep.subr.mxu0 0.0
        %3650 = vmatpush1.msra.mxu0 0.0
        %3651 = vmatprep.subr.mxu0 0.0
        %3652 = vmatpush1.msra.mxu0 0.0
        %3653 = vmatprep.subr.mxu0 0.0
        %3654 = vmatpush1.msra.mxu0 0.0
        %3655 = vmatprep.subr.mxu0 0.0
        %3656 = vmatpush1.msra.mxu0 0.0
        %3657 = vmatprep.mubr.f32.mxu0 0.0
        %3658 = vmatmul.mubr.f32.gmra.mrb[0].mxu0 %v2944
        %v3659 = vpop.f32.mrb[0].mxu0
        %v3660 = vadd.f32 0.0, %v3659
        %v3661 = vpop.f32.mrb[0].mxu0
        %3662 = vmatprep.mubr.f32.mxu0 0.0
        %3663 = vmatmul.mubr.f32.gmra.mrb[0].mxu0 %v2946
        %v3664 = vpop.f32.mrb[0].mxu0
        %v3665 = vadd.f32 0.0, %v3664
        %v3666 = vpop.f32.mrb[0].mxu0
        %3667 = vmatprep.mubr.f32.mxu0 0.0
        %3668 = vmatmul.mubr.f32.gmra.mrb[0].mxu0 %v2949
        %v3669 = vpop.f32.mrb[0].mxu0
        %v3670 = vadd.f32 0.0, %v3669
        %v3671 = vpop.f32.mrb[0].mxu0
        %3672 = vmatprep.mubr.f32.mxu0 0.0
        %3673 = vmatmul.mubr.f32.gmra.mrb[0].mxu0 %v2951
        %v3674 = vpop.f32.mrb[0].mxu0
        %v3675 = vadd.f32 0.0, %v3674
        %v3676 = vpop.f32.mrb[0].mxu0
        %3677 = vmatprep.mubr.f32.mxu0 0.0
        %3678 = vmatmul.mubr.f32.gmra.mrb[0].mxu0 %v2954
        %v3679 = vpop.f32.mrb[0].mxu0
        %v3680 = vadd.f32 0.0, %v3679
        %v3681 = vpop.f32.mrb[0].mxu0
        %3682 = vmatprep.mubr.f32.mxu0 0.0
        %3683 = vmatmul.mubr.f32.gmra.mrb[0].mxu0 %v2956
        %v3684 = vpop.f32.mrb[0].mxu0
        %v3685 = vadd.f32 0.0, %v3684
        %v3686 = vpop.f32.mrb[0].mxu0
        %3687 = vmatprep.mubr.f32.mxu0 0.0
        %3688 = vmatmul.mubr.f32.gmra.mrb[0].mxu0 %v2959
        %v3689 = vpop.f32.mrb[0].mxu0
        %v3690 = vadd.f32 0.0, %v3689
        %v3691 = vpop.f32.mrb[0].mxu0
        %3692 = vmatprep.mubr.f32.mxu0 0.0
        %3693 = vmatmul.mubr.f32.gmra.mrb[0].mxu0 %v2961
        %v3694 = vpop.f32.mrb[0].mxu0
        %v3695 = vadd.f32 0.0, %v3694
        %v3696 = vpop.f32.mrb[0].mxu0
        %3697 = vmatprep.mubr.f32.mxu0 0.0
        %3698 = vmatmul.mubr.f32.gmra.mrb[0].mxu0 %v2964
        %v3699 = vpop.f32.mrb[0].mxu0
        %v3700 = vadd.f32 0.0, %v3699
        %v3701 = vpop.f32.mrb[0].mxu0
        %3702 = vmatprep.mubr.f32.mxu0 0.0
        %3703 = vmatmul.mubr.f32.gmra.mrb[0].mxu0 %v2966
        %v3704 = vpop.f32.mrb[0].mxu0
        %v3705 = vadd.f32 0.0, %v3704
        %v3706 = vpop.f32.mrb[0].mxu0
        %3707 = vmatprep.mubr.f32.mxu0 0.0
        %3708 = vmatmul.mubr.f32.gmra.mrb[0].mxu0 %v2969
        %v3709 = vpop.f32.mrb[0].mxu0
        %v3710 = vadd.f32 0.0, %v3709
        %v3711 = vpop.f32.mrb[0].mxu0
        %3712 = vmatprep.mubr.f32.mxu0 0.0
        %3713 = vmatmul.mubr.f32.gmra.mrb[0].mxu0 %v2971
        %v3714 = vpop.f32.mrb[0].mxu0
        %v3715 = vadd.f32 0.0, %v3714
        %v3716 = vpop.f32.mrb[0].mxu0
        %3717 = vmatprep.mubr.f32.mxu0 0.0
        %3718 = vmatmul.mubr.f32.gmra.mrb[0].mxu0 %v2974
        %v3719 = vpop.f32.mrb[0].mxu0
        %v3720 = vadd.f32 0.0, %v3719
        %v3721 = vpop.f32.mrb[0].mxu0
        %3722 = vmatprep.mubr.f32.mxu0 0.0
        %3723 = vmatmul.mubr.f32.gmra.mrb[0].mxu0 %v2976
        %v3724 = vpop.f32.mrb[0].mxu0
        %v3725 = vadd.f32 0.0, %v3724
        %v3726 = vpop.f32.mrb[0].mxu0
        %3727 = vmatprep.mubr.f32.mxu0 0.0
        %3728 = vmatmul.mubr.f32.gmra.mrb[0].mxu0 %v3588
        %v3729 = vpop.f32.mrb[0].mxu0
        %v3730 = vadd.f32 0.0, %v3729
        %v3731 = vpop.f32.mrb[0].mxu0
        %3732 = vmatprep.mubr.f32.mxu0 0.0
        %3733 = vmatmul.mubr.f32.gmra.mrb[0].mxu0 %v3590
        %v3734 = vpop.f32.mrb[0].mxu0
        %v3735 = vadd.f32 0.0, %v3734
        %v3736 = vpop.f32.mrb[0].mxu0
        %3737 = vdwg.mxu0
        %v3738 = vadd.f32 %v3550, %v3660
        %v3739 = vadd.f32 %v3551, %v3665
        %v3740 = vadd.f32 %v3552, %v3670
        %v3741 = vadd.f32 %v3553, %v3675
        %v3742 = vadd.f32 %v3554, %v3680
        %v3743 = vadd.f32 %v3555, %v3685
        %v3744 = vadd.f32 %v3556, %v3690
        %v3745 = vadd.f32 %v3557, %v3695
        %v3746 = vadd.f32 %v3558, %v3700
        %v3747 = vadd.f32 %v3559, %v3705
        %v3748 = vadd.f32 %v3560, %v3710
        %v3749 = vadd.f32 %v3561, %v3715
        %v3750 = vadd.f32 %v3562, %v3720
        %v3751 = vadd.f32 %v3563, %v3725
        %v3752 = vadd.f32 %v3564, %v3730
        %v3753 = vadd.f32 %v3565, %v3735
        %s3754 = scalar_lea.vmem [#allocation5], 640
        %v3755 = vld [vmem:[%s3754] sm:$0xff]
        %v3756 = vld [vmem:[%s3754 + $0x8] sm:$0xff]
        %v3757 = vld [vmem:[%s3754 + $0x10] sm:$0xff]
        %v3758 = vld [vmem:[%s3754 + $0x18] sm:$0xff]
        %v3759 = vld [vmem:[%s3754 + $0x20] sm:$0xff]
        %v3760 = vld [vmem:[%s3754 + $0x28] sm:$0xff]
        %v3761 = vld [vmem:[%s3754 + $0x30] sm:$0xff]
        %v3762 = vld [vmem:[%s3754 + $0x38] sm:$0xff]
        %v3763 = vld [vmem:[%s3754 + $0x40] sm:$0xff]
        %v3764 = vld [vmem:[%s3754 + $0x48] sm:$0xff]
        %v3765 = vld [vmem:[%s3754 + $0x50] sm:$0xff]
        %v3766 = vld [vmem:[%s3754 + $0x58] sm:$0xff]
        %v3767 = vld [vmem:[%s3754 + $0x60] sm:$0xff]
        %v3768 = vld [vmem:[%s3754 + $0x68] sm:$0xff]
        %v3769 = vld [vmem:[%s3754 + $0x70] sm:$0xff]
        %v3770 = vld [vmem:[%s3754 + $0x78] sm:$0xff]
        %v3771 = vrot.slane %v2706, 2
        %v3772 = vrot.slane %v2707, 2
        %v3773 = vsel %vm1098, %v3771, %v3772
        %v3774 = vrot.slane %v2708, 2
        %v3775 = vsel %vm1098, %v3772, %v3774
        %3778 = vmatprep.subr.mxu0 0.0
        %3779 = vmatpush1.msra.mxu0 %v3755
        %3780 = vmatprep.subr.mxu0 0.0
        %3781 = vmatpush1.msra.mxu0 %v3756
        %3782 = vmatprep.subr.mxu0 0.0
        %3783 = vmatpush1.msra.mxu0 %v3757
        %3784 = vmatprep.subr.mxu0 0.0
        %3785 = vmatpush1.msra.mxu0 %v3758
        %3786 = vmatprep.subr.mxu0 0.0
        %3787 = vmatpush1.msra.mxu0 %v3759
        %3788 = vmatprep.subr.mxu0 0.0
        %3789 = vmatpush1.msra.mxu0 %v3760
        %3790 = vmatprep.subr.mxu0 0.0
        %3791 = vmatpush1.msra.mxu0 %v3761
        %3792 = vmatprep.subr.mxu0 0.0
        %3793 = vmatpush1.msra.mxu0 %v3762
        %3794 = vmatprep.subr.mxu0 0.0
        %3795 = vmatpush1.msra.mxu0 %v3763
        %3796 = vmatprep.subr.mxu0 0.0
        %3797 = vmatpush1.msra.mxu0 %v3764
        %3798 = vmatprep.subr.mxu0 0.0
        %3799 = vmatpush1.msra.mxu0 %v3765
        %3800 = vmatprep.subr.mxu0 0.0
        %3801 = vmatpush1.msra.mxu0 %v3766
        %3802 = vmatprep.subr.mxu0 0.0
        %3803 = vmatpush1.msra.mxu0 %v3767
        %3804 = vmatprep.subr.mxu0 0.0
        %3805 = vmatpush1.msra.mxu0 %v3768
        %3806 = vmatprep.subr.mxu0 0.0
        %3807 = vmatpush1.msra.mxu0 %v3769
        %3808 = vmatprep.subr.mxu0 0.0
        %3809 = vmatpush1.msra.mxu0 %v3770
        %3810 = vmatprep.subr.mxu0 0.0
        %3811 = vmatpush1.msra.mxu0 0.0
        %3812 = vmatprep.subr.mxu0 0.0
        %3813 = vmatpush1.msra.mxu0 0.0
        %3814 = vmatprep.subr.mxu0 0.0
        %3815 = vmatpush1.msra.mxu0 0.0
        %3816 = vmatprep.subr.mxu0 0.0
        %3817 = vmatpush1.msra.mxu0 0.0
        %3818 = vmatprep.subr.mxu0 0.0
        %3819 = vmatpush1.msra.mxu0 0.0
        %3820 = vmatprep.subr.mxu0 0.0
        %3821 = vmatpush1.msra.mxu0 0.0
        %3822 = vmatprep.subr.mxu0 0.0
        %3823 = vmatpush1.msra.mxu0 0.0
        %3824 = vmatprep.subr.mxu0 0.0
        %3825 = vmatpush1.msra.mxu0 0.0
        %3826 = vmatprep.subr.mxu0 0.0
        %3827 = vmatpush1.msra.mxu0 0.0
        %3828 = vmatprep.subr.mxu0 0.0
        %3829 = vmatpush1.msra.mxu0 0.0
        %3830 = vmatprep.subr.mxu0 0.0
        %3831 = vmatpush1.msra.mxu0 0.0
        %3832 = vmatprep.subr.mxu0 0.0
        %3833 = vmatpush1.msra.mxu0 0.0
        %3834 = vmatprep.subr.mxu0 0.0
        %3835 = vmatpush1.msra.mxu0 0.0
        %3836 = vmatprep.subr.mxu0 0.0
        %3837 = vmatpush1.msra.mxu0 0.0
        %3838 = vmatprep.subr.mxu0 0.0
        %3839 = vmatpush1.msra.mxu0 0.0
        %3840 = vmatprep.subr.mxu0 0.0
        %3841 = vmatpush1.msra.mxu0 0.0
        %3842 = vmatprep.mubr.f32.mxu0 0.0
        %3843 = vmatmul.mubr.f32.gmra.mrb[0].mxu0 %v3178
        %v3844 = vpop.f32.mrb[0].mxu0
        %v3845 = vadd.f32 0.0, %v3844
        %v3846 = vpop.f32.mrb[0].mxu0
        %3847 = vmatprep.mubr.f32.mxu0 0.0
        %3848 = vmatmul.mubr.f32.gmra.mrb[0].mxu0 %v3180
        %v3849 = vpop.f32.mrb[0].mxu0
        %v3850 = vadd.f32 0.0, %v3849
        %v3851 = vpop.f32.mrb[0].mxu0
        %3852 = vmatprep.mubr.f32.mxu0 0.0
        %3853 = vmatmul.mubr.f32.gmra.mrb[0].mxu0 %v3183
        %v3854 = vpop.f32.mrb[0].mxu0
        %v3855 = vadd.f32 0.0, %v3854
        %v3856 = vpop.f32.mrb[0].mxu0
        %3857 = vmatprep.mubr.f32.mxu0 0.0
        %3858 = vmatmul.mubr.f32.gmra.mrb[0].mxu0 %v3185
        %v3859 = vpop.f32.mrb[0].mxu0
        %v3860 = vadd.f32 0.0, %v3859
        %v3861 = vpop.f32.mrb[0].mxu0
        %3862 = vmatprep.mubr.f32.mxu0 0.0
        %3863 = vmatmul.mubr.f32.gmra.mrb[0].mxu0 %v3188
        %v3864 = vpop.f32.mrb[0].mxu0
        %v3865 = vadd.f32 0.0, %v3864
        %v3866 = vpop.f32.mrb[0].mxu0
        %3867 = vmatprep.mubr.f32.mxu0 0.0
        %3868 = vmatmul.mubr.f32.gmra.mrb[0].mxu0 %v3190
        %v3869 = vpop.f32.mrb[0].mxu0
        %v3870 = vadd.f32 0.0, %v3869
        %v3871 = vpop.f32.mrb[0].mxu0
        %3872 = vmatprep.mubr.f32.mxu0 0.0
        %3873 = vmatmul.mubr.f32.gmra.mrb[0].mxu0 %v3193
        %v3874 = vpop.f32.mrb[0].mxu0
        %v3875 = vadd.f32 0.0, %v3874
        %v3876 = vpop.f32.mrb[0].mxu0
        %3877 = vmatprep.mubr.f32.mxu0 0.0
        %3878 = vmatmul.mubr.f32.gmra.mrb[0].mxu0 %v3195
        %v3879 = vpop.f32.mrb[0].mxu0
        %v3880 = vadd.f32 0.0, %v3879
        %v3881 = vpop.f32.mrb[0].mxu0
        %3882 = vmatprep.mubr.f32.mxu0 0.0
        %3883 = vmatmul.mubr.f32.gmra.mrb[0].mxu0 %v3198
        %v3884 = vpop.f32.mrb[0].mxu0
        %v3885 = vadd.f32 0.0, %v3884
        %v3886 = vpop.f32.mrb[0].mxu0
        %3887 = vmatprep.mubr.f32.mxu0 0.0
        %3888 = vmatmul.mubr.f32.gmra.mrb[0].mxu0 %v3200
        %v3889 = vpop.f32.mrb[0].mxu0
        %v3890 = vadd.f32 0.0, %v3889
        %v3891 = vpop.f32.mrb[0].mxu0
        %3892 = vmatprep.mubr.f32.mxu0 0.0
        %3893 = vmatmul.mubr.f32.gmra.mrb[0].mxu0 %v3203
        %v3894 = vpop.f32.mrb[0].mxu0
        %v3895 = vadd.f32 0.0, %v3894
        %v3896 = vpop.f32.mrb[0].mxu0
        %3897 = vmatprep.mubr.f32.mxu0 0.0
        %3898 = vmatmul.mubr.f32.gmra.mrb[0].mxu0 %v3205
        %v3899 = vpop.f32.mrb[0].mxu0
        %v3900 = vadd.f32 0.0, %v3899
        %v3901 = vpop.f32.mrb[0].mxu0
        %3902 = vmatprep.mubr.f32.mxu0 0.0
        %3903 = vmatmul.mubr.f32.gmra.mrb[0].mxu0 %v3208
        %v3904 = vpop.f32.mrb[0].mxu0
        %v3905 = vadd.f32 0.0, %v3904
        %v3906 = vpop.f32.mrb[0].mxu0
        %3907 = vmatprep.mubr.f32.mxu0 0.0
        %3908 = vmatmul.mubr.f32.gmra.mrb[0].mxu0 %v3210
        %v3909 = vpop.f32.mrb[0].mxu0
        %v3910 = vadd.f32 0.0, %v3909
        %v3911 = vpop.f32.mrb[0].mxu0
        %3912 = vmatprep.mubr.f32.mxu0 0.0
        %3913 = vmatmul.mubr.f32.gmra.mrb[0].mxu0 %v3773
        %v3914 = vpop.f32.mrb[0].mxu0
        %v3915 = vadd.f32 0.0, %v3914
        %v3916 = vpop.f32.mrb[0].mxu0
        %3917 = vmatprep.mubr.f32.mxu0 0.0
        %3918 = vmatmul.mubr.f32.gmra.mrb[0].mxu0 %v3775
        %v3919 = vpop.f32.mrb[0].mxu0
        %v3920 = vadd.f32 0.0, %v3919
        %v3921 = vpop.f32.mrb[0].mxu0
        %3922 = vdwg.mxu0
        %v3923 = vadd.f32 %v3738, %v3845
        %v3924 = vadd.f32 %v3739, %v3850
        %v3925 = vadd.f32 %v3740, %v3855
        %v3926 = vadd.f32 %v3741, %v3860
        %v3927 = vadd.f32 %v3742, %v3865
        %v3928 = vadd.f32 %v3743, %v3870
        %v3929 = vadd.f32 %v3744, %v3875
        %v3930 = vadd.f32 %v3745, %v3880
        %v3931 = vadd.f32 %v3746, %v3885
        %v3932 = vadd.f32 %v3747, %v3890
        %v3933 = vadd.f32 %v3748, %v3895
        %v3934 = vadd.f32 %v3749, %v3900
        %v3935 = vadd.f32 %v3750, %v3905
        %v3936 = vadd.f32 %v3751, %v3910
        %v3937 = vadd.f32 %v3752, %v3915
        %v3938 = vadd.f32 %v3753, %v3920
        %s3939 = scalar_lea.vmem [#allocation5], 768
        %v3940 = vld [vmem:[%s3939] sm:$0xff]
        %v3941 = vld [vmem:[%s3939 + $0x8] sm:$0xff]
        %v3942 = vld [vmem:[%s3939 + $0x10] sm:$0xff]
        %v3943 = vld [vmem:[%s3939 + $0x18] sm:$0xff]
        %v3944 = vld [vmem:[%s3939 + $0x20] sm:$0xff]
        %v3945 = vld [vmem:[%s3939 + $0x28] sm:$0xff]
        %v3946 = vld [vmem:[%s3939 + $0x30] sm:$0xff]
        %v3947 = vld [vmem:[%s3939 + $0x38] sm:$0xff]
        %v3948 = vld [vmem:[%s3939 + $0x40] sm:$0xff]
        %v3949 = vld [vmem:[%s3939 + $0x48] sm:$0xff]
        %v3950 = vld [vmem:[%s3939 + $0x50] sm:$0xff]
        %v3951 = vld [vmem:[%s3939 + $0x58] sm:$0xff]
        %v3952 = vld [vmem:[%s3939 + $0x60] sm:$0xff]
        %v3953 = vld [vmem:[%s3939 + $0x68] sm:$0xff]
        %v3954 = vld [vmem:[%s3939 + $0x70] sm:$0xff]
        %v3955 = vld [vmem:[%s3939 + $0x78] sm:$0xff]
        %3956 = vmatprep.subr.mxu0 0.0
        %3957 = vmatpush1.msra.mxu0 %v3940
        %3958 = vmatprep.subr.mxu0 0.0
        %3959 = vmatpush1.msra.mxu0 %v3941
        %3960 = vmatprep.subr.mxu0 0.0
        %3961 = vmatpush1.msra.mxu0 %v3942
        %3962 = vmatprep.subr.mxu0 0.0
        %3963 = vmatpush1.msra.mxu0 %v3943
        %3964 = vmatprep.subr.mxu0 0.0
        %3965 = vmatpush1.msra.mxu0 %v3944
        %3966 = vmatprep.subr.mxu0 0.0
        %3967 = vmatpush1.msra.mxu0 %v3945
        %3968 = vmatprep.subr.mxu0 0.0
        %3969 = vmatpush1.msra.mxu0 %v3946
        %3970 = vmatprep.subr.mxu0 0.0
        %3971 = vmatpush1.msra.mxu0 %v3947
        %3972 = vmatprep.subr.mxu0 0.0
        %3973 = vmatpush1.msra.mxu0 %v3948
        %3974 = vmatprep.subr.mxu0 0.0
        %3975 = vmatpush1.msra.mxu0 %v3949
        %3976 = vmatprep.subr.mxu0 0.0
        %3977 = vmatpush1.msra.mxu0 %v3950
        %3978 = vmatprep.subr.mxu0 0.0
        %3979 = vmatpush1.msra.mxu0 %v3951
        %3980 = vmatprep.subr.mxu0 0.0
        %3981 = vmatpush1.msra.mxu0 %v3952
        %3982 = vmatprep.subr.mxu0 0.0
        %3983 = vmatpush1.msra.mxu0 %v3953
        %3984 = vmatprep.subr.mxu0 0.0
        %3985 = vmatpush1.msra.mxu0 %v3954
        %3986 = vmatprep.subr.mxu0 0.0
        %3987 = vmatpush1.msra.mxu0 %v3955
        %3988 = vmatprep.subr.mxu0 0.0
        %3989 = vmatpush1.msra.mxu0 0.0
        %3990 = vmatprep.subr.mxu0 0.0
        %3991 = vmatpush1.msra.mxu0 0.0
        %3992 = vmatprep.subr.mxu0 0.0
        %3993 = vmatpush1.msra.mxu0 0.0
        %3994 = vmatprep.subr.mxu0 0.0
        %3995 = vmatpush1.msra.mxu0 0.0
        %3996 = vmatprep.subr.mxu0 0.0
        %3997 = vmatpush1.msra.mxu0 0.0
        %3998 = vmatprep.subr.mxu0 0.0
        %3999 = vmatpush1.msra.mxu0 0.0
        %4000 = vmatprep.subr.mxu0 0.0
        %4001 = vmatpush1.msra.mxu0 0.0
        %4002 = vmatprep.subr.mxu0 0.0
        %4003 = vmatpush1.msra.mxu0 0.0
        %4004 = vmatprep.subr.mxu0 0.0
        %4005 = vmatpush1.msra.mxu0 0.0
        %4006 = vmatprep.subr.mxu0 0.0
        %4007 = vmatpush1.msra.mxu0 0.0
        %4008 = vmatprep.subr.mxu0 0.0
        %4009 = vmatpush1.msra.mxu0 0.0
        %4010 = vmatprep.subr.mxu0 0.0
        %4011 = vmatpush1.msra.mxu0 0.0
        %4012 = vmatprep.subr.mxu0 0.0
        %4013 = vmatpush1.msra.mxu0 0.0
        %4014 = vmatprep.subr.mxu0 0.0
        %4015 = vmatpush1.msra.mxu0 0.0
        %4016 = vmatprep.subr.mxu0 0.0
        %4017 = vmatpush1.msra.mxu0 0.0
        %4018 = vmatprep.subr.mxu0 0.0
        %4019 = vmatpush1.msra.mxu0 0.0
        %4020 = vmatprep.mubr.f32.mxu0 0.0
        %4021 = vmatmul.mubr.f32.gmra.mrb[0].mxu0 %v2688
        %v4022 = vpop.f32.mrb[0].mxu0
        %v4023 = vadd.f32 0.0, %v4022
        %v4024 = vpop.f32.mrb[0].mxu0
        %4025 = vmatprep.mubr.f32.mxu0 0.0
        %4026 = vmatmul.mubr.f32.gmra.mrb[0].mxu0 %v2689
        %v4027 = vpop.f32.mrb[0].mxu0
        %v4028 = vadd.f32 0.0, %v4027
        %v4029 = vpop.f32.mrb[0].mxu0
        %4030 = vmatprep.mubr.f32.mxu0 0.0
        %4031 = vmatmul.mubr.f32.gmra.mrb[0].mxu0 %v2691
        %v4032 = vpop.f32.mrb[0].mxu0
        %v4033 = vadd.f32 0.0, %v4032
        %v4034 = vpop.f32.mrb[0].mxu0
        %4035 = vmatprep.mubr.f32.mxu0 0.0
        %4036 = vmatmul.mubr.f32.gmra.mrb[0].mxu0 %v2692
        %v4037 = vpop.f32.mrb[0].mxu0
        %v4038 = vadd.f32 0.0, %v4037
        %v4039 = vpop.f32.mrb[0].mxu0
        %4040 = vmatprep.mubr.f32.mxu0 0.0
        %4041 = vmatmul.mubr.f32.gmra.mrb[0].mxu0 %v2694
        %v4042 = vpop.f32.mrb[0].mxu0
        %v4043 = vadd.f32 0.0, %v4042
        %v4044 = vpop.f32.mrb[0].mxu0
        %4045 = vmatprep.mubr.f32.mxu0 0.0
        %4046 = vmatmul.mubr.f32.gmra.mrb[0].mxu0 %v2695
        %v4047 = vpop.f32.mrb[0].mxu0
        %v4048 = vadd.f32 0.0, %v4047
        %v4049 = vpop.f32.mrb[0].mxu0
        %4050 = vmatprep.mubr.f32.mxu0 0.0
        %4051 = vmatmul.mubr.f32.gmra.mrb[0].mxu0 %v2697
        %v4052 = vpop.f32.mrb[0].mxu0
        %v4053 = vadd.f32 0.0, %v4052
        %v4054 = vpop.f32.mrb[0].mxu0
        %4055 = vmatprep.mubr.f32.mxu0 0.0
        %4056 = vmatmul.mubr.f32.gmra.mrb[0].mxu0 %v2698
        %v4057 = vpop.f32.mrb[0].mxu0
        %v4058 = vadd.f32 0.0, %v4057
        %v4059 = vpop.f32.mrb[0].mxu0
        %4060 = vmatprep.mubr.f32.mxu0 0.0
        %4061 = vmatmul.mubr.f32.gmra.mrb[0].mxu0 %v2700
        %v4062 = vpop.f32.mrb[0].mxu0
        %v4063 = vadd.f32 0.0, %v4062
        %v4064 = vpop.f32.mrb[0].mxu0
        %4065 = vmatprep.mubr.f32.mxu0 0.0
        %4066 = vmatmul.mubr.f32.gmra.mrb[0].mxu0 %v2701
        %v4067 = vpop.f32.mrb[0].mxu0
        %v4068 = vadd.f32 0.0, %v4067
        %v4069 = vpop.f32.mrb[0].mxu0
        %4070 = vmatprep.mubr.f32.mxu0 0.0
        %4071 = vmatmul.mubr.f32.gmra.mrb[0].mxu0 %v2703
        %v4072 = vpop.f32.mrb[0].mxu0
        %v4073 = vadd.f32 0.0, %v4072
        %v4074 = vpop.f32.mrb[0].mxu0
        %4075 = vmatprep.mubr.f32.mxu0 0.0
        %4076 = vmatmul.mubr.f32.gmra.mrb[0].mxu0 %v2704
        %v4077 = vpop.f32.mrb[0].mxu0
        %v4078 = vadd.f32 0.0, %v4077
        %v4079 = vpop.f32.mrb[0].mxu0
        %4080 = vmatprep.mubr.f32.mxu0 0.0
        %4081 = vmatmul.mubr.f32.gmra.mrb[0].mxu0 %v2706
        %v4082 = vpop.f32.mrb[0].mxu0
        %v4083 = vadd.f32 0.0, %v4082
        %v4084 = vpop.f32.mrb[0].mxu0
        %4085 = vmatprep.mubr.f32.mxu0 0.0
        %4086 = vmatmul.mubr.f32.gmra.mrb[0].mxu0 %v2707
        %v4087 = vpop.f32.mrb[0].mxu0
        %v4088 = vadd.f32 0.0, %v4087
        %v4089 = vpop.f32.mrb[0].mxu0
        %4090 = vmatprep.mubr.f32.mxu0 0.0
        %4091 = vmatmul.mubr.f32.gmra.mrb[0].mxu0 %v2709
        %v4092 = vpop.f32.mrb[0].mxu0
        %v4093 = vadd.f32 0.0, %v4092
        %v4094 = vpop.f32.mrb[0].mxu0
        %4095 = vmatprep.mubr.f32.mxu0 0.0
        %4096 = vmatmul.mubr.f32.gmra.mrb[0].mxu0 %v2710
        %v4097 = vpop.f32.mrb[0].mxu0
        %v4098 = vadd.f32 0.0, %v4097
        %v4099 = vpop.f32.mrb[0].mxu0
        %4100 = vdwg.mxu0
        %v4101 = vadd.f32 %v3923, %v4023
        %v4102 = vadd.f32 %v3924, %v4028
        %v4103 = vadd.f32 %v3925, %v4033
        %v4104 = vadd.f32 %v3926, %v4038
        %v4105 = vadd.f32 %v3927, %v4043
        %v4106 = vadd.f32 %v3928, %v4048
        %v4107 = vadd.f32 %v3929, %v4053
        %v4108 = vadd.f32 %v3930, %v4058
        %v4109 = vadd.f32 %v3931, %v4063
        %v4110 = vadd.f32 %v3932, %v4068
        %v4111 = vadd.f32 %v3933, %v4073
        %v4112 = vadd.f32 %v3934, %v4078
        %v4113 = vadd.f32 %v3935, %v4083
        %v4114 = vadd.f32 %v3936, %v4088
        %v4115 = vadd.f32 %v3937, %v4093
        %v4116 = vadd.f32 %v3938, %v4098
        %s4117 = scalar_lea.vmem [#allocation5], 896
        %v4118 = vld [vmem:[%s4117] sm:$0xff]
        %v4119 = vld [vmem:[%s4117 + $0x8] sm:$0xff]
        %v4120 = vld [vmem:[%s4117 + $0x10] sm:$0xff]
        %v4121 = vld [vmem:[%s4117 + $0x18] sm:$0xff]
        %v4122 = vld [vmem:[%s4117 + $0x20] sm:$0xff]
        %v4123 = vld [vmem:[%s4117 + $0x28] sm:$0xff]
        %v4124 = vld [vmem:[%s4117 + $0x30] sm:$0xff]
        %v4125 = vld [vmem:[%s4117 + $0x38] sm:$0xff]
        %v4126 = vld [vmem:[%s4117 + $0x40] sm:$0xff]
        %v4127 = vld [vmem:[%s4117 + $0x48] sm:$0xff]
        %v4128 = vld [vmem:[%s4117 + $0x50] sm:$0xff]
        %v4129 = vld [vmem:[%s4117 + $0x58] sm:$0xff]
        %v4130 = vld [vmem:[%s4117 + $0x60] sm:$0xff]
        %v4131 = vld [vmem:[%s4117 + $0x68] sm:$0xff]
        %v4132 = vld [vmem:[%s4117 + $0x70] sm:$0xff]
        %v4133 = vld [vmem:[%s4117 + $0x78] sm:$0xff]
        %v4137 = vrot.slane %v2709, 1
        %v4138 = vrot.slane %v2710, 1
        %v4139 = vsel %vm825, %v4137, %v4138
        %v4140 = vrot.slane %v2711, 1
        %v4141 = vsel %vm825, %v4138, %v4140
        %4144 = vmatprep.subr.mxu0 0.0
        %4145 = vmatpush1.msra.mxu0 %v4118
        %4146 = vmatprep.subr.mxu0 0.0
        %4147 = vmatpush1.msra.mxu0 %v4119
        %4148 = vmatprep.subr.mxu0 0.0
        %4149 = vmatpush1.msra.mxu0 %v4120
        %4150 = vmatprep.subr.mxu0 0.0
        %4151 = vmatpush1.msra.mxu0 %v4121
        %4152 = vmatprep.subr.mxu0 0.0
        %4153 = vmatpush1.msra.mxu0 %v4122
        %4154 = vmatprep.subr.mxu0 0.0
        %4155 = vmatpush1.msra.mxu0 %v4123
        %4156 = vmatprep.subr.mxu0 0.0
        %4157 = vmatpush1.msra.mxu0 %v4124
        %4158 = vmatprep.subr.mxu0 0.0
        %4159 = vmatpush1.msra.mxu0 %v4125
        %4160 = vmatprep.subr.mxu0 0.0
        %4161 = vmatpush1.msra.mxu0 %v4126
        %4162 = vmatprep.subr.mxu0 0.0
        %4163 = vmatpush1.msra.mxu0 %v4127
        %4164 = vmatprep.subr.mxu0 0.0
        %4165 = vmatpush1.msra.mxu0 %v4128
        %4166 = vmatprep.subr.mxu0 0.0
        %4167 = vmatpush1.msra.mxu0 %v4129
        %4168 = vmatprep.subr.mxu0 0.0
        %4169 = vmatpush1.msra.mxu0 %v4130
        %4170 = vmatprep.subr.mxu0 0.0
        %4171 = vmatpush1.msra.mxu0 %v4131
        %4172 = vmatprep.subr.mxu0 0.0
        %4173 = vmatpush1.msra.mxu0 %v4132
        %4174 = vmatprep.subr.mxu0 0.0
        %4175 = vmatpush1.msra.mxu0 %v4133
        %4176 = vmatprep.subr.mxu0 0.0
        %4177 = vmatpush1.msra.mxu0 0.0
        %4178 = vmatprep.subr.mxu0 0.0
        %4179 = vmatpush1.msra.mxu0 0.0
        %4180 = vmatprep.subr.mxu0 0.0
        %4181 = vmatpush1.msra.mxu0 0.0
        %4182 = vmatprep.subr.mxu0 0.0
        %4183 = vmatpush1.msra.mxu0 0.0
        %4184 = vmatprep.subr.mxu0 0.0
        %4185 = vmatpush1.msra.mxu0 0.0
        %4186 = vmatprep.subr.mxu0 0.0
        %4187 = vmatpush1.msra.mxu0 0.0
        %4188 = vmatprep.subr.mxu0 0.0
        %4189 = vmatpush1.msra.mxu0 0.0
        %4190 = vmatprep.subr.mxu0 0.0
        %4191 = vmatpush1.msra.mxu0 0.0
        %4192 = vmatprep.subr.mxu0 0.0
        %4193 = vmatpush1.msra.mxu0 0.0
        %4194 = vmatprep.subr.mxu0 0.0
        %4195 = vmatpush1.msra.mxu0 0.0
        %4196 = vmatprep.subr.mxu0 0.0
        %4197 = vmatpush1.msra.mxu0 0.0
        %4198 = vmatprep.subr.mxu0 0.0
        %4199 = vmatpush1.msra.mxu0 0.0
        %4200 = vmatprep.subr.mxu0 0.0
        %4201 = vmatpush1.msra.mxu0 0.0
        %4202 = vmatprep.subr.mxu0 0.0
        %4203 = vmatpush1.msra.mxu0 0.0
        %4204 = vmatprep.subr.mxu0 0.0
        %4205 = vmatpush1.msra.mxu0 0.0
        %4206 = vmatprep.subr.mxu0 0.0
        %4207 = vmatpush1.msra.mxu0 0.0
        %4208 = vmatprep.mubr.f32.mxu0 0.0
        %4209 = vmatmul.mubr.f32.gmra.mrb[0].mxu0 %v2949
        %v4210 = vpop.f32.mrb[0].mxu0
        %v4211 = vadd.f32 0.0, %v4210
        %v4212 = vpop.f32.mrb[0].mxu0
        %4213 = vmatprep.mubr.f32.mxu0 0.0
        %4214 = vmatmul.mubr.f32.gmra.mrb[0].mxu0 %v2951
        %v4215 = vpop.f32.mrb[0].mxu0
        %v4216 = vadd.f32 0.0, %v4215
        %v4217 = vpop.f32.mrb[0].mxu0
        %4218 = vmatprep.mubr.f32.mxu0 0.0
        %4219 = vmatmul.mubr.f32.gmra.mrb[0].mxu0 %v2954
        %v4220 = vpop.f32.mrb[0].mxu0
        %v4221 = vadd.f32 0.0, %v4220
        %v4222 = vpop.f32.mrb[0].mxu0
        %4223 = vmatprep.mubr.f32.mxu0 0.0
        %4224 = vmatmul.mubr.f32.gmra.mrb[0].mxu0 %v2956
        %v4225 = vpop.f32.mrb[0].mxu0
        %v4226 = vadd.f32 0.0, %v4225
        %v4227 = vpop.f32.mrb[0].mxu0
        %4228 = vmatprep.mubr.f32.mxu0 0.0
        %4229 = vmatmul.mubr.f32.gmra.mrb[0].mxu0 %v2959
        %v4230 = vpop.f32.mrb[0].mxu0
        %v4231 = vadd.f32 0.0, %v4230
        %v4232 = vpop.f32.mrb[0].mxu0
        %4233 = vmatprep.mubr.f32.mxu0 0.0
        %4234 = vmatmul.mubr.f32.gmra.mrb[0].mxu0 %v2961
        %v4235 = vpop.f32.mrb[0].mxu0
        %v4236 = vadd.f32 0.0, %v4235
        %v4237 = vpop.f32.mrb[0].mxu0
        %4238 = vmatprep.mubr.f32.mxu0 0.0
        %4239 = vmatmul.mubr.f32.gmra.mrb[0].mxu0 %v2964
        %v4240 = vpop.f32.mrb[0].mxu0
        %v4241 = vadd.f32 0.0, %v4240
        %v4242 = vpop.f32.mrb[0].mxu0
        %4243 = vmatprep.mubr.f32.mxu0 0.0
        %4244 = vmatmul.mubr.f32.gmra.mrb[0].mxu0 %v2966
        %v4245 = vpop.f32.mrb[0].mxu0
        %v4246 = vadd.f32 0.0, %v4245
        %v4247 = vpop.f32.mrb[0].mxu0
        %4248 = vmatprep.mubr.f32.mxu0 0.0
        %4249 = vmatmul.mubr.f32.gmra.mrb[0].mxu0 %v2969
        %v4250 = vpop.f32.mrb[0].mxu0
        %v4251 = vadd.f32 0.0, %v4250
        %v4252 = vpop.f32.mrb[0].mxu0
        %4253 = vmatprep.mubr.f32.mxu0 0.0
        %4254 = vmatmul.mubr.f32.gmra.mrb[0].mxu0 %v2971
        %v4255 = vpop.f32.mrb[0].mxu0
        %v4256 = vadd.f32 0.0, %v4255
        %v4257 = vpop.f32.mrb[0].mxu0
        %4258 = vmatprep.mubr.f32.mxu0 0.0
        %4259 = vmatmul.mubr.f32.gmra.mrb[0].mxu0 %v2974
        %v4260 = vpop.f32.mrb[0].mxu0
        %v4261 = vadd.f32 0.0, %v4260
        %v4262 = vpop.f32.mrb[0].mxu0
        %4263 = vmatprep.mubr.f32.mxu0 0.0
        %4264 = vmatmul.mubr.f32.gmra.mrb[0].mxu0 %v2976
        %v4265 = vpop.f32.mrb[0].mxu0
        %v4266 = vadd.f32 0.0, %v4265
        %v4267 = vpop.f32.mrb[0].mxu0
        %4268 = vmatprep.mubr.f32.mxu0 0.0
        %4269 = vmatmul.mubr.f32.gmra.mrb[0].mxu0 %v3588
        %v4270 = vpop.f32.mrb[0].mxu0
        %v4271 = vadd.f32 0.0, %v4270
        %v4272 = vpop.f32.mrb[0].mxu0
        %4273 = vmatprep.mubr.f32.mxu0 0.0
        %4274 = vmatmul.mubr.f32.gmra.mrb[0].mxu0 %v3590
        %v4275 = vpop.f32.mrb[0].mxu0
        %v4276 = vadd.f32 0.0, %v4275
        %v4277 = vpop.f32.mrb[0].mxu0
        %4278 = vmatprep.mubr.f32.mxu0 0.0
        %4279 = vmatmul.mubr.f32.gmra.mrb[0].mxu0 %v4139
        %v4280 = vpop.f32.mrb[0].mxu0
        %v4281 = vadd.f32 0.0, %v4280
        %v4282 = vpop.f32.mrb[0].mxu0
        %4283 = vmatprep.mubr.f32.mxu0 0.0
        %4284 = vmatmul.mubr.f32.gmra.mrb[0].mxu0 %v4141
        %v4285 = vpop.f32.mrb[0].mxu0
        %v4286 = vadd.f32 0.0, %v4285
        %v4287 = vpop.f32.mrb[0].mxu0
        %4288 = vdwg.mxu0
        %v4289 = vadd.f32 %v4101, %v4211
        %v4290 = vadd.f32 %v4102, %v4216
        %v4291 = vadd.f32 %v4103, %v4221
        %v4292 = vadd.f32 %v4104, %v4226
        %v4293 = vadd.f32 %v4105, %v4231
        %v4294 = vadd.f32 %v4106, %v4236
        %v4295 = vadd.f32 %v4107, %v4241
        %v4296 = vadd.f32 %v4108, %v4246
        %v4297 = vadd.f32 %v4109, %v4251
        %v4298 = vadd.f32 %v4110, %v4256
        %v4299 = vadd.f32 %v4111, %v4261
        %v4300 = vadd.f32 %v4112, %v4266
        %v4301 = vadd.f32 %v4113, %v4271
        %v4302 = vadd.f32 %v4114, %v4276
        %v4303 = vadd.f32 %v4115, %v4281
        %v4304 = vadd.f32 %v4116, %v4286
        %s4305 = scalar_lea.vmem [#allocation5], 1024
        %v4306 = vld [vmem:[%s4305] sm:$0xff]
        %v4307 = vld [vmem:[%s4305 + $0x8] sm:$0xff]
        %v4308 = vld [vmem:[%s4305 + $0x10] sm:$0xff]
        %v4309 = vld [vmem:[%s4305 + $0x18] sm:$0xff]
        %v4310 = vld [vmem:[%s4305 + $0x20] sm:$0xff]
        %v4311 = vld [vmem:[%s4305 + $0x28] sm:$0xff]
        %v4312 = vld [vmem:[%s4305 + $0x30] sm:$0xff]
        %v4313 = vld [vmem:[%s4305 + $0x38] sm:$0xff]
        %v4314 = vld [vmem:[%s4305 + $0x40] sm:$0xff]
        %v4315 = vld [vmem:[%s4305 + $0x48] sm:$0xff]
        %v4316 = vld [vmem:[%s4305 + $0x50] sm:$0xff]
        %v4317 = vld [vmem:[%s4305 + $0x58] sm:$0xff]
        %v4318 = vld [vmem:[%s4305 + $0x60] sm:$0xff]
        %v4319 = vld [vmem:[%s4305 + $0x68] sm:$0xff]
        %v4320 = vld [vmem:[%s4305 + $0x70] sm:$0xff]
        %v4321 = vld [vmem:[%s4305 + $0x78] sm:$0xff]
        %v4322 = vrot.slane %v2709, 2
        %v4323 = vrot.slane %v2710, 2
        %v4324 = vsel %vm1098, %v4322, %v4323
        %v4325 = vrot.slane %v2711, 2
        %v4326 = vsel %vm1098, %v4323, %v4325
        %4329 = vmatprep.subr.mxu0 0.0
        %4330 = vmatpush1.msra.mxu0 %v4306
        %4331 = vmatprep.subr.mxu0 0.0
        %4332 = vmatpush1.msra.mxu0 %v4307
        %4333 = vmatprep.subr.mxu0 0.0
        %4334 = vmatpush1.msra.mxu0 %v4308
        %4335 = vmatprep.subr.mxu0 0.0
        %4336 = vmatpush1.msra.mxu0 %v4309
        %4337 = vmatprep.subr.mxu0 0.0
        %4338 = vmatpush1.msra.mxu0 %v4310
        %4339 = vmatprep.subr.mxu0 0.0
        %4340 = vmatpush1.msra.mxu0 %v4311
        %4341 = vmatprep.subr.mxu0 0.0
        %4342 = vmatpush1.msra.mxu0 %v4312
        %4343 = vmatprep.subr.mxu0 0.0
        %4344 = vmatpush1.msra.mxu0 %v4313
        %4345 = vmatprep.subr.mxu0 0.0
        %4346 = vmatpush1.msra.mxu0 %v4314
        %4347 = vmatprep.subr.mxu0 0.0
        %4348 = vmatpush1.msra.mxu0 %v4315
        %4349 = vmatprep.subr.mxu0 0.0
        %4350 = vmatpush1.msra.mxu0 %v4316
        %4351 = vmatprep.subr.mxu0 0.0
        %4352 = vmatpush1.msra.mxu0 %v4317
        %4353 = vmatprep.subr.mxu0 0.0
        %4354 = vmatpush1.msra.mxu0 %v4318
        %4355 = vmatprep.subr.mxu0 0.0
        %4356 = vmatpush1.msra.mxu0 %v4319
        %4357 = vmatprep.subr.mxu0 0.0
        %4358 = vmatpush1.msra.mxu0 %v4320
        %4359 = vmatprep.subr.mxu0 0.0
        %4360 = vmatpush1.msra.mxu0 %v4321
        %4361 = vmatprep.subr.mxu0 0.0
        %4362 = vmatpush1.msra.mxu0 0.0
        %4363 = vmatprep.subr.mxu0 0.0
        %4364 = vmatpush1.msra.mxu0 0.0
        %4365 = vmatprep.subr.mxu0 0.0
        %4366 = vmatpush1.msra.mxu0 0.0
        %4367 = vmatprep.subr.mxu0 0.0
        %4368 = vmatpush1.msra.mxu0 0.0
        %4369 = vmatprep.subr.mxu0 0.0
        %4370 = vmatpush1.msra.mxu0 0.0
        %4371 = vmatprep.subr.mxu0 0.0
        %4372 = vmatpush1.msra.mxu0 0.0
        %4373 = vmatprep.subr.mxu0 0.0
        %4374 = vmatpush1.msra.mxu0 0.0
        %4375 = vmatprep.subr.mxu0 0.0
        %4376 = vmatpush1.msra.mxu0 0.0
        %4377 = vmatprep.subr.mxu0 0.0
        %4378 = vmatpush1.msra.mxu0 0.0
        %4379 = vmatprep.subr.mxu0 0.0
        %4380 = vmatpush1.msra.mxu0 0.0
        %4381 = vmatprep.subr.mxu0 0.0
        %4382 = vmatpush1.msra.mxu0 0.0
        %4383 = vmatprep.subr.mxu0 0.0
        %4384 = vmatpush1.msra.mxu0 0.0
        %4385 = vmatprep.subr.mxu0 0.0
        %4386 = vmatpush1.msra.mxu0 0.0
        %4387 = vmatprep.subr.mxu0 0.0
        %4388 = vmatpush1.msra.mxu0 0.0
        %4389 = vmatprep.subr.mxu0 0.0
        %4390 = vmatpush1.msra.mxu0 0.0
        %4391 = vmatprep.subr.mxu0 0.0
        %4392 = vmatpush1.msra.mxu0 0.0
        %4393 = vmatprep.mubr.f32.mxu0 0.0
        %4394 = vmatmul.mubr.f32.gmra.mrb[0].mxu0 %v3183
        %v4395 = vpop.f32.mrb[0].mxu0
        %v4396 = vadd.f32 0.0, %v4395
        %v4397 = vpop.f32.mrb[0].mxu0
        %4398 = vmatprep.mubr.f32.mxu0 0.0
        %4399 = vmatmul.mubr.f32.gmra.mrb[0].mxu0 %v3185
        %v4400 = vpop.f32.mrb[0].mxu0
        %v4401 = vadd.f32 0.0, %v4400
        %v4402 = vpop.f32.mrb[0].mxu0
        %4403 = vmatprep.mubr.f32.mxu0 0.0
        %4404 = vmatmul.mubr.f32.gmra.mrb[0].mxu0 %v3188
        %v4405 = vpop.f32.mrb[0].mxu0
        %v4406 = vadd.f32 0.0, %v4405
        %v4407 = vpop.f32.mrb[0].mxu0
        %4408 = vmatprep.mubr.f32.mxu0 0.0
        %4409 = vmatmul.mubr.f32.gmra.mrb[0].mxu0 %v3190
        %v4410 = vpop.f32.mrb[0].mxu0
        %v4411 = vadd.f32 0.0, %v4410
        %v4412 = vpop.f32.mrb[0].mxu0
        %4413 = vmatprep.mubr.f32.mxu0 0.0
        %4414 = vmatmul.mubr.f32.gmra.mrb[0].mxu0 %v3193
        %v4415 = vpop.f32.mrb[0].mxu0
        %v4416 = vadd.f32 0.0, %v4415
        %v4417 = vpop.f32.mrb[0].mxu0
        %4418 = vmatprep.mubr.f32.mxu0 0.0
        %4419 = vmatmul.mubr.f32.gmra.mrb[0].mxu0 %v3195
        %v4420 = vpop.f32.mrb[0].mxu0
        %v4421 = vadd.f32 0.0, %v4420
        %v4422 = vpop.f32.mrb[0].mxu0
        %4423 = vmatprep.mubr.f32.mxu0 0.0
        %4424 = vmatmul.mubr.f32.gmra.mrb[0].mxu0 %v3198
        %v4425 = vpop.f32.mrb[0].mxu0
        %v4426 = vadd.f32 0.0, %v4425
        %v4427 = vpop.f32.mrb[0].mxu0
        %4428 = vmatprep.mubr.f32.mxu0 0.0
        %4429 = vmatmul.mubr.f32.gmra.mrb[0].mxu0 %v3200
        %v4430 = vpop.f32.mrb[0].mxu0
        %v4431 = vadd.f32 0.0, %v4430
        %v4432 = vpop.f32.mrb[0].mxu0
        %4433 = vmatprep.mubr.f32.mxu0 0.0
        %4434 = vmatmul.mubr.f32.gmra.mrb[0].mxu0 %v3203
        %v4435 = vpop.f32.mrb[0].mxu0
        %v4436 = vadd.f32 0.0, %v4435
        %v4437 = vpop.f32.mrb[0].mxu0
        %4438 = vmatprep.mubr.f32.mxu0 0.0
        %4439 = vmatmul.mubr.f32.gmra.mrb[0].mxu0 %v3205
        %v4440 = vpop.f32.mrb[0].mxu0
        %v4441 = vadd.f32 0.0, %v4440
        %v4442 = vpop.f32.mrb[0].mxu0
        %4443 = vmatprep.mubr.f32.mxu0 0.0
        %4444 = vmatmul.mubr.f32.gmra.mrb[0].mxu0 %v3208
        %v4445 = vpop.f32.mrb[0].mxu0
        %v4446 = vadd.f32 0.0, %v4445
        %v4447 = vpop.f32.mrb[0].mxu0
        %4448 = vmatprep.mubr.f32.mxu0 0.0
        %4449 = vmatmul.mubr.f32.gmra.mrb[0].mxu0 %v3210
        %v4450 = vpop.f32.mrb[0].mxu0
        %v4451 = vadd.f32 0.0, %v4450
        %v4452 = vpop.f32.mrb[0].mxu0
        %4453 = vmatprep.mubr.f32.mxu0 0.0
        %4454 = vmatmul.mubr.f32.gmra.mrb[0].mxu0 %v3773
        %v4455 = vpop.f32.mrb[0].mxu0
        %v4456 = vadd.f32 0.0, %v4455
        %v4457 = vpop.f32.mrb[0].mxu0
        %4458 = vmatprep.mubr.f32.mxu0 0.0
        %4459 = vmatmul.mubr.f32.gmra.mrb[0].mxu0 %v3775
        %v4460 = vpop.f32.mrb[0].mxu0
        %v4461 = vadd.f32 0.0, %v4460
        %v4462 = vpop.f32.mrb[0].mxu0
        %4463 = vmatprep.mubr.f32.mxu0 0.0
        %4464 = vmatmul.mubr.f32.gmra.mrb[0].mxu0 %v4324
        %v4465 = vpop.f32.mrb[0].mxu0
        %v4466 = vadd.f32 0.0, %v4465
        %v4467 = vpop.f32.mrb[0].mxu0
        %4468 = vmatprep.mubr.f32.mxu0 0.0
        %4469 = vmatmul.mubr.f32.gmra.mrb[0].mxu0 %v4326
        %v4470 = vpop.f32.mrb[0].mxu0
        %v4471 = vadd.f32 0.0, %v4470
        %v4472 = vpop.f32.mrb[0].mxu0
        %4473 = vdwg.mxu0
        %v4474 = vadd.f32 %v4289, %v4396
        %v4475 = vadd.f32 %v4290, %v4401
        %v4476 = vadd.f32 %v4291, %v4406
        %v4477 = vadd.f32 %v4292, %v4411
        %v4478 = vadd.f32 %v4293, %v4416
        %v4479 = vadd.f32 %v4294, %v4421
        %v4480 = vadd.f32 %v4295, %v4426
        %v4481 = vadd.f32 %v4296, %v4431
        %v4482 = vadd.f32 %v4297, %v4436
        %v4483 = vadd.f32 %v4298, %v4441
        %v4484 = vadd.f32 %v4299, %v4446
        %v4485 = vadd.f32 %v4300, %v4451
        %v4486 = vadd.f32 %v4301, %v4456
        %v4487 = vadd.f32 %v4302, %v4461
        %v4488 = vadd.f32 %v4303, %v4466
        %v4489 = vadd.f32 %v4304, %v4471
        %vm4506 = vcmask 1040384
        %v4507 = vrot.slane %v4474, 7
        %v4508 = vrot.slane %v4475, 7
        %v4509 = vsel %vm4506, %v4507, %v4508
        %v4510 = vrot.slane %v4476, 7
        %v4511 = vrot.slane %v4477, 7
        %v4512 = vsel %vm4506, %v4510, %v4511
        %v4513 = vrot.slane %v4478, 7
        %v4514 = vrot.slane %v4479, 7
        %v4515 = vsel %vm4506, %v4513, %v4514
        %v4516 = vrot.slane %v4480, 7
        %v4517 = vrot.slane %v4481, 7
        %v4518 = vsel %vm4506, %v4516, %v4517
        %v4519 = vrot.slane %v4482, 7
        %v4520 = vrot.slane %v4483, 7
        %v4521 = vsel %vm4506, %v4519, %v4520
        %v4522 = vrot.slane %v4484, 7
        %v4523 = vrot.slane %v4485, 7
        %v4524 = vsel %vm4506, %v4522, %v4523
        %v4525 = vrot.slane %v4486, 7
        %v4526 = vrot.slane %v4487, 7
        %v4527 = vsel %vm4506, %v4525, %v4526
        %v4528 = vrot.slane %v4488, 7
        %v4529 = vrot.slane %v4489, 7
        %v4530 = vsel %vm4506, %v4528, %v4529
        %v4555 = vadd.f32 %v540, %v4507
        %v4556 = vadd.f32 %v541, %v4509
        %v4557 = vadd.f32 %v542, %v4508
        %v4558 = vadd.f32 %v543, %v4510
        %v4559 = vadd.f32 %v544, %v4512
        %v4560 = vadd.f32 %v545, %v4511
        %v4561 = vadd.f32 %v546, %v4513
        %v4562 = vadd.f32 %v547, %v4515
        %v4563 = vadd.f32 %v548, %v4514
        %v4564 = vadd.f32 %v549, %v4516
        %v4565 = vadd.f32 %v550, %v4518
        %v4566 = vadd.f32 %v551, %v4517
        %v4567 = vadd.f32 %v552, %v4519
        %v4568 = vadd.f32 %v553, %v4521
        %v4569 = vadd.f32 %v554, %v4520
        %v4570 = vadd.f32 %v555, %v4522
        %v4571 = vadd.f32 %v556, %v4524
        %v4572 = vadd.f32 %v557, %v4523
        %v4573 = vadd.f32 %v558, %v4525
        %v4574 = vadd.f32 %v559, %v4527
        %v4575 = vadd.f32 %v560, %v4526
        %v4576 = vadd.f32 %v561, %v4528
        %v4577 = vadd.f32 %v562, %v4530
        %v4578 = vadd.f32 %v563, %v4529
        %4579 = vst [vmem:[%s205 - $0x1] sm:$0xfe] %v4555
        %4580 = vst [vmem:[%s205 + $0x7] sm:$0xff] %v4556
        %4581 = vst [vmem:[%s205 + $0xf] sm:$0x1] %v4557
        %4582 = vst [vmem:[%s205 + $0xf] sm:$0xfe] %v4558
        %4583 = vst [vmem:[%s205 + $0x17] sm:$0xff] %v4559
        %4584 = vst [vmem:[%s205 + $0x1f] sm:$0x1] %v4560
        %4585 = vst [vmem:[%s205 + $0x1f] sm:$0xfe] %v4561
        %4586 = vst [vmem:[%s205 + $0x27] sm:$0xff] %v4562
        %4587 = vst [vmem:[%s205 + $0x2f] sm:$0x1] %v4563
        %4588 = vst [vmem:[%s205 + $0x2f] sm:$0xfe] %v4564
        %4589 = vst [vmem:[%s205 + $0x37] sm:$0xff] %v4565
        %4590 = vst [vmem:[%s205 + $0x3f] sm:$0x1] %v4566
        %4591 = vst [vmem:[%s205 + $0x3f] sm:$0xfe] %v4567
        %4592 = vst [vmem:[%s205 + $0x47] sm:$0xff] %v4568
        %4593 = vst [vmem:[%s205 + $0x4f] sm:$0x1] %v4569
        %4594 = vst [vmem:[%s205 + $0x4f] sm:$0xfe] %v4570
        %4595 = vst [vmem:[%s205 + $0x57] sm:$0xff] %v4571
        %4596 = vst [vmem:[%s205 + $0x5f] sm:$0x1] %v4572
        %4597 = vst [vmem:[%s205 + $0x5f] sm:$0xfe] %v4573
        %4598 = vst [vmem:[%s205 + $0x67] sm:$0xff] %v4574
        %4599 = vst [vmem:[%s205 + $0x6f] sm:$0x1] %v4575
        %4600 = vst [vmem:[%s205 + $0x6f] sm:$0xfe] %v4576
        %4601 = vst [vmem:[%s205 + $0x77] sm:$0xff] %v4577
        %4602 = vst [vmem:[%s205 + $0x7f] sm:$0x1] %v4578
        %s4603 = sand.u32 %s126, 1
        %s4604 = scalar_lea.sflag [#allocation7], %s4603
        %s4605 = sand.u32 %s126, 1
        %s4606 = smul.addr %s4605, 128
        %s4607 = scalar_lea.vmem [#allocation8], %s4606
        // Predicated region
        $region131: #{tpu_custom_call.1} parent=35 // pred_check
          %p4608 = pneg %p136
        $region132: #{tpu_custom_call.1} parent=35 // pred_check_branch
          %4610 = sbr.rel (%p4608) target = $region134
        $region133: #{tpu_custom_call.1} parent=35 // pred_region
          %s4611 = smul.u32 8, %s25
          %s4613 = ssub.s32 2048, 2048
          %4614 = vsyncadd %s4604, %s4613
          %s4615 = smul.addr %s4611, 2
          %s4616 = smul.addr %s24, 32
          %s4617 = sadd.s32 %s4615, %s4616
          %s4618 = smul.addr %s4617, 128
          %s4619 = scalar_lea.hbm %s5, %s4618
          %s4620 = sshll.u32 %s4607, 4
          %s4621 = int_to_ptr.vmem [resolvable:$true] %s4620
          %4626 = dma.vmem_to_hbm [thread:$0]  %s4621, 2048, %s4619, %s4604, 128, 128, 8
        $region134: #{tpu_custom_call.1} parent=35 // pred_fallthru
          _
      $region36: #{tpu_custom_call.1} parent=5 // pred_fallthru
        _
      %p4627 = scmp.le.s32.totalorder 2, %s15
      // Predicated region
      $region135: #{tpu_custom_call.1} parent=5 // pred_check
        %p4628 = pneg %p4627
      $region136: #{tpu_custom_call.1} parent=5 // pred_check_branch
        %4630 = sbr.rel (%p4628) target = $region138
      $region137: #{tpu_custom_call.1} parent=5 // pred_region
        %s4631 = ssub.s32 %s15, 2
        // Predicated region
        $region139: #{tpu_custom_call.1} parent=137 // pred_check
          %p4632 = pneg %p142
        $region140: #{tpu_custom_call.1} parent=137 // pred_check_branch
          %4634 = sbr.rel (%p4632) target = $region142
        $region141: #{tpu_custom_call.1} parent=137 // pred_region
          %s4635 = sand.u32 %s127, 1
          %s4636 = scalar_lea.sflag [#allocation7], %s4635
          %s4637 = sand.u32 %s127, 1
          %s4638 = smul.addr %s4637, 128
          %s4639 = scalar_lea.vmem [#allocation8], %s4638
          %4640 = dma.done %s4636, 2048
        $region142: #{tpu_custom_call.1} parent=137 // pred_fallthru
          _
      $region138: #{tpu_custom_call.1} parent=5 // pred_fallthru
        _
    $region6: #{tpu_custom_call.1} parent=1 // loop_footer
      %s19 = sadd.s32 1, %s15
    $region7: #{tpu_custom_call.1} parent=1 // loop_footer_branch
      %14 = sbr.rel target = $region3
    $region8: #{tpu_custom_call.1} parent=1 // loop_exit
      _
    %4641 = vsyncpa [#allocation6], 1
    %s4642 = scalar_lea.sflag [#allocation6], 1
    %4643 = vsyncpa %s4642, 1
    %4644 = vsyncpa [#allocation7], 1
    %s4645 = scalar_lea.sflag [#allocation7], 1
    %4646 = vsyncpa %s4645, 1
  %4647 = vsyncmov [#allocation4]
  %s4648 = vpop.sfrf %4647
  %p4649 = scmp.eq.s32.totalorder %s4648, 0
  %p4650 = pneg %p4649
  %4652 = shalt.err (%p4650)
  %s4653 = scalar_lea.sflag [#allocation4], 1
  %4654 = vsyncmov %s4653
  %s4655 = vpop.sfrf %4654
  %p4656 = scmp.eq.s32.totalorder %s4655, 0
  %p4657 = pneg %p4656
  %4659 = shalt.err (%p4657)

</llo_original>
